<compile_context>
chip_gen: v7x
topology: tpu7x:2x2x1
jax: 0.10.0
libtpu: 0.0.40
codegen_flags: <defaults>
</compile_context>

<pallas_src>
import functools

import numpy as np
import jax
import jax.numpy as jnp
from jax import lax
from jax.experimental import pallas as pl
from jax.experimental.pallas import tpu as pltpu

LOG2 = float(np.log(2.0))


def _softplus(x):
    # numerically stable softplus; log1p for parity with the PyTorch reference
    return jnp.maximum(x, 0.0) + jnp.log1p(jnp.exp(-jnp.abs(x)))


def _round_up(x, m):
    return ((x + m - 1) // m) * m


def _device_config():
    """Per-generation (num_shards, target_step_bytes, max_double_buffered_footprint)."""
    kind = ""
    try:
        kind = jax.devices()[0].device_kind.lower()
    except Exception:
        pass
    if "v7" in kind:
        # 2 TensorCores/chip, only 64 MiB VMEM but ~3.2 TB/s HBM: big steps,
        # double-buffered footprint capped well under physical VMEM.
        return 2, 8 << 20, 40 << 20
    if "v5 lite" in kind or "v5e" in kind:
        # single TC, ~0.8 TB/s HBM: ~2 MiB steps already saturate; stay near
        # the 16 MiB default scoped VMEM.
        return 1, 2 << 20, 12 << 20
    if "v4" in kind or "v5p" in kind:
        # megacore: two TensorCores share the chip.
        return 2, 4 << 20, 64 << 20
    # v6e / unknown: single TC, 128 MiB VMEM, ~1.4 TB/s HBM.
    return 1, 4 << 20, 64 << 20


def _pick_tile_rows(n_rows, d, target_step_bytes, max_footprint_bytes, itemsize):
    per_row = 2 * d * itemsize                                   # one row of h + one of hn
    tile = max(16, target_step_bytes // per_row)                 # ~target MiB per grid step
    tile = min(tile, max(16, (max_footprint_bytes // 2) // per_row))  # double-buffer cap
    tile = min(tile, _round_up(n_rows, 16))                      # never bigger than problem
    return int(max(16, (tile // 16) * 16))                       # bf16 sublane packing


def _pick_chunk_rows(tile_rows, max_chunk=512):
    c = max_chunk
    while c > 16 and tile_rows % c != 0:
        c //= 2
    return c if tile_rows % c == 0 else 16                       # tile_rows is %16 == 0


def _jsd_kernel(g_ref, h_ref, hn_ref, out_ref, acc_pos, acc_neg, *,
                n_rows, tile_rows, tiles_per_shard, chunk_rows, num_chunks, unroll):
    """One grid step streams one row-tile of h (positives) and hn (negatives).

    grid = (num_shards, tiles_per_shard): axis 0 is "parallel" (megacore),
    axis 1 is the streaming reduction ("arbitrary").
    acc_pos/acc_neg are VMEM f32[1, chunk_rows] lane-vector accumulators that
    persist across the reduction axis; the cross-lane reduce happens once, at
    the last grid step.
    """
    s = pl.program_id(0)
    j = pl.program_id(1)
    last_j = pl.num_programs(1) - 1

    @pl.when(j == 0)
    def _init():
        acc_pos[...] = jnp.zeros_like(acc_pos)
        acc_neg[...] = jnp.zeros_like(acc_neg)

    anchor = g_ref[...]                       # [1, D] f32, resident across the grid
    work_tile = s * tiles_per_shard + j       # un-clamped tile id -> ragged/dup masking
    base = work_tile * tile_rows
    col = lax.broadcasted_iota(jnp.int32, (1, chunk_rows), 1)
    dn = (((1,), (1,)), ((), ()))             # contract feature dims, no transpose copy

    def chunk_body(c, carry):
        start = pl.multiple_of(c * chunk_rows, chunk_rows)
        h_c = h_ref[pl.ds(start, chunk_rows), :].astype(jnp.float32)
        hn_c = hn_ref[pl.ds(start, chunk_rows), :].astype(jnp.float32)

        # sim = anchor @ chunk.T -> [1, chunk_rows], f32 accumulation on the MXU.
        sim_pos = lax.dot_general(anchor, h_c, dn, preferred_element_type=jnp.float32)
        sim_neg = lax.dot_general(anchor, hn_c, dn, preferred_element_type=jnp.float32)

        # Validity mask for ragged last tile / over-provisioned shard work
        # (the DMA block index is clamped in the wrapper; this un-clamped id
        # guarantees duplicated blocks contribute zero).
        valid = (base + start + col) < n_rows

        # log2 constants folded out (applied once in the wrapper):
        #   pos contributes  softplus(-sim)
        #   neg contributes  softplus(-sim) + sim
        acc_pos[...] += jnp.where(valid, _softplus(-sim_pos), 0.0)
        acc_neg[...] += jnp.where(valid, _softplus(-sim_neg) + sim_neg, 0.0)
        return carry

    lax.fori_loop(0, num_chunks, chunk_body, 0, unroll=unroll)

    @pl.when(j == last_j)
    def _finalize():
        out_ref[0, 0] = jnp.sum(acc_pos[...])
        out_ref[0, 1] = jnp.sum(acc_neg[...])


def single_branch_contrast_g2l(h, g, hn, *, tile_rows=None, num_shards=None,
                               stream_dtype=jnp.bfloat16):
    """h: [N, D] node embeddings, g: [1, D] graph summary, hn: [N, D] corrupted.

    Returns the scalar JSD contrast loss (E_neg - E_pos)."""
    M, D = g.shape
    N, Dh = h.shape
    assert M == 1, "G2L single-branch with explicit negatives needs one graph summary"
    assert Dh == D and hn.shape == h.shape

    itemsize = jnp.dtype(stream_dtype).itemsize
    auto_shards, target_step_bytes, max_footprint = _device_config()
    if num_shards is None:
        num_shards = auto_shards
    if tile_rows is None:
        tile_rows = _pick_tile_rows(N, D, target_step_bytes, max_footprint, itemsize)
    assert tile_rows % 16 == 0, "tile_rows must be a multiple of 16 (bf16 sublane packing)"

    total_tiles = int(pl.cdiv(N, tile_rows))
    num_shards = int(max(1, min(num_shards, total_tiles)))
    tiles_per_shard = int(pl.cdiv(total_tiles, num_shards))

    chunk_rows = _pick_chunk_rows(tile_rows)
    num_chunks = tile_rows // chunk_rows
    unroll = num_chunks <= 16

    # Anchor stays f32 (tiny; halves quantization error). Node embeddings
    # stream in bf16 to halve HBM traffic; accumulation is f32 in-kernel.
    g_c = g.astype(jnp.float32)
    h_c = h.astype(stream_dtype)
    hn_c = hn.astype(stream_dtype)

    def node_map(s, j):
        # Clamp so a DMA never starts past the end of the array; padded or
        # duplicated work contributes zero via the in-kernel validity mask
        # (which uses the *un-clamped* tile id).
        return (jnp.minimum(s * tiles_per_shard + j, total_tiles - 1), 0)

    kernel = functools.partial(
        _jsd_kernel, n_rows=N, tile_rows=tile_rows,
        tiles_per_shard=tiles_per_shard, chunk_rows=chunk_rows,
        num_chunks=num_chunks, unroll=unroll)

    # VMEM budget: 2 node inputs x 2 pipeline buffers + resident f32 anchor
    # + two (1, chunk) f32 accumulators (padded to 8 sublanes) + headroom.
    vmem_limit = int(4 * tile_rows * D * itemsize + 2 * D * 4
                     + 2 * 8 * chunk_rows * 4 + (8 << 20))
    vmem_limit = max(vmem_limit, 16 << 20)

    cost = pl.CostEstimate(flops=4 * N * D,
                           transcendentals=2 * N,
                           bytes_accessed=2 * N * D * itemsize + D * 4)

    partials = pl.pallas_call(
        kernel,
        out_shape=jax.ShapeDtypeStruct((num_shards, 2), jnp.float32),
        grid=(num_shards, tiles_per_shard),
        in_specs=[
            pl.BlockSpec((1, D), lambda s, j: (0, 0)),          # anchor, resident
            pl.BlockSpec((tile_rows, D), node_map),             # h  (positives)
            pl.BlockSpec((tile_rows, D), node_map),             # hn (negatives)
        ],
        out_specs=pl.BlockSpec((1, 2), lambda s, j: (s, 0),
                               memory_space=pltpu.MemorySpace.SMEM),
        scratch_shapes=[pltpu.VMEM((1, chunk_rows), jnp.float32),
                        pltpu.VMEM((1, chunk_rows), jnp.float32)],
        compiler_params=pltpu.CompilerParams(
            dimension_semantics=("parallel", "arbitrary"),
            vmem_limit_bytes=vmem_limit),
        cost_estimate=cost,
    )(g_c, h_c, hn_c)

    pos_sum = jnp.sum(partials[:, 0])   # sum softplus(-sim_pos)
    neg_sum = jnp.sum(partials[:, 1])   # sum softplus(-sim_neg) + sim_neg
    # loss = E_neg - E_pos, with the per-row log2 constants folded back in.
    return (pos_sum + neg_sum) * jnp.float32(1.0 / N) - jnp.float32(2.0 * LOG2)


def _reference(h, g, hn, stream_dtype=jnp.bfloat16):
    # pure-JAX reference of the same forward pass, with the same bf16 node
    # quantization as the kernel (anchor f32, accumulation in f32).
    h = h.astype(stream_dtype).astype(jnp.float32)
    hn = hn.astype(stream_dtype).astype(jnp.float32)
    g = g.astype(jnp.float32)
    N = h.shape[0]
    sp = lambda x: jnp.maximum(x, 0.0) + jnp.log1p(jnp.exp(-jnp.abs(x)))
    sim_pos = (g @ h.T)[0]                 # [N]
    sim_neg = (g @ hn.T)[0]                # [N]
    e_pos = jnp.sum(LOG2 - sp(-sim_pos)) / N
    e_neg = jnp.sum(sp(-sim_neg) + sim_neg - LOG2) / N
    return e_neg - e_pos


if __name__ == "__main__":
    key = jax.random.PRNGKey(0)
    k1, k2, k3 = jax.random.split(key, 3)

    # Case 1: small, ragged; also forced small tiles / 2 shards to exercise the
    # ragged-tile + clamped-duplicate-DMA + multi-shard paths.
    N, D = 200, 128
    h = jax.random.normal(k1, (N, D), dtype=jnp.float32)     # node embeddings
    hn = jax.random.normal(k2, (N, D), dtype=jnp.float32)    # corrupted nodes
    g = jax.random.normal(k3, (1, D), dtype=jnp.float32)     # graph summary

    ref = _reference(h, g, hn)

    loss_auto = single_branch_contrast_g2l(h, g, hn)         # auto tile/shard config
    jax.block_until_ready(loss_auto)
    assert np.allclose(np.asarray(loss_auto), np.asarray(ref),
                       rtol=2e-3, atol=2e-3), (loss_auto, ref)

    loss_tiled = single_branch_contrast_g2l(h, g, hn, tile_rows=64, num_shards=2)
    jax.block_until_ready(loss_tiled)
    assert np.allclose(np.asarray(loss_tiled), np.asarray(ref),
                       rtol=2e-3, atol=2e-3), (loss_tiled, ref)

    # Case 2: larger, exercises the adaptive multi-MiB tile + in-kernel chunking.
    N2, D2 = 4096, 256
    h2 = jax.random.normal(k1, (N2, D2), dtype=jnp.float32)
    hn2 = jax.random.normal(k2, (N2, D2), dtype=jnp.float32)
    g2 = jax.random.normal(k3, (1, D2), dtype=jnp.float32)

    loss2 = single_branch_contrast_g2l(h2, g2, hn2)
    jax.block_until_ready(loss2)
    ref2 = _reference(h2, g2, hn2)
    assert np.allclose(np.asarray(loss2), np.asarray(ref2),
                       rtol=2e-3, atol=2e-3), (loss2, ref2)

    print("KERNEL_OK")
</pallas_src>

<mosaic_0001>
module attributes {stable_mosaic.version = 11 : i64} {
  func.func @_jsd_kernel(%arg0: i32, %arg1: i32, %arg2: memref<1x128xf32, #tpu.memory_space<vmem>>, %arg3: memref<208x128xbf16, #tpu.memory_space<vmem>>, %arg4: memref<208x128xbf16, #tpu.memory_space<vmem>>, %arg5: memref<1x2xf32, #tpu.memory_space<smem>>, %arg6: memref<1x16xf32, #tpu.memory_space<vmem>>, %arg7: memref<1x16xf32, #tpu.memory_space<vmem>>) attributes {dimension_semantics = [#tpu.dimension_semantics<parallel>, #tpu.dimension_semantics<arbitrary>], iteration_bounds = array<i64: 1, 1>, scalar_prefetch = 0 : i64, scratch_operands = 2 : i64, tpu.core_type = #tpu.core_type<tc>, window_params = [{pipeline_mode = #tpu.pipeline_mode<synchronous>, transform_indices = @transform_0, window_bounds = array<i64: 1, 128>}, {transform_indices = @transform_1, window_bounds = array<i64: 208, 128>}, {transform_indices = @transform_2, window_bounds = array<i64: 208, 128>}, {transform_indices = @transform_3, window_bounds = array<i64: 1, 2>}]} {
    %c0_i32 = arith.constant 0 : i32
    %0 = arith.cmpi eq, %arg1, %c0_i32 : i32
    %1 = arith.extui %0 : i1 to i32
    %c0_i32_0 = arith.constant 0 : i32
    %2 = arith.cmpi ne, %1, %c0_i32_0 : i32
    scf.if %2 {
      %cst_289 = arith.constant 0.000000e+00 : f32
      %609 = vector.broadcast %cst_289 : f32 to vector<1x16xf32>
      %c0_290 = arith.constant 0 : index
      %c0_291 = arith.constant 0 : index
      %610 = vector.load %arg6[%c0_290, %c0_291] : memref<1x16xf32, #tpu.memory_space<vmem>>, vector<1x16xf32>
      tpu.vector_store %arg6[%c0_290, %c0_291], %609 {strides = array<i32>} : memref<1x16xf32, #tpu.memory_space<vmem>>, vector<1x16xf32>,
      %cst_292 = arith.constant 0.000000e+00 : f32
      %611 = vector.broadcast %cst_292 : f32 to vector<1x16xf32>
      %c0_293 = arith.constant 0 : index
      %c0_294 = arith.constant 0 : index
      %612 = vector.load %arg7[%c0_293, %c0_294] : memref<1x16xf32, #tpu.memory_space<vmem>>, vector<1x16xf32>
      tpu.vector_store %arg7[%c0_293, %c0_294], %611 {strides = array<i32>} : memref<1x16xf32, #tpu.memory_space<vmem>>, vector<1x16xf32>,
    } else {
    }
    %c0 = arith.constant 0 : index
    %c0_1 = arith.constant 0 : index
    %3 = vector.load %arg2[%c0, %c0_1] : memref<1x128xf32, #tpu.memory_space<vmem>>, vector<1x128xf32>
    %c1_i32 = arith.constant 1 : i32
    %4 = arith.muli %arg0, %c1_i32 : i32
    %5 = arith.addi %4, %arg1 : i32
    %c208_i32 = arith.constant 208 : i32
    %6 = arith.muli %5, %c208_i32 : i32
    %7 = tpu.iota {dimensions = array<i32: 1>} : vector<1x16xi32>
    %c0_i32_2 = arith.constant 0 : i32
    %c16_i32 = arith.constant 16 : i32
    %8 = arith.muli %c0_i32_2, %c16_i32 : i32
    %9 = tpu.assume_multiple %8, 16 : i32
    %10 = arith.index_cast %9 : i32 to index
    %c0_3 = arith.constant 0 : index
    %11 = vector.load %arg3[%10, %c0_3] : memref<208x128xbf16, #tpu.memory_space<vmem>>, vector<16x128xbf16>
    %12 = arith.extf %11 : vector<16x128xbf16> to vector<16x128xf32>
    %13 = arith.index_cast %9 : i32 to index
    %c0_4 = arith.constant 0 : index
    %14 = vector.load %arg4[%13, %c0_4] : memref<208x128xbf16, #tpu.memory_space<vmem>>, vector<16x128xbf16>
    %15 = arith.extf %14 : vector<16x128xbf16> to vector<16x128xf32>
    %cst = arith.constant dense<0.000000e+00> : vector<1x16xf32>
    %16 = tpu.matmul %3, %12, %cst {dimension_numbers = #tpu.dot_dimension_numbers<[1], [1], [0], [0], [0, 0, 1, 0], [], []>} : vector<1x128xf32>, vector<16x128xf32>, vector<1x16xf32> -> vector<1x16xf32>
    %cst_5 = arith.constant dense<0.000000e+00> : vector<1x16xf32>
    %17 = tpu.matmul %3, %15, %cst_5 {dimension_numbers = #tpu.dot_dimension_numbers<[1], [1], [0], [0], [0, 0, 1, 0], [], []>} : vector<1x128xf32>, vector<16x128xf32>, vector<1x16xf32> -> vector<1x16xf32>
    %18 = arith.addi %6, %9 : i32
    %19 = vector.broadcast %18 : i32 to vector<1x16xi32>
    %20 = arith.addi %19, %7 : vector<1x16xi32>
    %c200_i32 = arith.constant 200 : i32
    %21 = vector.broadcast %c200_i32 : i32 to vector<1x16xi32>
    %22 = arith.cmpi slt, %20, %21 : vector<1x16xi32>
    %c0_6 = arith.constant 0 : index
    %c0_7 = arith.constant 0 : index
    %23 = vector.load %arg6[%c0_6, %c0_7] : memref<1x16xf32, #tpu.memory_space<vmem>>, vector<1x16xf32>
    %cst_8 = arith.constant 0.000000e+00 : f32
    %24 = vector.broadcast %cst_8 : f32 to vector<1x16xf32>
    %25 = arith.subf %24, %16 : vector<1x16xf32>
    %cst_9 = arith.constant 0.000000e+00 : f32
    %26 = vector.broadcast %cst_9 : f32 to vector<1x16xf32>
    %27 = arith.maximumf %25, %26 : vector<1x16xf32>
    %28 = math.absf %25 : vector<1x16xf32>
    %cst_10 = arith.constant 0.000000e+00 : f32
    %29 = vector.broadcast %cst_10 : f32 to vector<1x16xf32>
    %30 = arith.subf %29, %28 : vector<1x16xf32>
    %31 = math.exp %30 : vector<1x16xf32>
    %32 = math.log1p %31 : vector<1x16xf32>
    %33 = arith.addf %27, %32 : vector<1x16xf32>
    %cst_11 = arith.constant 0.000000e+00 : f32
    %34 = vector.broadcast %cst_11 : f32 to vector<1x16xf32>
    %35 = arith.select %22, %33, %34 : vector<1x16xi1>, vector<1x16xf32>
    %36 = arith.addf %23, %35 : vector<1x16xf32>
    %c0_12 = arith.constant 0 : index
    %c0_13 = arith.constant 0 : index
    %37 = vector.load %arg6[%c0_12, %c0_13] : memref<1x16xf32, #tpu.memory_space<vmem>>, vector<1x16xf32>
    tpu.vector_store %arg6[%c0_12, %c0_13], %36 {strides = array<i32>} : memref<1x16xf32, #tpu.memory_space<vmem>>, vector<1x16xf32>,
    %c0_14 = arith.constant 0 : index
    %c0_15 = arith.constant 0 : index
    %38 = vector.load %arg7[%c0_14, %c0_15] : memref<1x16xf32, #tpu.memory_space<vmem>>, vector<1x16xf32>
    %cst_16 = arith.constant 0.000000e+00 : f32
    %39 = vector.broadcast %cst_16 : f32 to vector<1x16xf32>
    %40 = arith.subf %39, %17 : vector<1x16xf32>
    %cst_17 = arith.constant 0.000000e+00 : f32
    %41 = vector.broadcast %cst_17 : f32 to vector<1x16xf32>
    %42 = arith.maximumf %40, %41 : vector<1x16xf32>
    %43 = math.absf %40 : vector<1x16xf32>
    %cst_18 = arith.constant 0.000000e+00 : f32
    %44 = vector.broadcast %cst_18 : f32 to vector<1x16xf32>
    %45 = arith.subf %44, %43 : vector<1x16xf32>
    %46 = math.exp %45 : vector<1x16xf32>
    %47 = math.log1p %46 : vector<1x16xf32>
    %48 = arith.addf %42, %47 : vector<1x16xf32>
    %49 = arith.addf %48, %17 : vector<1x16xf32>
    %cst_19 = arith.constant 0.000000e+00 : f32
    %50 = vector.broadcast %cst_19 : f32 to vector<1x16xf32>
    %51 = arith.select %22, %49, %50 : vector<1x16xi1>, vector<1x16xf32>
    %52 = arith.addf %38, %51 : vector<1x16xf32>
    %c0_20 = arith.constant 0 : index
    %c0_21 = arith.constant 0 : index
    %53 = vector.load %arg7[%c0_20, %c0_21] : memref<1x16xf32, #tpu.memory_space<vmem>>, vector<1x16xf32>
    tpu.vector_store %arg7[%c0_20, %c0_21], %52 {strides = array<i32>} : memref<1x16xf32, #tpu.memory_space<vmem>>, vector<1x16xf32>,
    %c1_i32_22 = arith.constant 1 : i32
    %c16_i32_23 = arith.constant 16 : i32
    %54 = arith.muli %c1_i32_22, %c16_i32_23 : i32
    %55 = tpu.assume_multiple %54, 16 : i32
    %56 = arith.index_cast %55 : i32 to index
    %c0_24 = arith.constant 0 : index
    %57 = vector.load %arg3[%56, %c0_24] : memref<208x128xbf16, #tpu.memory_space<vmem>>, vector<16x128xbf16>
    %58 = arith.extf %57 : vector<16x128xbf16> to vector<16x128xf32>
    %59 = arith.index_cast %55 : i32 to index
    %c0_25 = arith.constant 0 : index
    %60 = vector.load %arg4[%59, %c0_25] : memref<208x128xbf16, #tpu.memory_space<vmem>>, vector<16x128xbf16>
    %61 = arith.extf %60 : vector<16x128xbf16> to vector<16x128xf32>
    %cst_26 = arith.constant dense<0.000000e+00> : vector<1x16xf32>
    %62 = tpu.matmul %3, %58, %cst_26 {dimension_numbers = #tpu.dot_dimension_numbers<[1], [1], [0], [0], [0, 0, 1, 0], [], []>} : vector<1x128xf32>, vector<16x128xf32>, vector<1x16xf32> -> vector<1x16xf32>
    %cst_27 = arith.constant dense<0.000000e+00> : vector<1x16xf32>
    %63 = tpu.matmul %3, %61, %cst_27 {dimension_numbers = #tpu.dot_dimension_numbers<[1], [1], [0], [0], [0, 0, 1, 0], [], []>} : vector<1x128xf32>, vector<16x128xf32>, vector<1x16xf32> -> vector<1x16xf32>
    %64 = arith.addi %6, %55 : i32
    %65 = vector.broadcast %64 : i32 to vector<1x16xi32>
    %66 = arith.addi %65, %7 : vector<1x16xi32>
    %c200_i32_28 = arith.constant 200 : i32
    %67 = vector.broadcast %c200_i32_28 : i32 to vector<1x16xi32>
    %68 = arith.cmpi slt, %66, %67 : vector<1x16xi32>
    %c0_29 = arith.constant 0 : index
    %c0_30 = arith.constant 0 : index
    %69 = vector.load %arg6[%c0_29, %c0_30] : memref<1x16xf32, #tpu.memory_space<vmem>>, vector<1x16xf32>
    %cst_31 = arith.constant 0.000000e+00 : f32
    %70 = vector.broadcast %cst_31 : f32 to vector<1x16xf32>
    %71 = arith.subf %70, %62 : vector<1x16xf32>
    %cst_32 = arith.constant 0.000000e+00 : f32
    %72 = vector.broadcast %cst_32 : f32 to vector<1x16xf32>
    %73 = arith.maximumf %71, %72 : vector<1x16xf32>
    %74 = math.absf %71 : vector<1x16xf32>
    %cst_33 = arith.constant 0.000000e+00 : f32
    %75 = vector.broadcast %cst_33 : f32 to vector<1x16xf32>
    %76 = arith.subf %75, %74 : vector<1x16xf32>
    %77 = math.exp %76 : vector<1x16xf32>
    %78 = math.log1p %77 : vector<1x16xf32>
    %79 = arith.addf %73, %78 : vector<1x16xf32>
    %cst_34 = arith.constant 0.000000e+00 : f32
    %80 = vector.broadcast %cst_34 : f32 to vector<1x16xf32>
    %81 = arith.select %68, %79, %80 : vector<1x16xi1>, vector<1x16xf32>
    %82 = arith.addf %69, %81 : vector<1x16xf32>
    %c0_35 = arith.constant 0 : index
    %c0_36 = arith.constant 0 : index
    %83 = vector.load %arg6[%c0_35, %c0_36] : memref<1x16xf32, #tpu.memory_space<vmem>>, vector<1x16xf32>
    tpu.vector_store %arg6[%c0_35, %c0_36], %82 {strides = array<i32>} : memref<1x16xf32, #tpu.memory_space<vmem>>, vector<1x16xf32>,
    %c0_37 = arith.constant 0 : index
    %c0_38 = arith.constant 0 : index
    %84 = vector.load %arg7[%c0_37, %c0_38] : memref<1x16xf32, #tpu.memory_space<vmem>>, vector<1x16xf32>
    %cst_39 = arith.constant 0.000000e+00 : f32
    %85 = vector.broadcast %cst_39 : f32 to vector<1x16xf32>
    %86 = arith.subf %85, %63 : vector<1x16xf32>
    %cst_40 = arith.constant 0.000000e+00 : f32
    %87 = vector.broadcast %cst_40 : f32 to vector<1x16xf32>
    %88 = arith.maximumf %86, %87 : vector<1x16xf32>
    %89 = math.absf %86 : vector<1x16xf32>
    %cst_41 = arith.constant 0.000000e+00 : f32
    %90 = vector.broadcast %cst_41 : f32 to vector<1x16xf32>
    %91 = arith.subf %90, %89 : vector<1x16xf32>
    %92 = math.exp %91 : vector<1x16xf32>
    %93 = math.log1p %92 : vector<1x16xf32>
    %94 = arith.addf %88, %93 : vector<1x16xf32>
    %95 = arith.addf %94, %63 : vector<1x16xf32>
    %cst_42 = arith.constant 0.000000e+00 : f32
    %96 = vector.broadcast %cst_42 : f32 to vector<1x16xf32>
    %97 = arith.select %68, %95, %96 : vector<1x16xi1>, vector<1x16xf32>
    %98 = arith.addf %84, %97 : vector<1x16xf32>
    %c0_43 = arith.constant 0 : index
    %c0_44 = arith.constant 0 : index
    %99 = vector.load %arg7[%c0_43, %c0_44] : memref<1x16xf32, #tpu.memory_space<vmem>>, vector<1x16xf32>
    tpu.vector_store %arg7[%c0_43, %c0_44], %98 {strides = array<i32>} : memref<1x16xf32, #tpu.memory_space<vmem>>, vector<1x16xf32>,
    %c2_i32 = arith.constant 2 : i32
    %c16_i32_45 = arith.constant 16 : i32
    %100 = arith.muli %c2_i32, %c16_i32_45 : i32
    %101 = tpu.assume_multiple %100, 16 : i32
    %102 = arith.index_cast %101 : i32 to index
    %c0_46 = arith.constant 0 : index
    %103 = vector.load %arg3[%102, %c0_46] : memref<208x128xbf16, #tpu.memory_space<vmem>>, vector<16x128xbf16>
    %104 = arith.extf %103 : vector<16x128xbf16> to vector<16x128xf32>
    %105 = arith.index_cast %101 : i32 to index
    %c0_47 = arith.constant 0 : index
    %106 = vector.load %arg4[%105, %c0_47] : memref<208x128xbf16, #tpu.memory_space<vmem>>, vector<16x128xbf16>
    %107 = arith.extf %106 : vector<16x128xbf16> to vector<16x128xf32>
    %cst_48 = arith.constant dense<0.000000e+00> : vector<1x16xf32>
    %108 = tpu.matmul %3, %104, %cst_48 {dimension_numbers = #tpu.dot_dimension_numbers<[1], [1], [0], [0], [0, 0, 1, 0], [], []>} : vector<1x128xf32>, vector<16x128xf32>, vector<1x16xf32> -> vector<1x16xf32>
    %cst_49 = arith.constant dense<0.000000e+00> : vector<1x16xf32>
    %109 = tpu.matmul %3, %107, %cst_49 {dimension_numbers = #tpu.dot_dimension_numbers<[1], [1], [0], [0], [0, 0, 1, 0], [], []>} : vector<1x128xf32>, vector<16x128xf32>, vector<1x16xf32> -> vector<1x16xf32>
    %110 = arith.addi %6, %101 : i32
    %111 = vector.broadcast %110 : i32 to vector<1x16xi32>
    %112 = arith.addi %111, %7 : vector<1x16xi32>
    %c200_i32_50 = arith.constant 200 : i32
    %113 = vector.broadcast %c200_i32_50 : i32 to vector<1x16xi32>
    %114 = arith.cmpi slt, %112, %113 : vector<1x16xi32>
    %c0_51 = arith.constant 0 : index
    %c0_52 = arith.constant 0 : index
    %115 = vector.load %arg6[%c0_51, %c0_52] : memref<1x16xf32, #tpu.memory_space<vmem>>, vector<1x16xf32>
    %cst_53 = arith.constant 0.000000e+00 : f32
    %116 = vector.broadcast %cst_53 : f32 to vector<1x16xf32>
    %117 = arith.subf %116, %108 : vector<1x16xf32>
    %cst_54 = arith.constant 0.000000e+00 : f32
    %118 = vector.broadcast %cst_54 : f32 to vector<1x16xf32>
    %119 = arith.maximumf %117, %118 : vector<1x16xf32>
    %120 = math.absf %117 : vector<1x16xf32>
    %cst_55 = arith.constant 0.000000e+00 : f32
    %121 = vector.broadcast %cst_55 : f32 to vector<1x16xf32>
    %122 = arith.subf %121, %120 : vector<1x16xf32>
    %123 = math.exp %122 : vector<1x16xf32>
    %124 = math.log1p %123 : vector<1x16xf32>
    %125 = arith.addf %119, %124 : vector<1x16xf32>
    %cst_56 = arith.constant 0.000000e+00 : f32
    %126 = vector.broadcast %cst_56 : f32 to vector<1x16xf32>
    %127 = arith.select %114, %125, %126 : vector<1x16xi1>, vector<1x16xf32>
    %128 = arith.addf %115, %127 : vector<1x16xf32>
    %c0_57 = arith.constant 0 : index
    %c0_58 = arith.constant 0 : index
    %129 = vector.load %arg6[%c0_57, %c0_58] : memref<1x16xf32, #tpu.memory_space<vmem>>, vector<1x16xf32>
    tpu.vector_store %arg6[%c0_57, %c0_58], %128 {strides = array<i32>} : memref<1x16xf32, #tpu.memory_space<vmem>>, vector<1x16xf32>,
    %c0_59 = arith.constant 0 : index
    %c0_60 = arith.constant 0 : index
    %130 = vector.load %arg7[%c0_59, %c0_60] : memref<1x16xf32, #tpu.memory_space<vmem>>, vector<1x16xf32>
    %cst_61 = arith.constant 0.000000e+00 : f32
    %131 = vector.broadcast %cst_61 : f32 to vector<1x16xf32>
    %132 = arith.subf %131, %109 : vector<1x16xf32>
    %cst_62 = arith.constant 0.000000e+00 : f32
    %133 = vector.broadcast %cst_62 : f32 to vector<1x16xf32>
    %134 = arith.maximumf %132, %133 : vector<1x16xf32>
    %135 = math.absf %132 : vector<1x16xf32>
    %cst_63 = arith.constant 0.000000e+00 : f32
    %136 = vector.broadcast %cst_63 : f32 to vector<1x16xf32>
    %137 = arith.subf %136, %135 : vector<1x16xf32>
    %138 = math.exp %137 : vector<1x16xf32>
    %139 = math.log1p %138 : vector<1x16xf32>
    %140 = arith.addf %134, %139 : vector<1x16xf32>
    %141 = arith.addf %140, %109 : vector<1x16xf32>
    %cst_64 = arith.constant 0.000000e+00 : f32
    %142 = vector.broadcast %cst_64 : f32 to vector<1x16xf32>
    %143 = arith.select %114, %141, %142 : vector<1x16xi1>, vector<1x16xf32>
    %144 = arith.addf %130, %143 : vector<1x16xf32>
    %c0_65 = arith.constant 0 : index
    %c0_66 = arith.constant 0 : index
    %145 = vector.load %arg7[%c0_65, %c0_66] : memref<1x16xf32, #tpu.memory_space<vmem>>, vector<1x16xf32>
    tpu.vector_store %arg7[%c0_65, %c0_66], %144 {strides = array<i32>} : memref<1x16xf32, #tpu.memory_space<vmem>>, vector<1x16xf32>,
    %c3_i32 = arith.constant 3 : i32
    %c16_i32_67 = arith.constant 16 : i32
    %146 = arith.muli %c3_i32, %c16_i32_67 : i32
    %147 = tpu.assume_multiple %146, 16 : i32
    %148 = arith.index_cast %147 : i32 to index
    %c0_68 = arith.constant 0 : index
    %149 = vector.load %arg3[%148, %c0_68] : memref<208x128xbf16, #tpu.memory_space<vmem>>, vector<16x128xbf16>
    %150 = arith.extf %149 : vector<16x128xbf16> to vector<16x128xf32>
    %151 = arith.index_cast %147 : i32 to index
    %c0_69 = arith.constant 0 : index
    %152 = vector.load %arg4[%151, %c0_69] : memref<208x128xbf16, #tpu.memory_space<vmem>>, vector<16x128xbf16>
    %153 = arith.extf %152 : vector<16x128xbf16> to vector<16x128xf32>
    %cst_70 = arith.constant dense<0.000000e+00> : vector<1x16xf32>
    %154 = tpu.matmul %3, %150, %cst_70 {dimension_numbers = #tpu.dot_dimension_numbers<[1], [1], [0], [0], [0, 0, 1, 0], [], []>} : vector<1x128xf32>, vector<16x128xf32>, vector<1x16xf32> -> vector<1x16xf32>
    %cst_71 = arith.constant dense<0.000000e+00> : vector<1x16xf32>
    %155 = tpu.matmul %3, %153, %cst_71 {dimension_numbers = #tpu.dot_dimension_numbers<[1], [1], [0], [0], [0, 0, 1, 0], [], []>} : vector<1x128xf32>, vector<16x128xf32>, vector<1x16xf32> -> vector<1x16xf32>
    %156 = arith.addi %6, %147 : i32
    %157 = vector.broadcast %156 : i32 to vector<1x16xi32>
    %158 = arith.addi %157, %7 : vector<1x16xi32>
    %c200_i32_72 = arith.constant 200 : i32
    %159 = vector.broadcast %c200_i32_72 : i32 to vector<1x16xi32>
    %160 = arith.cmpi slt, %158, %159 : vector<1x16xi32>
    %c0_73 = arith.constant 0 : index
    %c0_74 = arith.constant 0 : index
    %161 = vector.load %arg6[%c0_73, %c0_74] : memref<1x16xf32, #tpu.memory_space<vmem>>, vector<1x16xf32>
    %cst_75 = arith.constant 0.000000e+00 : f32
    %162 = vector.broadcast %cst_75 : f32 to vector<1x16xf32>
    %163 = arith.subf %162, %154 : vector<1x16xf32>
    %cst_76 = arith.constant 0.000000e+00 : f32
    %164 = vector.broadcast %cst_76 : f32 to vector<1x16xf32>
    %165 = arith.maximumf %163, %164 : vector<1x16xf32>
    %166 = math.absf %163 : vector<1x16xf32>
    %cst_77 = arith.constant 0.000000e+00 : f32
    %167 = vector.broadcast %cst_77 : f32 to vector<1x16xf32>
    %168 = arith.subf %167, %166 : vector<1x16xf32>
    %169 = math.exp %168 : vector<1x16xf32>
    %170 = math.log1p %169 : vector<1x16xf32>
    %171 = arith.addf %165, %170 : vector<1x16xf32>
    %cst_78 = arith.constant 0.000000e+00 : f32
    %172 = vector.broadcast %cst_78 : f32 to vector<1x16xf32>
    %173 = arith.select %160, %171, %172 : vector<1x16xi1>, vector<1x16xf32>
    %174 = arith.addf %161, %173 : vector<1x16xf32>
    %c0_79 = arith.constant 0 : index
    %c0_80 = arith.constant 0 : index
    %175 = vector.load %arg6[%c0_79, %c0_80] : memref<1x16xf32, #tpu.memory_space<vmem>>, vector<1x16xf32>
    tpu.vector_store %arg6[%c0_79, %c0_80], %174 {strides = array<i32>} : memref<1x16xf32, #tpu.memory_space<vmem>>, vector<1x16xf32>,
    %c0_81 = arith.constant 0 : index
    %c0_82 = arith.constant 0 : index
    %176 = vector.load %arg7[%c0_81, %c0_82] : memref<1x16xf32, #tpu.memory_space<vmem>>, vector<1x16xf32>
    %cst_83 = arith.constant 0.000000e+00 : f32
    %177 = vector.broadcast %cst_83 : f32 to vector<1x16xf32>
    %178 = arith.subf %177, %155 : vector<1x16xf32>
    %cst_84 = arith.constant 0.000000e+00 : f32
    %179 = vector.broadcast %cst_84 : f32 to vector<1x16xf32>
    %180 = arith.maximumf %178, %179 : vector<1x16xf32>
    %181 = math.absf %178 : vector<1x16xf32>
    %cst_85 = arith.constant 0.000000e+00 : f32
    %182 = vector.broadcast %cst_85 : f32 to vector<1x16xf32>
    %183 = arith.subf %182, %181 : vector<1x16xf32>
    %184 = math.exp %183 : vector<1x16xf32>
    %185 = math.log1p %184 : vector<1x16xf32>
    %186 = arith.addf %180, %185 : vector<1x16xf32>
    %187 = arith.addf %186, %155 : vector<1x16xf32>
    %cst_86 = arith.constant 0.000000e+00 : f32
    %188 = vector.broadcast %cst_86 : f32 to vector<1x16xf32>
    %189 = arith.select %160, %187, %188 : vector<1x16xi1>, vector<1x16xf32>
    %190 = arith.addf %176, %189 : vector<1x16xf32>
    %c0_87 = arith.constant 0 : index
    %c0_88 = arith.constant 0 : index
    %191 = vector.load %arg7[%c0_87, %c0_88] : memref<1x16xf32, #tpu.memory_space<vmem>>, vector<1x16xf32>
    tpu.vector_store %arg7[%c0_87, %c0_88], %190 {strides = array<i32>} : memref<1x16xf32, #tpu.memory_space<vmem>>, vector<1x16xf32>,
    %c4_i32 = arith.constant 4 : i32
    %c16_i32_89 = arith.constant 16 : i32
    %192 = arith.muli %c4_i32, %c16_i32_89 : i32
    %193 = tpu.assume_multiple %192, 16 : i32
    %194 = arith.index_cast %193 : i32 to index
    %c0_90 = arith.constant 0 : index
    %195 = vector.load %arg3[%194, %c0_90] : memref<208x128xbf16, #tpu.memory_space<vmem>>, vector<16x128xbf16>
    %196 = arith.extf %195 : vector<16x128xbf16> to vector<16x128xf32>
    %197 = arith.index_cast %193 : i32 to index
    %c0_91 = arith.constant 0 : index
    %198 = vector.load %arg4[%197, %c0_91] : memref<208x128xbf16, #tpu.memory_space<vmem>>, vector<16x128xbf16>
    %199 = arith.extf %198 : vector<16x128xbf16> to vector<16x128xf32>
    %cst_92 = arith.constant dense<0.000000e+00> : vector<1x16xf32>
    %200 = tpu.matmul %3, %196, %cst_92 {dimension_numbers = #tpu.dot_dimension_numbers<[1], [1], [0], [0], [0, 0, 1, 0], [], []>} : vector<1x128xf32>, vector<16x128xf32>, vector<1x16xf32> -> vector<1x16xf32>
    %cst_93 = arith.constant dense<0.000000e+00> : vector<1x16xf32>
    %201 = tpu.matmul %3, %199, %cst_93 {dimension_numbers = #tpu.dot_dimension_numbers<[1], [1], [0], [0], [0, 0, 1, 0], [], []>} : vector<1x128xf32>, vector<16x128xf32>, vector<1x16xf32> -> vector<1x16xf32>
    %202 = arith.addi %6, %193 : i32
    %203 = vector.broadcast %202 : i32 to vector<1x16xi32>
    %204 = arith.addi %203, %7 : vector<1x16xi32>
    %c200_i32_94 = arith.constant 200 : i32
    %205 = vector.broadcast %c200_i32_94 : i32 to vector<1x16xi32>
    %206 = arith.cmpi slt, %204, %205 : vector<1x16xi32>
    %c0_95 = arith.constant 0 : index
    %c0_96 = arith.constant 0 : index
    %207 = vector.load %arg6[%c0_95, %c0_96] : memref<1x16xf32, #tpu.memory_space<vmem>>, vector<1x16xf32>
    %cst_97 = arith.constant 0.000000e+00 : f32
    %208 = vector.broadcast %cst_97 : f32 to vector<1x16xf32>
    %209 = arith.subf %208, %200 : vector<1x16xf32>
    %cst_98 = arith.constant 0.000000e+00 : f32
    %210 = vector.broadcast %cst_98 : f32 to vector<1x16xf32>
    %211 = arith.maximumf %209, %210 : vector<1x16xf32>
    %212 = math.absf %209 : vector<1x16xf32>
    %cst_99 = arith.constant 0.000000e+00 : f32
    %213 = vector.broadcast %cst_99 : f32 to vector<1x16xf32>
    %214 = arith.subf %213, %212 : vector<1x16xf32>
    %215 = math.exp %214 : vector<1x16xf32>
    %216 = math.log1p %215 : vector<1x16xf32>
    %217 = arith.addf %211, %216 : vector<1x16xf32>
    %cst_100 = arith.constant 0.000000e+00 : f32
    %218 = vector.broadcast %cst_100 : f32 to vector<1x16xf32>
    %219 = arith.select %206, %217, %218 : vector<1x16xi1>, vector<1x16xf32>
    %220 = arith.addf %207, %219 : vector<1x16xf32>
    %c0_101 = arith.constant 0 : index
    %c0_102 = arith.constant 0 : index
    %221 = vector.load %arg6[%c0_101, %c0_102] : memref<1x16xf32, #tpu.memory_space<vmem>>, vector<1x16xf32>
    tpu.vector_store %arg6[%c0_101, %c0_102], %220 {strides = array<i32>} : memref<1x16xf32, #tpu.memory_space<vmem>>, vector<1x16xf32>,
    %c0_103 = arith.constant 0 : index
    %c0_104 = arith.constant 0 : index
    %222 = vector.load %arg7[%c0_103, %c0_104] : memref<1x16xf32, #tpu.memory_space<vmem>>, vector<1x16xf32>
    %cst_105 = arith.constant 0.000000e+00 : f32
    %223 = vector.broadcast %cst_105 : f32 to vector<1x16xf32>
    %224 = arith.subf %223, %201 : vector<1x16xf32>
    %cst_106 = arith.constant 0.000000e+00 : f32
    %225 = vector.broadcast %cst_106 : f32 to vector<1x16xf32>
    %226 = arith.maximumf %224, %225 : vector<1x16xf32>
    %227 = math.absf %224 : vector<1x16xf32>
    %cst_107 = arith.constant 0.000000e+00 : f32
    %228 = vector.broadcast %cst_107 : f32 to vector<1x16xf32>
    %229 = arith.subf %228, %227 : vector<1x16xf32>
    %230 = math.exp %229 : vector<1x16xf32>
    %231 = math.log1p %230 : vector<1x16xf32>
    %232 = arith.addf %226, %231 : vector<1x16xf32>
    %233 = arith.addf %232, %201 : vector<1x16xf32>
    %cst_108 = arith.constant 0.000000e+00 : f32
    %234 = vector.broadcast %cst_108 : f32 to vector<1x16xf32>
    %235 = arith.select %206, %233, %234 : vector<1x16xi1>, vector<1x16xf32>
    %236 = arith.addf %222, %235 : vector<1x16xf32>
    %c0_109 = arith.constant 0 : index
    %c0_110 = arith.constant 0 : index
    %237 = vector.load %arg7[%c0_109, %c0_110] : memref<1x16xf32, #tpu.memory_space<vmem>>, vector<1x16xf32>
    tpu.vector_store %arg7[%c0_109, %c0_110], %236 {strides = array<i32>} : memref<1x16xf32, #tpu.memory_space<vmem>>, vector<1x16xf32>,
    %c5_i32 = arith.constant 5 : i32
    %c16_i32_111 = arith.constant 16 : i32
    %238 = arith.muli %c5_i32, %c16_i32_111 : i32
    %239 = tpu.assume_multiple %238, 16 : i32
    %240 = arith.index_cast %239 : i32 to index
    %c0_112 = arith.constant 0 : index
    %241 = vector.load %arg3[%240, %c0_112] : memref<208x128xbf16, #tpu.memory_space<vmem>>, vector<16x128xbf16>
    %242 = arith.extf %241 : vector<16x128xbf16> to vector<16x128xf32>
    %243 = arith.index_cast %239 : i32 to index
    %c0_113 = arith.constant 0 : index
    %244 = vector.load %arg4[%243, %c0_113] : memref<208x128xbf16, #tpu.memory_space<vmem>>, vector<16x128xbf16>
    %245 = arith.extf %244 : vector<16x128xbf16> to vector<16x128xf32>
    %cst_114 = arith.constant dense<0.000000e+00> : vector<1x16xf32>
    %246 = tpu.matmul %3, %242, %cst_114 {dimension_numbers = #tpu.dot_dimension_numbers<[1], [1], [0], [0], [0, 0, 1, 0], [], []>} : vector<1x128xf32>, vector<16x128xf32>, vector<1x16xf32> -> vector<1x16xf32>
    %cst_115 = arith.constant dense<0.000000e+00> : vector<1x16xf32>
    %247 = tpu.matmul %3, %245, %cst_115 {dimension_numbers = #tpu.dot_dimension_numbers<[1], [1], [0], [0], [0, 0, 1, 0], [], []>} : vector<1x128xf32>, vector<16x128xf32>, vector<1x16xf32> -> vector<1x16xf32>
    %248 = arith.addi %6, %239 : i32
    %249 = vector.broadcast %248 : i32 to vector<1x16xi32>
    %250 = arith.addi %249, %7 : vector<1x16xi32>
    %c200_i32_116 = arith.constant 200 : i32
    %251 = vector.broadcast %c200_i32_116 : i32 to vector<1x16xi32>
    %252 = arith.cmpi slt, %250, %251 : vector<1x16xi32>
    %c0_117 = arith.constant 0 : index
    %c0_118 = arith.constant 0 : index
    %253 = vector.load %arg6[%c0_117, %c0_118] : memref<1x16xf32, #tpu.memory_space<vmem>>, vector<1x16xf32>
    %cst_119 = arith.constant 0.000000e+00 : f32
    %254 = vector.broadcast %cst_119 : f32 to vector<1x16xf32>
    %255 = arith.subf %254, %246 : vector<1x16xf32>
    %cst_120 = arith.constant 0.000000e+00 : f32
    %256 = vector.broadcast %cst_120 : f32 to vector<1x16xf32>
    %257 = arith.maximumf %255, %256 : vector<1x16xf32>
    %258 = math.absf %255 : vector<1x16xf32>
    %cst_121 = arith.constant 0.000000e+00 : f32
    %259 = vector.broadcast %cst_121 : f32 to vector<1x16xf32>
    %260 = arith.subf %259, %258 : vector<1x16xf32>
    %261 = math.exp %260 : vector<1x16xf32>
    %262 = math.log1p %261 : vector<1x16xf32>
    %263 = arith.addf %257, %262 : vector<1x16xf32>
    %cst_122 = arith.constant 0.000000e+00 : f32
    %264 = vector.broadcast %cst_122 : f32 to vector<1x16xf32>
    %265 = arith.select %252, %263, %264 : vector<1x16xi1>, vector<1x16xf32>
    %266 = arith.addf %253, %265 : vector<1x16xf32>
    %c0_123 = arith.constant 0 : index
    %c0_124 = arith.constant 0 : index
    %267 = vector.load %arg6[%c0_123, %c0_124] : memref<1x16xf32, #tpu.memory_space<vmem>>, vector<1x16xf32>
    tpu.vector_store %arg6[%c0_123, %c0_124], %266 {strides = array<i32>} : memref<1x16xf32, #tpu.memory_space<vmem>>, vector<1x16xf32>,
    %c0_125 = arith.constant 0 : index
    %c0_126 = arith.constant 0 : index
    %268 = vector.load %arg7[%c0_125, %c0_126] : memref<1x16xf32, #tpu.memory_space<vmem>>, vector<1x16xf32>
    %cst_127 = arith.constant 0.000000e+00 : f32
    %269 = vector.broadcast %cst_127 : f32 to vector<1x16xf32>
    %270 = arith.subf %269, %247 : vector<1x16xf32>
    %cst_128 = arith.constant 0.000000e+00 : f32
    %271 = vector.broadcast %cst_128 : f32 to vector<1x16xf32>
    %272 = arith.maximumf %270, %271 : vector<1x16xf32>
    %273 = math.absf %270 : vector<1x16xf32>
    %cst_129 = arith.constant 0.000000e+00 : f32
    %274 = vector.broadcast %cst_129 : f32 to vector<1x16xf32>
    %275 = arith.subf %274, %273 : vector<1x16xf32>
    %276 = math.exp %275 : vector<1x16xf32>
    %277 = math.log1p %276 : vector<1x16xf32>
    %278 = arith.addf %272, %277 : vector<1x16xf32>
    %279 = arith.addf %278, %247 : vector<1x16xf32>
    %cst_130 = arith.constant 0.000000e+00 : f32
    %280 = vector.broadcast %cst_130 : f32 to vector<1x16xf32>
    %281 = arith.select %252, %279, %280 : vector<1x16xi1>, vector<1x16xf32>
    %282 = arith.addf %268, %281 : vector<1x16xf32>
    %c0_131 = arith.constant 0 : index
    %c0_132 = arith.constant 0 : index
    %283 = vector.load %arg7[%c0_131, %c0_132] : memref<1x16xf32, #tpu.memory_space<vmem>>, vector<1x16xf32>
    tpu.vector_store %arg7[%c0_131, %c0_132], %282 {strides = array<i32>} : memref<1x16xf32, #tpu.memory_space<vmem>>, vector<1x16xf32>,
    %c6_i32 = arith.constant 6 : i32
    %c16_i32_133 = arith.constant 16 : i32
    %284 = arith.muli %c6_i32, %c16_i32_133 : i32
    %285 = tpu.assume_multiple %284, 16 : i32
    %286 = arith.index_cast %285 : i32 to index
    %c0_134 = arith.constant 0 : index
    %287 = vector.load %arg3[%286, %c0_134] : memref<208x128xbf16, #tpu.memory_space<vmem>>, vector<16x128xbf16>
    %288 = arith.extf %287 : vector<16x128xbf16> to vector<16x128xf32>
    %289 = arith.index_cast %285 : i32 to index
    %c0_135 = arith.constant 0 : index
    %290 = vector.load %arg4[%289, %c0_135] : memref<208x128xbf16, #tpu.memory_space<vmem>>, vector<16x128xbf16>
    %291 = arith.extf %290 : vector<16x128xbf16> to vector<16x128xf32>
    %cst_136 = arith.constant dense<0.000000e+00> : vector<1x16xf32>
    %292 = tpu.matmul %3, %288, %cst_136 {dimension_numbers = #tpu.dot_dimension_numbers<[1], [1], [0], [0], [0, 0, 1, 0], [], []>} : vector<1x128xf32>, vector<16x128xf32>, vector<1x16xf32> -> vector<1x16xf32>
    %cst_137 = arith.constant dense<0.000000e+00> : vector<1x16xf32>
    %293 = tpu.matmul %3, %291, %cst_137 {dimension_numbers = #tpu.dot_dimension_numbers<[1], [1], [0], [0], [0, 0, 1, 0], [], []>} : vector<1x128xf32>, vector<16x128xf32>, vector<1x16xf32> -> vector<1x16xf32>
    %294 = arith.addi %6, %285 : i32
    %295 = vector.broadcast %294 : i32 to vector<1x16xi32>
    %296 = arith.addi %295, %7 : vector<1x16xi32>
    %c200_i32_138 = arith.constant 200 : i32
    %297 = vector.broadcast %c200_i32_138 : i32 to vector<1x16xi32>
    %298 = arith.cmpi slt, %296, %297 : vector<1x16xi32>
    %c0_139 = arith.constant 0 : index
    %c0_140 = arith.constant 0 : index
    %299 = vector.load %arg6[%c0_139, %c0_140] : memref<1x16xf32, #tpu.memory_space<vmem>>, vector<1x16xf32>
    %cst_141 = arith.constant 0.000000e+00 : f32
    %300 = vector.broadcast %cst_141 : f32 to vector<1x16xf32>
    %301 = arith.subf %300, %292 : vector<1x16xf32>
    %cst_142 = arith.constant 0.000000e+00 : f32
    %302 = vector.broadcast %cst_142 : f32 to vector<1x16xf32>
    %303 = arith.maximumf %301, %302 : vector<1x16xf32>
    %304 = math.absf %301 : vector<1x16xf32>
    %cst_143 = arith.constant 0.000000e+00 : f32
    %305 = vector.broadcast %cst_143 : f32 to vector<1x16xf32>
    %306 = arith.subf %305, %304 : vector<1x16xf32>
    %307 = math.exp %306 : vector<1x16xf32>
    %308 = math.log1p %307 : vector<1x16xf32>
    %309 = arith.addf %303, %308 : vector<1x16xf32>
    %cst_144 = arith.constant 0.000000e+00 : f32
    %310 = vector.broadcast %cst_144 : f32 to vector<1x16xf32>
    %311 = arith.select %298, %309, %310 : vector<1x16xi1>, vector<1x16xf32>
    %312 = arith.addf %299, %311 : vector<1x16xf32>
    %c0_145 = arith.constant 0 : index
    %c0_146 = arith.constant 0 : index
    %313 = vector.load %arg6[%c0_145, %c0_146] : memref<1x16xf32, #tpu.memory_space<vmem>>, vector<1x16xf32>
    tpu.vector_store %arg6[%c0_145, %c0_146], %312 {strides = array<i32>} : memref<1x16xf32, #tpu.memory_space<vmem>>, vector<1x16xf32>,
    %c0_147 = arith.constant 0 : index
    %c0_148 = arith.constant 0 : index
    %314 = vector.load %arg7[%c0_147, %c0_148] : memref<1x16xf32, #tpu.memory_space<vmem>>, vector<1x16xf32>
    %cst_149 = arith.constant 0.000000e+00 : f32
    %315 = vector.broadcast %cst_149 : f32 to vector<1x16xf32>
    %316 = arith.subf %315, %293 : vector<1x16xf32>
    %cst_150 = arith.constant 0.000000e+00 : f32
    %317 = vector.broadcast %cst_150 : f32 to vector<1x16xf32>
    %318 = arith.maximumf %316, %317 : vector<1x16xf32>
    %319 = math.absf %316 : vector<1x16xf32>
    %cst_151 = arith.constant 0.000000e+00 : f32
    %320 = vector.broadcast %cst_151 : f32 to vector<1x16xf32>
    %321 = arith.subf %320, %319 : vector<1x16xf32>
    %322 = math.exp %321 : vector<1x16xf32>
    %323 = math.log1p %322 : vector<1x16xf32>
    %324 = arith.addf %318, %323 : vector<1x16xf32>
    %325 = arith.addf %324, %293 : vector<1x16xf32>
    %cst_152 = arith.constant 0.000000e+00 : f32
    %326 = vector.broadcast %cst_152 : f32 to vector<1x16xf32>
    %327 = arith.select %298, %325, %326 : vector<1x16xi1>, vector<1x16xf32>
    %328 = arith.addf %314, %327 : vector<1x16xf32>
    %c0_153 = arith.constant 0 : index
    %c0_154 = arith.constant 0 : index
    %329 = vector.load %arg7[%c0_153, %c0_154] : memref<1x16xf32, #tpu.memory_space<vmem>>, vector<1x16xf32>
    tpu.vector_store %arg7[%c0_153, %c0_154], %328 {strides = array<i32>} : memref<1x16xf32, #tpu.memory_space<vmem>>, vector<1x16xf32>,
    %c7_i32 = arith.constant 7 : i32
    %c16_i32_155 = arith.constant 16 : i32
    %330 = arith.muli %c7_i32, %c16_i32_155 : i32
    %331 = tpu.assume_multiple %330, 16 : i32
    %332 = arith.index_cast %331 : i32 to index
    %c0_156 = arith.constant 0 : index
    %333 = vector.load %arg3[%332, %c0_156] : memref<208x128xbf16, #tpu.memory_space<vmem>>, vector<16x128xbf16>
    %334 = arith.extf %333 : vector<16x128xbf16> to vector<16x128xf32>
    %335 = arith.index_cast %331 : i32 to index
    %c0_157 = arith.constant 0 : index
    %336 = vector.load %arg4[%335, %c0_157] : memref<208x128xbf16, #tpu.memory_space<vmem>>, vector<16x128xbf16>
    %337 = arith.extf %336 : vector<16x128xbf16> to vector<16x128xf32>
    %cst_158 = arith.constant dense<0.000000e+00> : vector<1x16xf32>
    %338 = tpu.matmul %3, %334, %cst_158 {dimension_numbers = #tpu.dot_dimension_numbers<[1], [1], [0], [0], [0, 0, 1, 0], [], []>} : vector<1x128xf32>, vector<16x128xf32>, vector<1x16xf32> -> vector<1x16xf32>
    %cst_159 = arith.constant dense<0.000000e+00> : vector<1x16xf32>
    %339 = tpu.matmul %3, %337, %cst_159 {dimension_numbers = #tpu.dot_dimension_numbers<[1], [1], [0], [0], [0, 0, 1, 0], [], []>} : vector<1x128xf32>, vector<16x128xf32>, vector<1x16xf32> -> vector<1x16xf32>
    %340 = arith.addi %6, %331 : i32
    %341 = vector.broadcast %340 : i32 to vector<1x16xi32>
    %342 = arith.addi %341, %7 : vector<1x16xi32>
    %c200_i32_160 = arith.constant 200 : i32
    %343 = vector.broadcast %c200_i32_160 : i32 to vector<1x16xi32>
    %344 = arith.cmpi slt, %342, %343 : vector<1x16xi32>
    %c0_161 = arith.constant 0 : index
    %c0_162 = arith.constant 0 : index
    %345 = vector.load %arg6[%c0_161, %c0_162] : memref<1x16xf32, #tpu.memory_space<vmem>>, vector<1x16xf32>
    %cst_163 = arith.constant 0.000000e+00 : f32
    %346 = vector.broadcast %cst_163 : f32 to vector<1x16xf32>
    %347 = arith.subf %346, %338 : vector<1x16xf32>
    %cst_164 = arith.constant 0.000000e+00 : f32
    %348 = vector.broadcast %cst_164 : f32 to vector<1x16xf32>
    %349 = arith.maximumf %347, %348 : vector<1x16xf32>
    %350 = math.absf %347 : vector<1x16xf32>
    %cst_165 = arith.constant 0.000000e+00 : f32
    %351 = vector.broadcast %cst_165 : f32 to vector<1x16xf32>
    %352 = arith.subf %351, %350 : vector<1x16xf32>
    %353 = math.exp %352 : vector<1x16xf32>
    %354 = math.log1p %353 : vector<1x16xf32>
    %355 = arith.addf %349, %354 : vector<1x16xf32>
    %cst_166 = arith.constant 0.000000e+00 : f32
    %356 = vector.broadcast %cst_166 : f32 to vector<1x16xf32>
    %357 = arith.select %344, %355, %356 : vector<1x16xi1>, vector<1x16xf32>
    %358 = arith.addf %345, %357 : vector<1x16xf32>
    %c0_167 = arith.constant 0 : index
    %c0_168 = arith.constant 0 : index
    %359 = vector.load %arg6[%c0_167, %c0_168] : memref<1x16xf32, #tpu.memory_space<vmem>>, vector<1x16xf32>
    tpu.vector_store %arg6[%c0_167, %c0_168], %358 {strides = array<i32>} : memref<1x16xf32, #tpu.memory_space<vmem>>, vector<1x16xf32>,
    %c0_169 = arith.constant 0 : index
    %c0_170 = arith.constant 0 : index
    %360 = vector.load %arg7[%c0_169, %c0_170] : memref<1x16xf32, #tpu.memory_space<vmem>>, vector<1x16xf32>
    %cst_171 = arith.constant 0.000000e+00 : f32
    %361 = vector.broadcast %cst_171 : f32 to vector<1x16xf32>
    %362 = arith.subf %361, %339 : vector<1x16xf32>
    %cst_172 = arith.constant 0.000000e+00 : f32
    %363 = vector.broadcast %cst_172 : f32 to vector<1x16xf32>
    %364 = arith.maximumf %362, %363 : vector<1x16xf32>
    %365 = math.absf %362 : vector<1x16xf32>
    %cst_173 = arith.constant 0.000000e+00 : f32
    %366 = vector.broadcast %cst_173 : f32 to vector<1x16xf32>
    %367 = arith.subf %366, %365 : vector<1x16xf32>
    %368 = math.exp %367 : vector<1x16xf32>
    %369 = math.log1p %368 : vector<1x16xf32>
    %370 = arith.addf %364, %369 : vector<1x16xf32>
    %371 = arith.addf %370, %339 : vector<1x16xf32>
    %cst_174 = arith.constant 0.000000e+00 : f32
    %372 = vector.broadcast %cst_174 : f32 to vector<1x16xf32>
    %373 = arith.select %344, %371, %372 : vector<1x16xi1>, vector<1x16xf32>
    %374 = arith.addf %360, %373 : vector<1x16xf32>
    %c0_175 = arith.constant 0 : index
    %c0_176 = arith.constant 0 : index
    %375 = vector.load %arg7[%c0_175, %c0_176] : memref<1x16xf32, #tpu.memory_space<vmem>>, vector<1x16xf32>
    tpu.vector_store %arg7[%c0_175, %c0_176], %374 {strides = array<i32>} : memref<1x16xf32, #tpu.memory_space<vmem>>, vector<1x16xf32>,
    %c8_i32 = arith.constant 8 : i32
    %c16_i32_177 = arith.constant 16 : i32
    %376 = arith.muli %c8_i32, %c16_i32_177 : i32
    %377 = tpu.assume_multiple %376, 16 : i32
    %378 = arith.index_cast %377 : i32 to index
    %c0_178 = arith.constant 0 : index
    %379 = vector.load %arg3[%378, %c0_178] : memref<208x128xbf16, #tpu.memory_space<vmem>>, vector<16x128xbf16>
    %380 = arith.extf %379 : vector<16x128xbf16> to vector<16x128xf32>
    %381 = arith.index_cast %377 : i32 to index
    %c0_179 = arith.constant 0 : index
    %382 = vector.load %arg4[%381, %c0_179] : memref<208x128xbf16, #tpu.memory_space<vmem>>, vector<16x128xbf16>
    %383 = arith.extf %382 : vector<16x128xbf16> to vector<16x128xf32>
    %cst_180 = arith.constant dense<0.000000e+00> : vector<1x16xf32>
    %384 = tpu.matmul %3, %380, %cst_180 {dimension_numbers = #tpu.dot_dimension_numbers<[1], [1], [0], [0], [0, 0, 1, 0], [], []>} : vector<1x128xf32>, vector<16x128xf32>, vector<1x16xf32> -> vector<1x16xf32>
    %cst_181 = arith.constant dense<0.000000e+00> : vector<1x16xf32>
    %385 = tpu.matmul %3, %383, %cst_181 {dimension_numbers = #tpu.dot_dimension_numbers<[1], [1], [0], [0], [0, 0, 1, 0], [], []>} : vector<1x128xf32>, vector<16x128xf32>, vector<1x16xf32> -> vector<1x16xf32>
    %386 = arith.addi %6, %377 : i32
    %387 = vector.broadcast %386 : i32 to vector<1x16xi32>
    %388 = arith.addi %387, %7 : vector<1x16xi32>
    %c200_i32_182 = arith.constant 200 : i32
    %389 = vector.broadcast %c200_i32_182 : i32 to vector<1x16xi32>
    %390 = arith.cmpi slt, %388, %389 : vector<1x16xi32>
    %c0_183 = arith.constant 0 : index
    %c0_184 = arith.constant 0 : index
    %391 = vector.load %arg6[%c0_183, %c0_184] : memref<1x16xf32, #tpu.memory_space<vmem>>, vector<1x16xf32>
    %cst_185 = arith.constant 0.000000e+00 : f32
    %392 = vector.broadcast %cst_185 : f32 to vector<1x16xf32>
    %393 = arith.subf %392, %384 : vector<1x16xf32>
    %cst_186 = arith.constant 0.000000e+00 : f32
    %394 = vector.broadcast %cst_186 : f32 to vector<1x16xf32>
    %395 = arith.maximumf %393, %394 : vector<1x16xf32>
    %396 = math.absf %393 : vector<1x16xf32>
    %cst_187 = arith.constant 0.000000e+00 : f32
    %397 = vector.broadcast %cst_187 : f32 to vector<1x16xf32>
    %398 = arith.subf %397, %396 : vector<1x16xf32>
    %399 = math.exp %398 : vector<1x16xf32>
    %400 = math.log1p %399 : vector<1x16xf32>
    %401 = arith.addf %395, %400 : vector<1x16xf32>
    %cst_188 = arith.constant 0.000000e+00 : f32
    %402 = vector.broadcast %cst_188 : f32 to vector<1x16xf32>
    %403 = arith.select %390, %401, %402 : vector<1x16xi1>, vector<1x16xf32>
    %404 = arith.addf %391, %403 : vector<1x16xf32>
    %c0_189 = arith.constant 0 : index
    %c0_190 = arith.constant 0 : index
    %405 = vector.load %arg6[%c0_189, %c0_190] : memref<1x16xf32, #tpu.memory_space<vmem>>, vector<1x16xf32>
    tpu.vector_store %arg6[%c0_189, %c0_190], %404 {strides = array<i32>} : memref<1x16xf32, #tpu.memory_space<vmem>>, vector<1x16xf32>,
    %c0_191 = arith.constant 0 : index
    %c0_192 = arith.constant 0 : index
    %406 = vector.load %arg7[%c0_191, %c0_192] : memref<1x16xf32, #tpu.memory_space<vmem>>, vector<1x16xf32>
    %cst_193 = arith.constant 0.000000e+00 : f32
    %407 = vector.broadcast %cst_193 : f32 to vector<1x16xf32>
    %408 = arith.subf %407, %385 : vector<1x16xf32>
    %cst_194 = arith.constant 0.000000e+00 : f32
    %409 = vector.broadcast %cst_194 : f32 to vector<1x16xf32>
    %410 = arith.maximumf %408, %409 : vector<1x16xf32>
    %411 = math.absf %408 : vector<1x16xf32>
    %cst_195 = arith.constant 0.000000e+00 : f32
    %412 = vector.broadcast %cst_195 : f32 to vector<1x16xf32>
    %413 = arith.subf %412, %411 : vector<1x16xf32>
    %414 = math.exp %413 : vector<1x16xf32>
    %415 = math.log1p %414 : vector<1x16xf32>
    %416 = arith.addf %410, %415 : vector<1x16xf32>
    %417 = arith.addf %416, %385 : vector<1x16xf32>
    %cst_196 = arith.constant 0.000000e+00 : f32
    %418 = vector.broadcast %cst_196 : f32 to vector<1x16xf32>
    %419 = arith.select %390, %417, %418 : vector<1x16xi1>, vector<1x16xf32>
    %420 = arith.addf %406, %419 : vector<1x16xf32>
    %c0_197 = arith.constant 0 : index
    %c0_198 = arith.constant 0 : index
    %421 = vector.load %arg7[%c0_197, %c0_198] : memref<1x16xf32, #tpu.memory_space<vmem>>, vector<1x16xf32>
    tpu.vector_store %arg7[%c0_197, %c0_198], %420 {strides = array<i32>} : memref<1x16xf32, #tpu.memory_space<vmem>>, vector<1x16xf32>,
    %c9_i32 = arith.constant 9 : i32
    %c16_i32_199 = arith.constant 16 : i32
    %422 = arith.muli %c9_i32, %c16_i32_199 : i32
    %423 = tpu.assume_multiple %422, 16 : i32
    %424 = arith.index_cast %423 : i32 to index
    %c0_200 = arith.constant 0 : index
    %425 = vector.load %arg3[%424, %c0_200] : memref<208x128xbf16, #tpu.memory_space<vmem>>, vector<16x128xbf16>
    %426 = arith.extf %425 : vector<16x128xbf16> to vector<16x128xf32>
    %427 = arith.index_cast %423 : i32 to index
    %c0_201 = arith.constant 0 : index
    %428 = vector.load %arg4[%427, %c0_201] : memref<208x128xbf16, #tpu.memory_space<vmem>>, vector<16x128xbf16>
    %429 = arith.extf %428 : vector<16x128xbf16> to vector<16x128xf32>
    %cst_202 = arith.constant dense<0.000000e+00> : vector<1x16xf32>
    %430 = tpu.matmul %3, %426, %cst_202 {dimension_numbers = #tpu.dot_dimension_numbers<[1], [1], [0], [0], [0, 0, 1, 0], [], []>} : vector<1x128xf32>, vector<16x128xf32>, vector<1x16xf32> -> vector<1x16xf32>
    %cst_203 = arith.constant dense<0.000000e+00> : vector<1x16xf32>
    %431 = tpu.matmul %3, %429, %cst_203 {dimension_numbers = #tpu.dot_dimension_numbers<[1], [1], [0], [0], [0, 0, 1, 0], [], []>} : vector<1x128xf32>, vector<16x128xf32>, vector<1x16xf32> -> vector<1x16xf32>
    %432 = arith.addi %6, %423 : i32
    %433 = vector.broadcast %432 : i32 to vector<1x16xi32>
    %434 = arith.addi %433, %7 : vector<1x16xi32>
    %c200_i32_204 = arith.constant 200 : i32
    %435 = vector.broadcast %c200_i32_204 : i32 to vector<1x16xi32>
    %436 = arith.cmpi slt, %434, %435 : vector<1x16xi32>
    %c0_205 = arith.constant 0 : index
    %c0_206 = arith.constant 0 : index
    %437 = vector.load %arg6[%c0_205, %c0_206] : memref<1x16xf32, #tpu.memory_space<vmem>>, vector<1x16xf32>
    %cst_207 = arith.constant 0.000000e+00 : f32
    %438 = vector.broadcast %cst_207 : f32 to vector<1x16xf32>
    %439 = arith.subf %438, %430 : vector<1x16xf32>
    %cst_208 = arith.constant 0.000000e+00 : f32
    %440 = vector.broadcast %cst_208 : f32 to vector<1x16xf32>
    %441 = arith.maximumf %439, %440 : vector<1x16xf32>
    %442 = math.absf %439 : vector<1x16xf32>
    %cst_209 = arith.constant 0.000000e+00 : f32
    %443 = vector.broadcast %cst_209 : f32 to vector<1x16xf32>
    %444 = arith.subf %443, %442 : vector<1x16xf32>
    %445 = math.exp %444 : vector<1x16xf32>
    %446 = math.log1p %445 : vector<1x16xf32>
    %447 = arith.addf %441, %446 : vector<1x16xf32>
    %cst_210 = arith.constant 0.000000e+00 : f32
    %448 = vector.broadcast %cst_210 : f32 to vector<1x16xf32>
    %449 = arith.select %436, %447, %448 : vector<1x16xi1>, vector<1x16xf32>
    %450 = arith.addf %437, %449 : vector<1x16xf32>
    %c0_211 = arith.constant 0 : index
    %c0_212 = arith.constant 0 : index
    %451 = vector.load %arg6[%c0_211, %c0_212] : memref<1x16xf32, #tpu.memory_space<vmem>>, vector<1x16xf32>
    tpu.vector_store %arg6[%c0_211, %c0_212], %450 {strides = array<i32>} : memref<1x16xf32, #tpu.memory_space<vmem>>, vector<1x16xf32>,
    %c0_213 = arith.constant 0 : index
    %c0_214 = arith.constant 0 : index
    %452 = vector.load %arg7[%c0_213, %c0_214] : memref<1x16xf32, #tpu.memory_space<vmem>>, vector<1x16xf32>
    %cst_215 = arith.constant 0.000000e+00 : f32
    %453 = vector.broadcast %cst_215 : f32 to vector<1x16xf32>
    %454 = arith.subf %453, %431 : vector<1x16xf32>
    %cst_216 = arith.constant 0.000000e+00 : f32
    %455 = vector.broadcast %cst_216 : f32 to vector<1x16xf32>
    %456 = arith.maximumf %454, %455 : vector<1x16xf32>
    %457 = math.absf %454 : vector<1x16xf32>
    %cst_217 = arith.constant 0.000000e+00 : f32
    %458 = vector.broadcast %cst_217 : f32 to vector<1x16xf32>
    %459 = arith.subf %458, %457 : vector<1x16xf32>
    %460 = math.exp %459 : vector<1x16xf32>
    %461 = math.log1p %460 : vector<1x16xf32>
    %462 = arith.addf %456, %461 : vector<1x16xf32>
    %463 = arith.addf %462, %431 : vector<1x16xf32>
    %cst_218 = arith.constant 0.000000e+00 : f32
    %464 = vector.broadcast %cst_218 : f32 to vector<1x16xf32>
    %465 = arith.select %436, %463, %464 : vector<1x16xi1>, vector<1x16xf32>
    %466 = arith.addf %452, %465 : vector<1x16xf32>
    %c0_219 = arith.constant 0 : index
    %c0_220 = arith.constant 0 : index
    %467 = vector.load %arg7[%c0_219, %c0_220] : memref<1x16xf32, #tpu.memory_space<vmem>>, vector<1x16xf32>
    tpu.vector_store %arg7[%c0_219, %c0_220], %466 {strides = array<i32>} : memref<1x16xf32, #tpu.memory_space<vmem>>, vector<1x16xf32>,
    %c10_i32 = arith.constant 10 : i32
    %c16_i32_221 = arith.constant 16 : i32
    %468 = arith.muli %c10_i32, %c16_i32_221 : i32
    %469 = tpu.assume_multiple %468, 16 : i32
    %470 = arith.index_cast %469 : i32 to index
    %c0_222 = arith.constant 0 : index
    %471 = vector.load %arg3[%470, %c0_222] : memref<208x128xbf16, #tpu.memory_space<vmem>>, vector<16x128xbf16>
    %472 = arith.extf %471 : vector<16x128xbf16> to vector<16x128xf32>
    %473 = arith.index_cast %469 : i32 to index
    %c0_223 = arith.constant 0 : index
    %474 = vector.load %arg4[%473, %c0_223] : memref<208x128xbf16, #tpu.memory_space<vmem>>, vector<16x128xbf16>
    %475 = arith.extf %474 : vector<16x128xbf16> to vector<16x128xf32>
    %cst_224 = arith.constant dense<0.000000e+00> : vector<1x16xf32>
    %476 = tpu.matmul %3, %472, %cst_224 {dimension_numbers = #tpu.dot_dimension_numbers<[1], [1], [0], [0], [0, 0, 1, 0], [], []>} : vector<1x128xf32>, vector<16x128xf32>, vector<1x16xf32> -> vector<1x16xf32>
    %cst_225 = arith.constant dense<0.000000e+00> : vector<1x16xf32>
    %477 = tpu.matmul %3, %475, %cst_225 {dimension_numbers = #tpu.dot_dimension_numbers<[1], [1], [0], [0], [0, 0, 1, 0], [], []>} : vector<1x128xf32>, vector<16x128xf32>, vector<1x16xf32> -> vector<1x16xf32>
    %478 = arith.addi %6, %469 : i32
    %479 = vector.broadcast %478 : i32 to vector<1x16xi32>
    %480 = arith.addi %479, %7 : vector<1x16xi32>
    %c200_i32_226 = arith.constant 200 : i32
    %481 = vector.broadcast %c200_i32_226 : i32 to vector<1x16xi32>
    %482 = arith.cmpi slt, %480, %481 : vector<1x16xi32>
    %c0_227 = arith.constant 0 : index
    %c0_228 = arith.constant 0 : index
    %483 = vector.load %arg6[%c0_227, %c0_228] : memref<1x16xf32, #tpu.memory_space<vmem>>, vector<1x16xf32>
    %cst_229 = arith.constant 0.000000e+00 : f32
    %484 = vector.broadcast %cst_229 : f32 to vector<1x16xf32>
    %485 = arith.subf %484, %476 : vector<1x16xf32>
    %cst_230 = arith.constant 0.000000e+00 : f32
    %486 = vector.broadcast %cst_230 : f32 to vector<1x16xf32>
    %487 = arith.maximumf %485, %486 : vector<1x16xf32>
    %488 = math.absf %485 : vector<1x16xf32>
    %cst_231 = arith.constant 0.000000e+00 : f32
    %489 = vector.broadcast %cst_231 : f32 to vector<1x16xf32>
    %490 = arith.subf %489, %488 : vector<1x16xf32>
    %491 = math.exp %490 : vector<1x16xf32>
    %492 = math.log1p %491 : vector<1x16xf32>
    %493 = arith.addf %487, %492 : vector<1x16xf32>
    %cst_232 = arith.constant 0.000000e+00 : f32
    %494 = vector.broadcast %cst_232 : f32 to vector<1x16xf32>
    %495 = arith.select %482, %493, %494 : vector<1x16xi1>, vector<1x16xf32>
    %496 = arith.addf %483, %495 : vector<1x16xf32>
    %c0_233 = arith.constant 0 : index
    %c0_234 = arith.constant 0 : index
    %497 = vector.load %arg6[%c0_233, %c0_234] : memref<1x16xf32, #tpu.memory_space<vmem>>, vector<1x16xf32>
    tpu.vector_store %arg6[%c0_233, %c0_234], %496 {strides = array<i32>} : memref<1x16xf32, #tpu.memory_space<vmem>>, vector<1x16xf32>,
    %c0_235 = arith.constant 0 : index
    %c0_236 = arith.constant 0 : index
    %498 = vector.load %arg7[%c0_235, %c0_236] : memref<1x16xf32, #tpu.memory_space<vmem>>, vector<1x16xf32>
    %cst_237 = arith.constant 0.000000e+00 : f32
    %499 = vector.broadcast %cst_237 : f32 to vector<1x16xf32>
    %500 = arith.subf %499, %477 : vector<1x16xf32>
    %cst_238 = arith.constant 0.000000e+00 : f32
    %501 = vector.broadcast %cst_238 : f32 to vector<1x16xf32>
    %502 = arith.maximumf %500, %501 : vector<1x16xf32>
    %503 = math.absf %500 : vector<1x16xf32>
    %cst_239 = arith.constant 0.000000e+00 : f32
    %504 = vector.broadcast %cst_239 : f32 to vector<1x16xf32>
    %505 = arith.subf %504, %503 : vector<1x16xf32>
    %506 = math.exp %505 : vector<1x16xf32>
    %507 = math.log1p %506 : vector<1x16xf32>
    %508 = arith.addf %502, %507 : vector<1x16xf32>
    %509 = arith.addf %508, %477 : vector<1x16xf32>
    %cst_240 = arith.constant 0.000000e+00 : f32
    %510 = vector.broadcast %cst_240 : f32 to vector<1x16xf32>
    %511 = arith.select %482, %509, %510 : vector<1x16xi1>, vector<1x16xf32>
    %512 = arith.addf %498, %511 : vector<1x16xf32>
    %c0_241 = arith.constant 0 : index
    %c0_242 = arith.constant 0 : index
    %513 = vector.load %arg7[%c0_241, %c0_242] : memref<1x16xf32, #tpu.memory_space<vmem>>, vector<1x16xf32>
    tpu.vector_store %arg7[%c0_241, %c0_242], %512 {strides = array<i32>} : memref<1x16xf32, #tpu.memory_space<vmem>>, vector<1x16xf32>,
    %c11_i32 = arith.constant 11 : i32
    %c16_i32_243 = arith.constant 16 : i32
    %514 = arith.muli %c11_i32, %c16_i32_243 : i32
    %515 = tpu.assume_multiple %514, 16 : i32
    %516 = arith.index_cast %515 : i32 to index
    %c0_244 = arith.constant 0 : index
    %517 = vector.load %arg3[%516, %c0_244] : memref<208x128xbf16, #tpu.memory_space<vmem>>, vector<16x128xbf16>
    %518 = arith.extf %517 : vector<16x128xbf16> to vector<16x128xf32>
    %519 = arith.index_cast %515 : i32 to index
    %c0_245 = arith.constant 0 : index
    %520 = vector.load %arg4[%519, %c0_245] : memref<208x128xbf16, #tpu.memory_space<vmem>>, vector<16x128xbf16>
    %521 = arith.extf %520 : vector<16x128xbf16> to vector<16x128xf32>
    %cst_246 = arith.constant dense<0.000000e+00> : vector<1x16xf32>
    %522 = tpu.matmul %3, %518, %cst_246 {dimension_numbers = #tpu.dot_dimension_numbers<[1], [1], [0], [0], [0, 0, 1, 0], [], []>} : vector<1x128xf32>, vector<16x128xf32>, vector<1x16xf32> -> vector<1x16xf32>
    %cst_247 = arith.constant dense<0.000000e+00> : vector<1x16xf32>
    %523 = tpu.matmul %3, %521, %cst_247 {dimension_numbers = #tpu.dot_dimension_numbers<[1], [1], [0], [0], [0, 0, 1, 0], [], []>} : vector<1x128xf32>, vector<16x128xf32>, vector<1x16xf32> -> vector<1x16xf32>
    %524 = arith.addi %6, %515 : i32
    %525 = vector.broadcast %524 : i32 to vector<1x16xi32>
    %526 = arith.addi %525, %7 : vector<1x16xi32>
    %c200_i32_248 = arith.constant 200 : i32
    %527 = vector.broadcast %c200_i32_248 : i32 to vector<1x16xi32>
    %528 = arith.cmpi slt, %526, %527 : vector<1x16xi32>
    %c0_249 = arith.constant 0 : index
    %c0_250 = arith.constant 0 : index
    %529 = vector.load %arg6[%c0_249, %c0_250] : memref<1x16xf32, #tpu.memory_space<vmem>>, vector<1x16xf32>
    %cst_251 = arith.constant 0.000000e+00 : f32
    %530 = vector.broadcast %cst_251 : f32 to vector<1x16xf32>
    %531 = arith.subf %530, %522 : vector<1x16xf32>
    %cst_252 = arith.constant 0.000000e+00 : f32
    %532 = vector.broadcast %cst_252 : f32 to vector<1x16xf32>
    %533 = arith.maximumf %531, %532 : vector<1x16xf32>
    %534 = math.absf %531 : vector<1x16xf32>
    %cst_253 = arith.constant 0.000000e+00 : f32
    %535 = vector.broadcast %cst_253 : f32 to vector<1x16xf32>
    %536 = arith.subf %535, %534 : vector<1x16xf32>
    %537 = math.exp %536 : vector<1x16xf32>
    %538 = math.log1p %537 : vector<1x16xf32>
    %539 = arith.addf %533, %538 : vector<1x16xf32>
    %cst_254 = arith.constant 0.000000e+00 : f32
    %540 = vector.broadcast %cst_254 : f32 to vector<1x16xf32>
    %541 = arith.select %528, %539, %540 : vector<1x16xi1>, vector<1x16xf32>
    %542 = arith.addf %529, %541 : vector<1x16xf32>
    %c0_255 = arith.constant 0 : index
    %c0_256 = arith.constant 0 : index
    %543 = vector.load %arg6[%c0_255, %c0_256] : memref<1x16xf32, #tpu.memory_space<vmem>>, vector<1x16xf32>
    tpu.vector_store %arg6[%c0_255, %c0_256], %542 {strides = array<i32>} : memref<1x16xf32, #tpu.memory_space<vmem>>, vector<1x16xf32>,
    %c0_257 = arith.constant 0 : index
    %c0_258 = arith.constant 0 : index
    %544 = vector.load %arg7[%c0_257, %c0_258] : memref<1x16xf32, #tpu.memory_space<vmem>>, vector<1x16xf32>
    %cst_259 = arith.constant 0.000000e+00 : f32
    %545 = vector.broadcast %cst_259 : f32 to vector<1x16xf32>
    %546 = arith.subf %545, %523 : vector<1x16xf32>
    %cst_260 = arith.constant 0.000000e+00 : f32
    %547 = vector.broadcast %cst_260 : f32 to vector<1x16xf32>
    %548 = arith.maximumf %546, %547 : vector<1x16xf32>
    %549 = math.absf %546 : vector<1x16xf32>
    %cst_261 = arith.constant 0.000000e+00 : f32
    %550 = vector.broadcast %cst_261 : f32 to vector<1x16xf32>
    %551 = arith.subf %550, %549 : vector<1x16xf32>
    %552 = math.exp %551 : vector<1x16xf32>
    %553 = math.log1p %552 : vector<1x16xf32>
    %554 = arith.addf %548, %553 : vector<1x16xf32>
    %555 = arith.addf %554, %523 : vector<1x16xf32>
    %cst_262 = arith.constant 0.000000e+00 : f32
    %556 = vector.broadcast %cst_262 : f32 to vector<1x16xf32>
    %557 = arith.select %528, %555, %556 : vector<1x16xi1>, vector<1x16xf32>
    %558 = arith.addf %544, %557 : vector<1x16xf32>
    %c0_263 = arith.constant 0 : index
    %c0_264 = arith.constant 0 : index
    %559 = vector.load %arg7[%c0_263, %c0_264] : memref<1x16xf32, #tpu.memory_space<vmem>>, vector<1x16xf32>
    tpu.vector_store %arg7[%c0_263, %c0_264], %558 {strides = array<i32>} : memref<1x16xf32, #tpu.memory_space<vmem>>, vector<1x16xf32>,
    %c12_i32 = arith.constant 12 : i32
    %c16_i32_265 = arith.constant 16 : i32
    %560 = arith.muli %c12_i32, %c16_i32_265 : i32
    %561 = tpu.assume_multiple %560, 16 : i32
    %562 = arith.index_cast %561 : i32 to index
    %c0_266 = arith.constant 0 : index
    %563 = vector.load %arg3[%562, %c0_266] : memref<208x128xbf16, #tpu.memory_space<vmem>>, vector<16x128xbf16>
    %564 = arith.extf %563 : vector<16x128xbf16> to vector<16x128xf32>
    %565 = arith.index_cast %561 : i32 to index
    %c0_267 = arith.constant 0 : index
    %566 = vector.load %arg4[%565, %c0_267] : memref<208x128xbf16, #tpu.memory_space<vmem>>, vector<16x128xbf16>
    %567 = arith.extf %566 : vector<16x128xbf16> to vector<16x128xf32>
    %cst_268 = arith.constant dense<0.000000e+00> : vector<1x16xf32>
    %568 = tpu.matmul %3, %564, %cst_268 {dimension_numbers = #tpu.dot_dimension_numbers<[1], [1], [0], [0], [0, 0, 1, 0], [], []>} : vector<1x128xf32>, vector<16x128xf32>, vector<1x16xf32> -> vector<1x16xf32>
    %cst_269 = arith.constant dense<0.000000e+00> : vector<1x16xf32>
    %569 = tpu.matmul %3, %567, %cst_269 {dimension_numbers = #tpu.dot_dimension_numbers<[1], [1], [0], [0], [0, 0, 1, 0], [], []>} : vector<1x128xf32>, vector<16x128xf32>, vector<1x16xf32> -> vector<1x16xf32>
    %570 = arith.addi %6, %561 : i32
    %571 = vector.broadcast %570 : i32 to vector<1x16xi32>
    %572 = arith.addi %571, %7 : vector<1x16xi32>
    %c200_i32_270 = arith.constant 200 : i32
    %573 = vector.broadcast %c200_i32_270 : i32 to vector<1x16xi32>
    %574 = arith.cmpi slt, %572, %573 : vector<1x16xi32>
    %c0_271 = arith.constant 0 : index
    %c0_272 = arith.constant 0 : index
    %575 = vector.load %arg6[%c0_271, %c0_272] : memref<1x16xf32, #tpu.memory_space<vmem>>, vector<1x16xf32>
    %cst_273 = arith.constant 0.000000e+00 : f32
    %576 = vector.broadcast %cst_273 : f32 to vector<1x16xf32>
    %577 = arith.subf %576, %568 : vector<1x16xf32>
    %cst_274 = arith.constant 0.000000e+00 : f32
    %578 = vector.broadcast %cst_274 : f32 to vector<1x16xf32>
    %579 = arith.maximumf %577, %578 : vector<1x16xf32>
    %580 = math.absf %577 : vector<1x16xf32>
    %cst_275 = arith.constant 0.000000e+00 : f32
    %581 = vector.broadcast %cst_275 : f32 to vector<1x16xf32>
    %582 = arith.subf %581, %580 : vector<1x16xf32>
    %583 = math.exp %582 : vector<1x16xf32>
    %584 = math.log1p %583 : vector<1x16xf32>
    %585 = arith.addf %579, %584 : vector<1x16xf32>
    %cst_276 = arith.constant 0.000000e+00 : f32
    %586 = vector.broadcast %cst_276 : f32 to vector<1x16xf32>
    %587 = arith.select %574, %585, %586 : vector<1x16xi1>, vector<1x16xf32>
    %588 = arith.addf %575, %587 : vector<1x16xf32>
    %c0_277 = arith.constant 0 : index
    %c0_278 = arith.constant 0 : index
    %589 = vector.load %arg6[%c0_277, %c0_278] : memref<1x16xf32, #tpu.memory_space<vmem>>, vector<1x16xf32>
    tpu.vector_store %arg6[%c0_277, %c0_278], %588 {strides = array<i32>} : memref<1x16xf32, #tpu.memory_space<vmem>>, vector<1x16xf32>,
    %c0_279 = arith.constant 0 : index
    %c0_280 = arith.constant 0 : index
    %590 = vector.load %arg7[%c0_279, %c0_280] : memref<1x16xf32, #tpu.memory_space<vmem>>, vector<1x16xf32>
    %cst_281 = arith.constant 0.000000e+00 : f32
    %591 = vector.broadcast %cst_281 : f32 to vector<1x16xf32>
    %592 = arith.subf %591, %569 : vector<1x16xf32>
    %cst_282 = arith.constant 0.000000e+00 : f32
    %593 = vector.broadcast %cst_282 : f32 to vector<1x16xf32>
    %594 = arith.maximumf %592, %593 : vector<1x16xf32>
    %595 = math.absf %592 : vector<1x16xf32>
    %cst_283 = arith.constant 0.000000e+00 : f32
    %596 = vector.broadcast %cst_283 : f32 to vector<1x16xf32>
    %597 = arith.subf %596, %595 : vector<1x16xf32>
    %598 = math.exp %597 : vector<1x16xf32>
    %599 = math.log1p %598 : vector<1x16xf32>
    %600 = arith.addf %594, %599 : vector<1x16xf32>
    %601 = arith.addf %600, %569 : vector<1x16xf32>
    %cst_284 = arith.constant 0.000000e+00 : f32
    %602 = vector.broadcast %cst_284 : f32 to vector<1x16xf32>
    %603 = arith.select %574, %601, %602 : vector<1x16xi1>, vector<1x16xf32>
    %604 = arith.addf %590, %603 : vector<1x16xf32>
    %c0_285 = arith.constant 0 : index
    %c0_286 = arith.constant 0 : index
    %605 = vector.load %arg7[%c0_285, %c0_286] : memref<1x16xf32, #tpu.memory_space<vmem>>, vector<1x16xf32>
    tpu.vector_store %arg7[%c0_285, %c0_286], %604 {strides = array<i32>} : memref<1x16xf32, #tpu.memory_space<vmem>>, vector<1x16xf32>,
    %c13_i32 = arith.constant 13 : i32
    %c0_i32_287 = arith.constant 0 : i32
    %606 = arith.cmpi eq, %arg1, %c0_i32_287 : i32
    %607 = arith.extui %606 : i1 to i32
    %c0_i32_288 = arith.constant 0 : i32
    %608 = arith.cmpi ne, %607, %c0_i32_288 : i32
    scf.if %608 {
      %c0_289 = arith.constant 0 : index
      %c0_290 = arith.constant 0 : index
      %609 = vector.load %arg6[%c0_289, %c0_290] : memref<1x16xf32, #tpu.memory_space<vmem>>, vector<1x16xf32>
      %610 = vector.shape_cast %609 : vector<1x16xf32> to vector<1x1x16xf32>
      %cst_291 = arith.constant dense<0.000000e+00> : vector<1xf32>
      %611 = vector.multi_reduction <add>, %610, %cst_291 [1, 2] : vector<1x1x16xf32> to vector<1xf32>
      %612 = vector.shape_cast %611 : vector<1xf32> to vector<1x1x1xf32>
      %613 = vector.extract %612[0, 0, 0] : f32 from vector<1x1x1xf32>
      %c0_292 = arith.constant 0 : index
      %c0_293 = arith.constant 0 : index
      %614 = memref.load %arg5[%c0_292, %c0_293] : memref<1x2xf32, #tpu.memory_space<smem>>
      memref.store %613, %arg5[%c0_292, %c0_293] : memref<1x2xf32, #tpu.memory_space<smem>>
      %c0_294 = arith.constant 0 : index
      %c0_295 = arith.constant 0 : index
      %615 = vector.load %arg7[%c0_294, %c0_295] : memref<1x16xf32, #tpu.memory_space<vmem>>, vector<1x16xf32>
      %616 = vector.shape_cast %615 : vector<1x16xf32> to vector<1x1x16xf32>
      %cst_296 = arith.constant dense<0.000000e+00> : vector<1xf32>
      %617 = vector.multi_reduction <add>, %616, %cst_296 [1, 2] : vector<1x1x16xf32> to vector<1xf32>
      %618 = vector.shape_cast %617 : vector<1xf32> to vector<1x1x1xf32>
      %619 = vector.extract %618[0, 0, 0] : f32 from vector<1x1x1xf32>
      %c0_297 = arith.constant 0 : index
      %c1 = arith.constant 1 : index
      %620 = memref.load %arg5[%c0_297, %c1] : memref<1x2xf32, #tpu.memory_space<smem>>
      memref.store %619, %arg5[%c0_297, %c1] : memref<1x2xf32, #tpu.memory_space<smem>>
    } else {
    }
    return
  }
  func.func @transform_0(%arg0: i32, %arg1: i32) -> (i32, i32) {
    %c0_i32 = arith.constant 0 : i32
    %c0_i32_0 = arith.constant 0 : i32
    %c0_i32_1 = arith.constant 0 : i32
    return %c0_i32, %c0_i32_0 : i32, i32
  }
  func.func @transform_1(%arg0: i32, %arg1: i32) -> (i32, i32) {
    %c1_i32 = arith.constant 1 : i32
    %0 = arith.muli %arg0, %c1_i32 : i32
    %1 = arith.addi %0, %arg1 : i32
    %c0_i32 = arith.constant 0 : i32
    %2 = arith.minsi %1, %c0_i32 : i32
    %c0_i32_0 = arith.constant 0 : i32
    %c0_i32_1 = arith.constant 0 : i32
    return %2, %c0_i32_0 : i32, i32
  }
  func.func @transform_2(%arg0: i32, %arg1: i32) -> (i32, i32) {
    %c1_i32 = arith.constant 1 : i32
    %0 = arith.muli %arg0, %c1_i32 : i32
    %1 = arith.addi %0, %arg1 : i32
    %c0_i32 = arith.constant 0 : i32
    %2 = arith.minsi %1, %c0_i32 : i32
    %c0_i32_0 = arith.constant 0 : i32
    %c0_i32_1 = arith.constant 0 : i32
    return %2, %c0_i32_0 : i32, i32
  }
  func.func @transform_3(%arg0: i32, %arg1: i32) -> (i32, i32) {
    %c0_i32 = arith.constant 0 : i32
    %c0_i32_0 = arith.constant 0 : i32
    return %arg0, %c0_i32 : i32, i32
  }
}

</mosaic_0001>

<llo_original>
// kernel: tpu_custom_call.1
$region0: #{tpu_custom_call.1}
  #allocation0 [shape = 'u32[]', space=smem, size = 0x4, offset = 0x4, fixed_abs, tag = 'smem constant byte address 0x4 - core index']
  #allocation1 [shape = 'u32[144,128]{1,0:T(1,128)}', space=vmem, size = 0x12000, scoped, tag = 'internal scratch']
  #allocation2 [shape = 'f32[1,16]{1,0:T(1,128)}', space=vmem, size = 0x200, scoped, tag = 'scratch operand']
  #allocation3 [shape = 'f32[1,16]{1,0:T(1,128)}', space=vmem, size = 0x200, scoped, tag = 'scratch operand']
  %s0 = inlined_call_operand.hbm [shape: f32[1,128], index: 0, kind: input, shape index: {}]
  %s1 = inlined_call_operand.hbm [shape: bf16[200,128], index: 1, kind: input, shape index: {}]
  %s2 = inlined_call_operand.hbm [shape: bf16[200,128], index: 2, kind: input, shape index: {}]
  %s3 = inlined_call_operand.hbm [shape: f32[1,2], index: 3, kind: output, shape index: {}]
  %s4 = sld [smem:[#allocation0]]
  $region42: #{tpu_custom_call.1} parent=0
    _
  %s6 = ssub.s32 1, %s4
  %s7 = scalar_select 0, %s6, %s4
  $region1: #{tpu_custom_call.1} parent=0
    #allocation4 [shape = 'u8[512]{0}', space=vmem, size = 0x400, scoped, tag = 'input window, operand 0, single buffered']
    #allocation5 [shape = 's32[1]{0}', space=sflag, size = 0x4, scoped, tag = 'scoped memory for tpu_custom_call.1']
    #allocation6 [shape = 's32[1]{0}', space=sflag, size = 0x4, scoped, tag = 'scoped memory for tpu_custom_call.1']
    #allocation7 [shape = 'u8[53248]{0}', space=vmem, size = 0xd000, scoped, tag = 'input window, operand 1, single buffered']
    #allocation8 [shape = 's32[1]{0}', space=sflag, size = 0x4, scoped, tag = 'scoped memory for tpu_custom_call.1']
    #allocation9 [shape = 'u8[53248]{0}', space=vmem, size = 0xd000, scoped, tag = 'input window, operand 2, single buffered']
    #allocation10 [shape = 'u8[512]{0}', space=smem, size = 0x200, scoped, tag = 'output window, operand 0, single buffered']
    %8 = vsyncpa [#allocation5], 0
    %9 = vsyncpa [#allocation8], 0
    %10 = vsyncpa [#allocation6], 0
    // Predicated region
    $region2: #{tpu_custom_call.1} parent=1 // pred_check
      _
    $region3: #{tpu_custom_call.1} parent=1 // pred_check_branch
      %12 = sbr.rel (0) target = $region5
    $region4: #{tpu_custom_call.1} parent=1 // pred_region
      %s14 = ssub.s32 16, 16
      %15 = vsyncadd [#allocation5], %s14
      %s17 = sshll.u32 [#allocation4], 4
      %s18 = int_to_ptr.vmem [resolvable:$true] %s17
      %20 = dma.hbm_to_vmem [thread:$0]  %s0, 16, %s18, [#allocation5]
    $region5: #{tpu_custom_call.1} parent=1 // pred_fallthru
      _
    // Predicated region
    $region6: #{tpu_custom_call.1} parent=1 // pred_check
      _
    $region7: #{tpu_custom_call.1} parent=1 // pred_check_branch
      %22 = sbr.rel (0) target = $region9
    $region8: #{tpu_custom_call.1} parent=1 // pred_region
      %s23 = sadd.s32 0, 0
      %p24 = scmp.lt.s32.totalorder %s23, 0
      %s25 = scalar_select %p24, %s23, 0
      %s26 = smul.u32 26, %s25
      %s27 = ssub.s32 25, %s26
      %s28 = smul.u32 64, %s27
      %s30 = ssub.s32 1664, %s28
      %31 = vsyncadd [#allocation8], %s30
      %p32 = scmp.ne.s32.totalorder 0, %s28
      %s33 = smul.addr %s26, 64
      %s34 = scalar_lea.hbm %s1, %s33
      %s35 = smul.u32 4, %s27
      %s36 = sshll.u32 [#allocation7], 4
      %s37 = int_to_ptr.vmem [resolvable:$true] %s36
      %s38 = sshll.u32 %s35, 4
      %42 = dma.hbm_to_vmem [thread:$0]  (%p32), %s34, %s38, %s37, [#allocation8], 64, 64, 4
    $region9: #{tpu_custom_call.1} parent=1 // pred_fallthru
      _
    // Predicated region
    $region10: #{tpu_custom_call.1} parent=1 // pred_check
      _
    $region11: #{tpu_custom_call.1} parent=1 // pred_check_branch
      %44 = sbr.rel (0) target = $region13
    $region12: #{tpu_custom_call.1} parent=1 // pred_region
      %s45 = sadd.s32 0, 0
      %p46 = scmp.lt.s32.totalorder %s45, 0
      %s47 = scalar_select %p46, %s45, 0
      %s48 = smul.u32 26, %s47
      %s49 = ssub.s32 25, %s48
      %s50 = smul.u32 64, %s49
      %s52 = ssub.s32 1664, %s50
      %53 = vsyncadd [#allocation8], %s52
      %p54 = scmp.ne.s32.totalorder 0, %s50
      %s55 = smul.addr %s48, 64
      %s56 = scalar_lea.hbm %s2, %s55
      %s57 = smul.u32 4, %s49
      %s58 = sshll.u32 [#allocation9], 4
      %s59 = int_to_ptr.vmem [resolvable:$true] %s58
      %s60 = sshll.u32 %s57, 4
      %64 = dma.hbm_to_vmem [thread:$0]  (%p54), %s56, %s60, %s59, [#allocation8], 64, 64, 4
    $region13: #{tpu_custom_call.1} parent=1 // pred_fallthru
      _
    // Predicated region
    $region14: #{tpu_custom_call.1} parent=1 // pred_check
      _
    $region15: #{tpu_custom_call.1} parent=1 // pred_check_branch
      %66 = sbr.rel (0) target = $region17
    $region16: #{tpu_custom_call.1} parent=1 // pred_region
      %67 = dma.done [#allocation5], 16
    $region17: #{tpu_custom_call.1} parent=1 // pred_fallthru
      _
    // Predicated region
    $region18: #{tpu_custom_call.1} parent=1 // pred_check
      _
    $region19: #{tpu_custom_call.1} parent=1 // pred_check_branch
      %69 = sbr.rel (0) target = $region21
    $region20: #{tpu_custom_call.1} parent=1 // pred_region
      %70 = dma.done [#allocation8], 1664
    $region21: #{tpu_custom_call.1} parent=1 // pred_fallthru
      _
    // Predicated region
    $region22: #{tpu_custom_call.1} parent=1 // pred_check
      _
    $region23: #{tpu_custom_call.1} parent=1 // pred_check_branch
      %72 = sbr.rel (0) target = $region25
    $region24: #{tpu_custom_call.1} parent=1 // pred_region
      %73 = dma.done [#allocation8], 1664
    $region25: #{tpu_custom_call.1} parent=1 // pred_fallthru
      _
    %s74 = sadd.s32 0, 0
    %p75 = scmp.lt.s32.totalorder %s74, 0
    %s76 = scalar_select %p75, %s74, 0
    %s77 = smul.u32 26, %s76
    %s78 = ssub.s32 25, %s77
    %s79 = smul.u32 64, %s78
    %s80 = sadd.s32 0, 0
    %p81 = scmp.lt.s32.totalorder %s80, 0
    %s82 = scalar_select %p81, %s80, 0
    %s83 = smul.u32 26, %s82
    %s84 = ssub.s32 25, %s83
    %s85 = smul.u32 64, %s84
    %p86 = scmp.eq.s32.totalorder 0, 0
    // Predicated region
    $region26: #{tpu_custom_call.1} parent=1 // pred_check
      %p87 = pneg %p86
    $region27: #{tpu_custom_call.1} parent=1 // pred_check_branch
      %89 = sbr.rel (%p87) target = $region29
    $region28: #{tpu_custom_call.1} parent=1 // pred_region
      %vm90 = vcmask 122880
      %91 = vst.msk [vmem:[#allocation2] sm:$0x1] %vm90, 0.0
      %92 = vst.msk [vmem:[#allocation3] sm:$0x1] %vm90, 0.0
    $region29: #{tpu_custom_call.1} parent=1 // pred_fallthru
      _
    %v93 = vld [vmem:[#allocation4] sm:$0x1]
    %s94 = sadd.s32 0, 0
    %s95 = smul.u32 %s94, 208
    %v96 = vlaneseq
    %v97 = vand.u32 %v96, 127
    %v98 = vld [vmem:[#allocation7] sm:$0xf]
    %v99 = vld [vmem:[#allocation7 + $0x4] sm:$0xf]
    %v100 = vunpack.c.l.bf16 %v98
    %v101 = vunpack.c.l.bf16 %v99
    %v102 = vld [vmem:[#allocation9] sm:$0xf]
    %v103 = vld [vmem:[#allocation9 + $0x4] sm:$0xf]
    %v104 = vunpack.c.l.bf16 %v102
    %v105 = vunpack.c.l.bf16 %v103
    %106 = vmatprep.subr.mxu0 0.0
    %107 = vmatpush1.xpose.msra.mxu0 %v100
    %108 = vmatprep.subr.mxu0 0.0
    %109 = vmatpush1.xpose.msra.mxu0 %v101
    %110 = vmatprep.subr.mxu0 0.0
    %111 = vmatpush1.xpose.msra.mxu0 0.0
    %112 = vmatprep.subr.mxu0 0.0
    %113 = vmatpush1.xpose.msra.mxu0 0.0
    %114 = vmatprep.subr.mxu0 0.0
    %115 = vmatpush1.xpose.msra.mxu0 0.0
    %116 = vmatprep.subr.mxu0 0.0
    %117 = vmatpush1.xpose.msra.mxu0 0.0
    %118 = vmatprep.subr.mxu0 0.0
    %119 = vmatpush1.xpose.msra.mxu0 0.0
    %120 = vmatprep.subr.mxu0 0.0
    %121 = vmatpush1.xpose.msra.mxu0 0.0
    %122 = vmatprep.subr.mxu0 0.0
    %123 = vmatpush1.xpose.msra.mxu0 0.0
    %124 = vmatprep.subr.mxu0 0.0
    %125 = vmatpush1.xpose.msra.mxu0 0.0
    %126 = vmatprep.subr.mxu0 0.0
    %127 = vmatpush1.xpose.msra.mxu0 0.0
    %128 = vmatprep.subr.mxu0 0.0
    %129 = vmatpush1.xpose.msra.mxu0 0.0
    %130 = vmatprep.subr.mxu0 0.0
    %131 = vmatpush1.xpose.msra.mxu0 0.0
    %132 = vmatprep.subr.mxu0 0.0
    %133 = vmatpush1.xpose.msra.mxu0 0.0
    %134 = vmatprep.subr.mxu0 0.0
    %135 = vmatpush1.xpose.msra.mxu0 0.0
    %136 = vmatprep.subr.mxu0 0.0
    %137 = vmatpush1.xpose.msra.mxu0 0.0
    %138 = vmatprep.subr.mxu0 0.0
    %139 = vmatpush1.xpose.msra.mxu0 0.0
    %140 = vmatprep.subr.mxu0 0.0
    %141 = vmatpush1.xpose.msra.mxu0 0.0
    %142 = vmatprep.subr.mxu0 0.0
    %143 = vmatpush1.xpose.msra.mxu0 0.0
    %144 = vmatprep.subr.mxu0 0.0
    %145 = vmatpush1.xpose.msra.mxu0 0.0
    %146 = vmatprep.subr.mxu0 0.0
    %147 = vmatpush1.xpose.msra.mxu0 0.0
    %148 = vmatprep.subr.mxu0 0.0
    %149 = vmatpush1.xpose.msra.mxu0 0.0
    %150 = vmatprep.subr.mxu0 0.0
    %151 = vmatpush1.xpose.msra.mxu0 0.0
    %152 = vmatprep.subr.mxu0 0.0
    %153 = vmatpush1.xpose.msra.mxu0 0.0
    %154 = vmatprep.subr.mxu0 0.0
    %155 = vmatpush1.xpose.msra.mxu0 0.0
    %156 = vmatprep.subr.mxu0 0.0
    %157 = vmatpush1.xpose.msra.mxu0 0.0
    %158 = vmatprep.subr.mxu0 0.0
    %159 = vmatpush1.xpose.msra.mxu0 0.0
    %160 = vmatprep.subr.mxu0 0.0
    %161 = vmatpush1.xpose.msra.mxu0 0.0
    %162 = vmatprep.subr.mxu0 0.0
    %163 = vmatpush1.xpose.msra.mxu0 0.0
    %164 = vmatprep.subr.mxu0 0.0
    %165 = vmatpush1.xpose.msra.mxu0 0.0
    %166 = vmatprep.subr.mxu0 0.0
    %167 = vmatpush1.xpose.msra.mxu0 0.0
    %168 = vmatprep.subr.mxu0 0.0
    %169 = vmatpush1.xpose.msra.mxu0 0.0
    %170 = vmatprep.mubr.f32.mxu0 0.0
    %171 = vmatmul.mubr.f32.gmra.mrb[0].mxu0 %v93
    %v172 = vpop.f32.mrb[0].mxu0
    %v173 = vadd.f32 0.0, %v172
    %v174 = vpop.f32.mrb[0].mxu0
    %175 = vdwg.mxu0
    %176 = vmatprep.subr.mxu0 0.0
    %177 = vmatpush1.xpose.msra.mxu0 %v104
    %178 = vmatprep.subr.mxu0 0.0
    %179 = vmatpush1.xpose.msra.mxu0 %v105
    %180 = vmatprep.subr.mxu0 0.0
    %181 = vmatpush1.xpose.msra.mxu0 0.0
    %182 = vmatprep.subr.mxu0 0.0
    %183 = vmatpush1.xpose.msra.mxu0 0.0
    %184 = vmatprep.subr.mxu0 0.0
    %185 = vmatpush1.xpose.msra.mxu0 0.0
    %186 = vmatprep.subr.mxu0 0.0
    %187 = vmatpush1.xpose.msra.mxu0 0.0
    %188 = vmatprep.subr.mxu0 0.0
    %189 = vmatpush1.xpose.msra.mxu0 0.0
    %190 = vmatprep.subr.mxu0 0.0
    %191 = vmatpush1.xpose.msra.mxu0 0.0
    %192 = vmatprep.subr.mxu0 0.0
    %193 = vmatpush1.xpose.msra.mxu0 0.0
    %194 = vmatprep.subr.mxu0 0.0
    %195 = vmatpush1.xpose.msra.mxu0 0.0
    %196 = vmatprep.subr.mxu0 0.0
    %197 = vmatpush1.xpose.msra.mxu0 0.0
    %198 = vmatprep.subr.mxu0 0.0
    %199 = vmatpush1.xpose.msra.mxu0 0.0
    %200 = vmatprep.subr.mxu0 0.0
    %201 = vmatpush1.xpose.msra.mxu0 0.0
    %202 = vmatprep.subr.mxu0 0.0
    %203 = vmatpush1.xpose.msra.mxu0 0.0
    %204 = vmatprep.subr.mxu0 0.0
    %205 = vmatpush1.xpose.msra.mxu0 0.0
    %206 = vmatprep.subr.mxu0 0.0
    %207 = vmatpush1.xpose.msra.mxu0 0.0
    %208 = vmatprep.subr.mxu0 0.0
    %209 = vmatpush1.xpose.msra.mxu0 0.0
    %210 = vmatprep.subr.mxu0 0.0
    %211 = vmatpush1.xpose.msra.mxu0 0.0
    %212 = vmatprep.subr.mxu0 0.0
    %213 = vmatpush1.xpose.msra.mxu0 0.0
    %214 = vmatprep.subr.mxu0 0.0
    %215 = vmatpush1.xpose.msra.mxu0 0.0
    %216 = vmatprep.subr.mxu0 0.0
    %217 = vmatpush1.xpose.msra.mxu0 0.0
    %218 = vmatprep.subr.mxu0 0.0
    %219 = vmatpush1.xpose.msra.mxu0 0.0
    %220 = vmatprep.subr.mxu0 0.0
    %221 = vmatpush1.xpose.msra.mxu0 0.0
    %222 = vmatprep.subr.mxu0 0.0
    %223 = vmatpush1.xpose.msra.mxu0 0.0
    %224 = vmatprep.subr.mxu0 0.0
    %225 = vmatpush1.xpose.msra.mxu0 0.0
    %226 = vmatprep.subr.mxu0 0.0
    %227 = vmatpush1.xpose.msra.mxu0 0.0
    %228 = vmatprep.subr.mxu0 0.0
    %229 = vmatpush1.xpose.msra.mxu0 0.0
    %230 = vmatprep.subr.mxu0 0.0
    %231 = vmatpush1.xpose.msra.mxu0 0.0
    %232 = vmatprep.subr.mxu0 0.0
    %233 = vmatpush1.xpose.msra.mxu0 0.0
    %234 = vmatprep.subr.mxu0 0.0
    %235 = vmatpush1.xpose.msra.mxu0 0.0
    %236 = vmatprep.subr.mxu0 0.0
    %237 = vmatpush1.xpose.msra.mxu0 0.0
    %238 = vmatprep.subr.mxu0 0.0
    %239 = vmatpush1.xpose.msra.mxu0 0.0
    %240 = vmatprep.mubr.f32.mxu0 0.0
    %241 = vmatmul.mubr.f32.gmra.mrb[0].mxu0 %v93
    %v242 = vpop.f32.mrb[0].mxu0
    %v243 = vadd.f32 0.0, %v242
    %v244 = vpop.f32.mrb[0].mxu0
    %245 = vdwg.mxu0
    %s246 = sadd.s32 %s95, 0
    %v247 = vstv %s246
    %v248 = vadd.s32 %v247, %v97
    %vm249 = vcmp.lt.s32.totalorder %v248, 200
    %v250 = vld [vmem:[#allocation2] sm:$0x1]
    %v251 = vsub.f32 0.0, %v173
    %v252 = vmax.f32 %v251, 0.0
    %v253 = vand.u32 2147483647, %v251
    %v254 = vsub.f32 0.0, %v253
    %v255 = vmul.f32 %v254, 1.442695
    %v256 = vpow.pop %v255
    %v257 = vadd.f32 %v256, 1.0
    %v258 = vlog2.pop %v257
    %v259 = vmul.f32 %v258, 0.6931472
    %v260 = vmul.f32 -0.5, %v256
    %v261 = vadd.f32 %v260, 1.0
    %v262 = vmul.f32 %v261, %v256
    %v263 = vand.u32 2147483647, %v256
    %vm264 = vcmp.lt.f32.partialorder %v263, 0.0004427343
    %v265 = vsel %vm264, %v262, %v259
    %v266 = vadd.f32 %v252, %v265
    %v267 = vsel %vm249, %v266, 0.0
    %v268 = vadd.f32 %v250, %v267
    %vm269 = vcmask 122880
    %270 = vst.msk [vmem:[#allocation2] sm:$0x1] %vm269, %v268
    %v271 = vld [vmem:[#allocation3] sm:$0x1]
    %v272 = vsub.f32 0.0, %v243
    %v273 = vmax.f32 %v272, 0.0
    %v274 = vand.u32 2147483647, %v272
    %v275 = vsub.f32 0.0, %v274
    %v276 = vmul.f32 %v275, 1.442695
    %v277 = vpow.pop %v276
    %v278 = vadd.f32 %v277, 1.0
    %v279 = vlog2.pop %v278
    %v280 = vmul.f32 %v279, 0.6931472
    %v281 = vmul.f32 -0.5, %v277
    %v282 = vadd.f32 %v281, 1.0
    %v283 = vmul.f32 %v282, %v277
    %v284 = vand.u32 2147483647, %v277
    %vm285 = vcmp.lt.f32.partialorder %v284, 0.0004427343
    %v286 = vsel %vm285, %v283, %v280
    %v287 = vadd.f32 %v273, %v286
    %v288 = vadd.f32 %v287, %v243
    %v289 = vsel %vm249, %v288, 0.0
    %v290 = vadd.f32 %v271, %v289
    %291 = vst.msk [vmem:[#allocation3] sm:$0x1] %vm269, %v290
    %s292 = scalar_lea.vmem [#allocation7], 8
    %v293 = vld [vmem:[%s292] sm:$0xf]
    %v294 = vld [vmem:[%s292 + $0x4] sm:$0xf]
    %v295 = vunpack.c.l.bf16 %v293
    %v296 = vunpack.c.l.bf16 %v294
    %s297 = scalar_lea.vmem [#allocation9], 8
    %v298 = vld [vmem:[%s297] sm:$0xf]
    %v299 = vld [vmem:[%s297 + $0x4] sm:$0xf]
    %v300 = vunpack.c.l.bf16 %v298
    %v301 = vunpack.c.l.bf16 %v299
    %302 = vmatprep.subr.mxu0 0.0
    %303 = vmatpush1.xpose.msra.mxu0 %v295
    %304 = vmatprep.subr.mxu0 0.0
    %305 = vmatpush1.xpose.msra.mxu0 %v296
    %306 = vmatprep.subr.mxu0 0.0
    %307 = vmatpush1.xpose.msra.mxu0 0.0
    %308 = vmatprep.subr.mxu0 0.0
    %309 = vmatpush1.xpose.msra.mxu0 0.0
    %310 = vmatprep.subr.mxu0 0.0
    %311 = vmatpush1.xpose.msra.mxu0 0.0
    %312 = vmatprep.subr.mxu0 0.0
    %313 = vmatpush1.xpose.msra.mxu0 0.0
    %314 = vmatprep.subr.mxu0 0.0
    %315 = vmatpush1.xpose.msra.mxu0 0.0
    %316 = vmatprep.subr.mxu0 0.0
    %317 = vmatpush1.xpose.msra.mxu0 0.0
    %318 = vmatprep.subr.mxu0 0.0
    %319 = vmatpush1.xpose.msra.mxu0 0.0
    %320 = vmatprep.subr.mxu0 0.0
    %321 = vmatpush1.xpose.msra.mxu0 0.0
    %322 = vmatprep.subr.mxu0 0.0
    %323 = vmatpush1.xpose.msra.mxu0 0.0
    %324 = vmatprep.subr.mxu0 0.0
    %325 = vmatpush1.xpose.msra.mxu0 0.0
    %326 = vmatprep.subr.mxu0 0.0
    %327 = vmatpush1.xpose.msra.mxu0 0.0
    %328 = vmatprep.subr.mxu0 0.0
    %329 = vmatpush1.xpose.msra.mxu0 0.0
    %330 = vmatprep.subr.mxu0 0.0
    %331 = vmatpush1.xpose.msra.mxu0 0.0
    %332 = vmatprep.subr.mxu0 0.0
    %333 = vmatpush1.xpose.msra.mxu0 0.0
    %334 = vmatprep.subr.mxu0 0.0
    %335 = vmatpush1.xpose.msra.mxu0 0.0
    %336 = vmatprep.subr.mxu0 0.0
    %337 = vmatpush1.xpose.msra.mxu0 0.0
    %338 = vmatprep.subr.mxu0 0.0
    %339 = vmatpush1.xpose.msra.mxu0 0.0
    %340 = vmatprep.subr.mxu0 0.0
    %341 = vmatpush1.xpose.msra.mxu0 0.0
    %342 = vmatprep.subr.mxu0 0.0
    %343 = vmatpush1.xpose.msra.mxu0 0.0
    %344 = vmatprep.subr.mxu0 0.0
    %345 = vmatpush1.xpose.msra.mxu0 0.0
    %346 = vmatprep.subr.mxu0 0.0
    %347 = vmatpush1.xpose.msra.mxu0 0.0
    %348 = vmatprep.subr.mxu0 0.0
    %349 = vmatpush1.xpose.msra.mxu0 0.0
    %350 = vmatprep.subr.mxu0 0.0
    %351 = vmatpush1.xpose.msra.mxu0 0.0
    %352 = vmatprep.subr.mxu0 0.0
    %353 = vmatpush1.xpose.msra.mxu0 0.0
    %354 = vmatprep.subr.mxu0 0.0
    %355 = vmatpush1.xpose.msra.mxu0 0.0
    %356 = vmatprep.subr.mxu0 0.0
    %357 = vmatpush1.xpose.msra.mxu0 0.0
    %358 = vmatprep.subr.mxu0 0.0
    %359 = vmatpush1.xpose.msra.mxu0 0.0
    %360 = vmatprep.subr.mxu0 0.0
    %361 = vmatpush1.xpose.msra.mxu0 0.0
    %362 = vmatprep.subr.mxu0 0.0
    %363 = vmatpush1.xpose.msra.mxu0 0.0
    %364 = vmatprep.subr.mxu0 0.0
    %365 = vmatpush1.xpose.msra.mxu0 0.0
    %366 = vmatprep.mubr.f32.mxu0 0.0
    %367 = vmatmul.mubr.f32.gmra.mrb[0].mxu0 %v93
    %v368 = vpop.f32.mrb[0].mxu0
    %v369 = vadd.f32 0.0, %v368
    %v370 = vpop.f32.mrb[0].mxu0
    %371 = vdwg.mxu0
    %372 = vmatprep.subr.mxu0 0.0
    %373 = vmatpush1.xpose.msra.mxu0 %v300
    %374 = vmatprep.subr.mxu0 0.0
    %375 = vmatpush1.xpose.msra.mxu0 %v301
    %376 = vmatprep.subr.mxu0 0.0
    %377 = vmatpush1.xpose.msra.mxu0 0.0
    %378 = vmatprep.subr.mxu0 0.0
    %379 = vmatpush1.xpose.msra.mxu0 0.0
    %380 = vmatprep.subr.mxu0 0.0
    %381 = vmatpush1.xpose.msra.mxu0 0.0
    %382 = vmatprep.subr.mxu0 0.0
    %383 = vmatpush1.xpose.msra.mxu0 0.0
    %384 = vmatprep.subr.mxu0 0.0
    %385 = vmatpush1.xpose.msra.mxu0 0.0
    %386 = vmatprep.subr.mxu0 0.0
    %387 = vmatpush1.xpose.msra.mxu0 0.0
    %388 = vmatprep.subr.mxu0 0.0
    %389 = vmatpush1.xpose.msra.mxu0 0.0
    %390 = vmatprep.subr.mxu0 0.0
    %391 = vmatpush1.xpose.msra.mxu0 0.0
    %392 = vmatprep.subr.mxu0 0.0
    %393 = vmatpush1.xpose.msra.mxu0 0.0
    %394 = vmatprep.subr.mxu0 0.0
    %395 = vmatpush1.xpose.msra.mxu0 0.0
    %396 = vmatprep.subr.mxu0 0.0
    %397 = vmatpush1.xpose.msra.mxu0 0.0
    %398 = vmatprep.subr.mxu0 0.0
    %399 = vmatpush1.xpose.msra.mxu0 0.0
    %400 = vmatprep.subr.mxu0 0.0
    %401 = vmatpush1.xpose.msra.mxu0 0.0
    %402 = vmatprep.subr.mxu0 0.0
    %403 = vmatpush1.xpose.msra.mxu0 0.0
    %404 = vmatprep.subr.mxu0 0.0
    %405 = vmatpush1.xpose.msra.mxu0 0.0
    %406 = vmatprep.subr.mxu0 0.0
    %407 = vmatpush1.xpose.msra.mxu0 0.0
    %408 = vmatprep.subr.mxu0 0.0
    %409 = vmatpush1.xpose.msra.mxu0 0.0
    %410 = vmatprep.subr.mxu0 0.0
    %411 = vmatpush1.xpose.msra.mxu0 0.0
    %412 = vmatprep.subr.mxu0 0.0
    %413 = vmatpush1.xpose.msra.mxu0 0.0
    %414 = vmatprep.subr.mxu0 0.0
    %415 = vmatpush1.xpose.msra.mxu0 0.0
    %416 = vmatprep.subr.mxu0 0.0
    %417 = vmatpush1.xpose.msra.mxu0 0.0
    %418 = vmatprep.subr.mxu0 0.0
    %419 = vmatpush1.xpose.msra.mxu0 0.0
    %420 = vmatprep.subr.mxu0 0.0
    %421 = vmatpush1.xpose.msra.mxu0 0.0
    %422 = vmatprep.subr.mxu0 0.0
    %423 = vmatpush1.xpose.msra.mxu0 0.0
    %424 = vmatprep.subr.mxu0 0.0
    %425 = vmatpush1.xpose.msra.mxu0 0.0
    %426 = vmatprep.subr.mxu0 0.0
    %427 = vmatpush1.xpose.msra.mxu0 0.0
    %428 = vmatprep.subr.mxu0 0.0
    %429 = vmatpush1.xpose.msra.mxu0 0.0
    %430 = vmatprep.subr.mxu0 0.0
    %431 = vmatpush1.xpose.msra.mxu0 0.0
    %432 = vmatprep.subr.mxu0 0.0
    %433 = vmatpush1.xpose.msra.mxu0 0.0
    %434 = vmatprep.subr.mxu0 0.0
    %435 = vmatpush1.xpose.msra.mxu0 0.0
    %436 = vmatprep.mubr.f32.mxu0 0.0
    %437 = vmatmul.mubr.f32.gmra.mrb[0].mxu0 %v93
    %v438 = vpop.f32.mrb[0].mxu0
    %v439 = vadd.f32 0.0, %v438
    %v440 = vpop.f32.mrb[0].mxu0
    %441 = vdwg.mxu0
    %s442 = sadd.s32 %s95, 16
    %v443 = vstv %s442
    %v444 = vadd.s32 %v443, %v97
    %vm445 = vcmp.lt.s32.totalorder %v444, 200
    %v446 = vld [vmem:[#allocation2] sm:$0x1]
    %v447 = vsub.f32 0.0, %v369
    %v448 = vmax.f32 %v447, 0.0
    %v449 = vand.u32 2147483647, %v447
    %v450 = vsub.f32 0.0, %v449
    %v451 = vmul.f32 %v450, 1.442695
    %v452 = vpow.pop %v451
    %v453 = vadd.f32 %v452, 1.0
    %v454 = vlog2.pop %v453
    %v455 = vmul.f32 %v454, 0.6931472
    %v456 = vmul.f32 -0.5, %v452
    %v457 = vadd.f32 %v456, 1.0
    %v458 = vmul.f32 %v457, %v452
    %v459 = vand.u32 2147483647, %v452
    %vm460 = vcmp.lt.f32.partialorder %v459, 0.0004427343
    %v461 = vsel %vm460, %v458, %v455
    %v462 = vadd.f32 %v448, %v461
    %v463 = vsel %vm445, %v462, 0.0
    %v464 = vadd.f32 %v446, %v463
    %465 = vst.msk [vmem:[#allocation2] sm:$0x1] %vm269, %v464
    %v466 = vld [vmem:[#allocation3] sm:$0x1]
    %v467 = vsub.f32 0.0, %v439
    %v468 = vmax.f32 %v467, 0.0
    %v469 = vand.u32 2147483647, %v467
    %v470 = vsub.f32 0.0, %v469
    %v471 = vmul.f32 %v470, 1.442695
    %v472 = vpow.pop %v471
    %v473 = vadd.f32 %v472, 1.0
    %v474 = vlog2.pop %v473
    %v475 = vmul.f32 %v474, 0.6931472
    %v476 = vmul.f32 -0.5, %v472
    %v477 = vadd.f32 %v476, 1.0
    %v478 = vmul.f32 %v477, %v472
    %v479 = vand.u32 2147483647, %v472
    %vm480 = vcmp.lt.f32.partialorder %v479, 0.0004427343
    %v481 = vsel %vm480, %v478, %v475
    %v482 = vadd.f32 %v468, %v481
    %v483 = vadd.f32 %v482, %v439
    %v484 = vsel %vm445, %v483, 0.0
    %v485 = vadd.f32 %v466, %v484
    %486 = vst.msk [vmem:[#allocation3] sm:$0x1] %vm269, %v485
    %s487 = scalar_lea.vmem [#allocation7], 16
    %v488 = vld [vmem:[%s487] sm:$0xf]
    %v489 = vld [vmem:[%s487 + $0x4] sm:$0xf]
    %v490 = vunpack.c.l.bf16 %v488
    %v491 = vunpack.c.l.bf16 %v489
    %s492 = scalar_lea.vmem [#allocation9], 16
    %v493 = vld [vmem:[%s492] sm:$0xf]
    %v494 = vld [vmem:[%s492 + $0x4] sm:$0xf]
    %v495 = vunpack.c.l.bf16 %v493
    %v496 = vunpack.c.l.bf16 %v494
    %497 = vmatprep.subr.mxu0 0.0
    %498 = vmatpush1.xpose.msra.mxu0 %v490
    %499 = vmatprep.subr.mxu0 0.0
    %500 = vmatpush1.xpose.msra.mxu0 %v491
    %501 = vmatprep.subr.mxu0 0.0
    %502 = vmatpush1.xpose.msra.mxu0 0.0
    %503 = vmatprep.subr.mxu0 0.0
    %504 = vmatpush1.xpose.msra.mxu0 0.0
    %505 = vmatprep.subr.mxu0 0.0
    %506 = vmatpush1.xpose.msra.mxu0 0.0
    %507 = vmatprep.subr.mxu0 0.0
    %508 = vmatpush1.xpose.msra.mxu0 0.0
    %509 = vmatprep.subr.mxu0 0.0
    %510 = vmatpush1.xpose.msra.mxu0 0.0
    %511 = vmatprep.subr.mxu0 0.0
    %512 = vmatpush1.xpose.msra.mxu0 0.0
    %513 = vmatprep.subr.mxu0 0.0
    %514 = vmatpush1.xpose.msra.mxu0 0.0
    %515 = vmatprep.subr.mxu0 0.0
    %516 = vmatpush1.xpose.msra.mxu0 0.0
    %517 = vmatprep.subr.mxu0 0.0
    %518 = vmatpush1.xpose.msra.mxu0 0.0
    %519 = vmatprep.subr.mxu0 0.0
    %520 = vmatpush1.xpose.msra.mxu0 0.0
    %521 = vmatprep.subr.mxu0 0.0
    %522 = vmatpush1.xpose.msra.mxu0 0.0
    %523 = vmatprep.subr.mxu0 0.0
    %524 = vmatpush1.xpose.msra.mxu0 0.0
    %525 = vmatprep.subr.mxu0 0.0
    %526 = vmatpush1.xpose.msra.mxu0 0.0
    %527 = vmatprep.subr.mxu0 0.0
    %528 = vmatpush1.xpose.msra.mxu0 0.0
    %529 = vmatprep.subr.mxu0 0.0
    %530 = vmatpush1.xpose.msra.mxu0 0.0
    %531 = vmatprep.subr.mxu0 0.0
    %532 = vmatpush1.xpose.msra.mxu0 0.0
    %533 = vmatprep.subr.mxu0 0.0
    %534 = vmatpush1.xpose.msra.mxu0 0.0
    %535 = vmatprep.subr.mxu0 0.0
    %536 = vmatpush1.xpose.msra.mxu0 0.0
    %537 = vmatprep.subr.mxu0 0.0
    %538 = vmatpush1.xpose.msra.mxu0 0.0
    %539 = vmatprep.subr.mxu0 0.0
    %540 = vmatpush1.xpose.msra.mxu0 0.0
    %541 = vmatprep.subr.mxu0 0.0
    %542 = vmatpush1.xpose.msra.mxu0 0.0
    %543 = vmatprep.subr.mxu0 0.0
    %544 = vmatpush1.xpose.msra.mxu0 0.0
    %545 = vmatprep.subr.mxu0 0.0
    %546 = vmatpush1.xpose.msra.mxu0 0.0
    %547 = vmatprep.subr.mxu0 0.0
    %548 = vmatpush1.xpose.msra.mxu0 0.0
    %549 = vmatprep.subr.mxu0 0.0
    %550 = vmatpush1.xpose.msra.mxu0 0.0
    %551 = vmatprep.subr.mxu0 0.0
    %552 = vmatpush1.xpose.msra.mxu0 0.0
    %553 = vmatprep.subr.mxu0 0.0
    %554 = vmatpush1.xpose.msra.mxu0 0.0
    %555 = vmatprep.subr.mxu0 0.0
    %556 = vmatpush1.xpose.msra.mxu0 0.0
    %557 = vmatprep.subr.mxu0 0.0
    %558 = vmatpush1.xpose.msra.mxu0 0.0
    %559 = vmatprep.subr.mxu0 0.0
    %560 = vmatpush1.xpose.msra.mxu0 0.0
    %561 = vmatprep.mubr.f32.mxu0 0.0
    %562 = vmatmul.mubr.f32.gmra.mrb[0].mxu0 %v93
    %v563 = vpop.f32.mrb[0].mxu0
    %v564 = vadd.f32 0.0, %v563
    %v565 = vpop.f32.mrb[0].mxu0
    %566 = vdwg.mxu0
    %567 = vmatprep.subr.mxu0 0.0
    %568 = vmatpush1.xpose.msra.mxu0 %v495
    %569 = vmatprep.subr.mxu0 0.0
    %570 = vmatpush1.xpose.msra.mxu0 %v496
    %571 = vmatprep.subr.mxu0 0.0
    %572 = vmatpush1.xpose.msra.mxu0 0.0
    %573 = vmatprep.subr.mxu0 0.0
    %574 = vmatpush1.xpose.msra.mxu0 0.0
    %575 = vmatprep.subr.mxu0 0.0
    %576 = vmatpush1.xpose.msra.mxu0 0.0
    %577 = vmatprep.subr.mxu0 0.0
    %578 = vmatpush1.xpose.msra.mxu0 0.0
    %579 = vmatprep.subr.mxu0 0.0
    %580 = vmatpush1.xpose.msra.mxu0 0.0
    %581 = vmatprep.subr.mxu0 0.0
    %582 = vmatpush1.xpose.msra.mxu0 0.0
    %583 = vmatprep.subr.mxu0 0.0
    %584 = vmatpush1.xpose.msra.mxu0 0.0
    %585 = vmatprep.subr.mxu0 0.0
    %586 = vmatpush1.xpose.msra.mxu0 0.0
    %587 = vmatprep.subr.mxu0 0.0
    %588 = vmatpush1.xpose.msra.mxu0 0.0
    %589 = vmatprep.subr.mxu0 0.0
    %590 = vmatpush1.xpose.msra.mxu0 0.0
    %591 = vmatprep.subr.mxu0 0.0
    %592 = vmatpush1.xpose.msra.mxu0 0.0
    %593 = vmatprep.subr.mxu0 0.0
    %594 = vmatpush1.xpose.msra.mxu0 0.0
    %595 = vmatprep.subr.mxu0 0.0
    %596 = vmatpush1.xpose.msra.mxu0 0.0
    %597 = vmatprep.subr.mxu0 0.0
    %598 = vmatpush1.xpose.msra.mxu0 0.0
    %599 = vmatprep.subr.mxu0 0.0
    %600 = vmatpush1.xpose.msra.mxu0 0.0
    %601 = vmatprep.subr.mxu0 0.0
    %602 = vmatpush1.xpose.msra.mxu0 0.0
    %603 = vmatprep.subr.mxu0 0.0
    %604 = vmatpush1.xpose.msra.mxu0 0.0
    %605 = vmatprep.subr.mxu0 0.0
    %606 = vmatpush1.xpose.msra.mxu0 0.0
    %607 = vmatprep.subr.mxu0 0.0
    %608 = vmatpush1.xpose.msra.mxu0 0.0
    %609 = vmatprep.subr.mxu0 0.0
    %610 = vmatpush1.xpose.msra.mxu0 0.0
    %611 = vmatprep.subr.mxu0 0.0
    %612 = vmatpush1.xpose.msra.mxu0 0.0
    %613 = vmatprep.subr.mxu0 0.0
    %614 = vmatpush1.xpose.msra.mxu0 0.0
    %615 = vmatprep.subr.mxu0 0.0
    %616 = vmatpush1.xpose.msra.mxu0 0.0
    %617 = vmatprep.subr.mxu0 0.0
    %618 = vmatpush1.xpose.msra.mxu0 0.0
    %619 = vmatprep.subr.mxu0 0.0
    %620 = vmatpush1.xpose.msra.mxu0 0.0
    %621 = vmatprep.subr.mxu0 0.0
    %622 = vmatpush1.xpose.msra.mxu0 0.0
    %623 = vmatprep.subr.mxu0 0.0
    %624 = vmatpush1.xpose.msra.mxu0 0.0
    %625 = vmatprep.subr.mxu0 0.0
    %626 = vmatpush1.xpose.msra.mxu0 0.0
    %627 = vmatprep.subr.mxu0 0.0
    %628 = vmatpush1.xpose.msra.mxu0 0.0
    %629 = vmatprep.subr.mxu0 0.0
    %630 = vmatpush1.xpose.msra.mxu0 0.0
    %631 = vmatprep.mubr.f32.mxu0 0.0
    %632 = vmatmul.mubr.f32.gmra.mrb[0].mxu0 %v93
    %v633 = vpop.f32.mrb[0].mxu0
    %v634 = vadd.f32 0.0, %v633
    %v635 = vpop.f32.mrb[0].mxu0
    %636 = vdwg.mxu0
    %s637 = sadd.s32 %s95, 32
    %v638 = vstv %s637
    %v639 = vadd.s32 %v638, %v97
    %vm640 = vcmp.lt.s32.totalorder %v639, 200
    %v641 = vld [vmem:[#allocation2] sm:$0x1]
    %v642 = vsub.f32 0.0, %v564
    %v643 = vmax.f32 %v642, 0.0
    %v644 = vand.u32 2147483647, %v642
    %v645 = vsub.f32 0.0, %v644
    %v646 = vmul.f32 %v645, 1.442695
    %v647 = vpow.pop %v646
    %v648 = vadd.f32 %v647, 1.0
    %v649 = vlog2.pop %v648
    %v650 = vmul.f32 %v649, 0.6931472
    %v651 = vmul.f32 -0.5, %v647
    %v652 = vadd.f32 %v651, 1.0
    %v653 = vmul.f32 %v652, %v647
    %v654 = vand.u32 2147483647, %v647
    %vm655 = vcmp.lt.f32.partialorder %v654, 0.0004427343
    %v656 = vsel %vm655, %v653, %v650
    %v657 = vadd.f32 %v643, %v656
    %v658 = vsel %vm640, %v657, 0.0
    %v659 = vadd.f32 %v641, %v658
    %660 = vst.msk [vmem:[#allocation2] sm:$0x1] %vm269, %v659
    %v661 = vld [vmem:[#allocation3] sm:$0x1]
    %v662 = vsub.f32 0.0, %v634
    %v663 = vmax.f32 %v662, 0.0
    %v664 = vand.u32 2147483647, %v662
    %v665 = vsub.f32 0.0, %v664
    %v666 = vmul.f32 %v665, 1.442695
    %v667 = vpow.pop %v666
    %v668 = vadd.f32 %v667, 1.0
    %v669 = vlog2.pop %v668
    %v670 = vmul.f32 %v669, 0.6931472
    %v671 = vmul.f32 -0.5, %v667
    %v672 = vadd.f32 %v671, 1.0
    %v673 = vmul.f32 %v672, %v667
    %v674 = vand.u32 2147483647, %v667
    %vm675 = vcmp.lt.f32.partialorder %v674, 0.0004427343
    %v676 = vsel %vm675, %v673, %v670
    %v677 = vadd.f32 %v663, %v676
    %v678 = vadd.f32 %v677, %v634
    %v679 = vsel %vm640, %v678, 0.0
    %v680 = vadd.f32 %v661, %v679
    %681 = vst.msk [vmem:[#allocation3] sm:$0x1] %vm269, %v680
    %s682 = scalar_lea.vmem [#allocation7], 24
    %v683 = vld [vmem:[%s682] sm:$0xf]
    %v684 = vld [vmem:[%s682 + $0x4] sm:$0xf]
    %v685 = vunpack.c.l.bf16 %v683
    %v686 = vunpack.c.l.bf16 %v684
    %s687 = scalar_lea.vmem [#allocation9], 24
    %v688 = vld [vmem:[%s687] sm:$0xf]
    %v689 = vld [vmem:[%s687 + $0x4] sm:$0xf]
    %v690 = vunpack.c.l.bf16 %v688
    %v691 = vunpack.c.l.bf16 %v689
    %692 = vmatprep.subr.mxu0 0.0
    %693 = vmatpush1.xpose.msra.mxu0 %v685
    %694 = vmatprep.subr.mxu0 0.0
    %695 = vmatpush1.xpose.msra.mxu0 %v686
    %696 = vmatprep.subr.mxu0 0.0
    %697 = vmatpush1.xpose.msra.mxu0 0.0
    %698 = vmatprep.subr.mxu0 0.0
    %699 = vmatpush1.xpose.msra.mxu0 0.0
    %700 = vmatprep.subr.mxu0 0.0
    %701 = vmatpush1.xpose.msra.mxu0 0.0
    %702 = vmatprep.subr.mxu0 0.0
    %703 = vmatpush1.xpose.msra.mxu0 0.0
    %704 = vmatprep.subr.mxu0 0.0
    %705 = vmatpush1.xpose.msra.mxu0 0.0
    %706 = vmatprep.subr.mxu0 0.0
    %707 = vmatpush1.xpose.msra.mxu0 0.0
    %708 = vmatprep.subr.mxu0 0.0
    %709 = vmatpush1.xpose.msra.mxu0 0.0
    %710 = vmatprep.subr.mxu0 0.0
    %711 = vmatpush1.xpose.msra.mxu0 0.0
    %712 = vmatprep.subr.mxu0 0.0
    %713 = vmatpush1.xpose.msra.mxu0 0.0
    %714 = vmatprep.subr.mxu0 0.0
    %715 = vmatpush1.xpose.msra.mxu0 0.0
    %716 = vmatprep.subr.mxu0 0.0
    %717 = vmatpush1.xpose.msra.mxu0 0.0
    %718 = vmatprep.subr.mxu0 0.0
    %719 = vmatpush1.xpose.msra.mxu0 0.0
    %720 = vmatprep.subr.mxu0 0.0
    %721 = vmatpush1.xpose.msra.mxu0 0.0
    %722 = vmatprep.subr.mxu0 0.0
    %723 = vmatpush1.xpose.msra.mxu0 0.0
    %724 = vmatprep.subr.mxu0 0.0
    %725 = vmatpush1.xpose.msra.mxu0 0.0
    %726 = vmatprep.subr.mxu0 0.0
    %727 = vmatpush1.xpose.msra.mxu0 0.0
    %728 = vmatprep.subr.mxu0 0.0
    %729 = vmatpush1.xpose.msra.mxu0 0.0
    %730 = vmatprep.subr.mxu0 0.0
    %731 = vmatpush1.xpose.msra.mxu0 0.0
    %732 = vmatprep.subr.mxu0 0.0
    %733 = vmatpush1.xpose.msra.mxu0 0.0
    %734 = vmatprep.subr.mxu0 0.0
    %735 = vmatpush1.xpose.msra.mxu0 0.0
    %736 = vmatprep.subr.mxu0 0.0
    %737 = vmatpush1.xpose.msra.mxu0 0.0
    %738 = vmatprep.subr.mxu0 0.0
    %739 = vmatpush1.xpose.msra.mxu0 0.0
    %740 = vmatprep.subr.mxu0 0.0
    %741 = vmatpush1.xpose.msra.mxu0 0.0
    %742 = vmatprep.subr.mxu0 0.0
    %743 = vmatpush1.xpose.msra.mxu0 0.0
    %744 = vmatprep.subr.mxu0 0.0
    %745 = vmatpush1.xpose.msra.mxu0 0.0
    %746 = vmatprep.subr.mxu0 0.0
    %747 = vmatpush1.xpose.msra.mxu0 0.0
    %748 = vmatprep.subr.mxu0 0.0
    %749 = vmatpush1.xpose.msra.mxu0 0.0
    %750 = vmatprep.subr.mxu0 0.0
    %751 = vmatpush1.xpose.msra.mxu0 0.0
    %752 = vmatprep.subr.mxu0 0.0
    %753 = vmatpush1.xpose.msra.mxu0 0.0
    %754 = vmatprep.subr.mxu0 0.0
    %755 = vmatpush1.xpose.msra.mxu0 0.0
    %756 = vmatprep.mubr.f32.mxu0 0.0
    %757 = vmatmul.mubr.f32.gmra.mrb[0].mxu0 %v93
    %v758 = vpop.f32.mrb[0].mxu0
    %v759 = vadd.f32 0.0, %v758
    %v760 = vpop.f32.mrb[0].mxu0
    %761 = vdwg.mxu0
    %762 = vmatprep.subr.mxu0 0.0
    %763 = vmatpush1.xpose.msra.mxu0 %v690
    %764 = vmatprep.subr.mxu0 0.0
    %765 = vmatpush1.xpose.msra.mxu0 %v691
    %766 = vmatprep.subr.mxu0 0.0
    %767 = vmatpush1.xpose.msra.mxu0 0.0
    %768 = vmatprep.subr.mxu0 0.0
    %769 = vmatpush1.xpose.msra.mxu0 0.0
    %770 = vmatprep.subr.mxu0 0.0
    %771 = vmatpush1.xpose.msra.mxu0 0.0
    %772 = vmatprep.subr.mxu0 0.0
    %773 = vmatpush1.xpose.msra.mxu0 0.0
    %774 = vmatprep.subr.mxu0 0.0
    %775 = vmatpush1.xpose.msra.mxu0 0.0
    %776 = vmatprep.subr.mxu0 0.0
    %777 = vmatpush1.xpose.msra.mxu0 0.0
    %778 = vmatprep.subr.mxu0 0.0
    %779 = vmatpush1.xpose.msra.mxu0 0.0
    %780 = vmatprep.subr.mxu0 0.0
    %781 = vmatpush1.xpose.msra.mxu0 0.0
    %782 = vmatprep.subr.mxu0 0.0
    %783 = vmatpush1.xpose.msra.mxu0 0.0
    %784 = vmatprep.subr.mxu0 0.0
    %785 = vmatpush1.xpose.msra.mxu0 0.0
    %786 = vmatprep.subr.mxu0 0.0
    %787 = vmatpush1.xpose.msra.mxu0 0.0
    %788 = vmatprep.subr.mxu0 0.0
    %789 = vmatpush1.xpose.msra.mxu0 0.0
    %790 = vmatprep.subr.mxu0 0.0
    %791 = vmatpush1.xpose.msra.mxu0 0.0
    %792 = vmatprep.subr.mxu0 0.0
    %793 = vmatpush1.xpose.msra.mxu0 0.0
    %794 = vmatprep.subr.mxu0 0.0
    %795 = vmatpush1.xpose.msra.mxu0 0.0
    %796 = vmatprep.subr.mxu0 0.0
    %797 = vmatpush1.xpose.msra.mxu0 0.0
    %798 = vmatprep.subr.mxu0 0.0
    %799 = vmatpush1.xpose.msra.mxu0 0.0
    %800 = vmatprep.subr.mxu0 0.0
    %801 = vmatpush1.xpose.msra.mxu0 0.0
    %802 = vmatprep.subr.mxu0 0.0
    %803 = vmatpush1.xpose.msra.mxu0 0.0
    %804 = vmatprep.subr.mxu0 0.0
    %805 = vmatpush1.xpose.msra.mxu0 0.0
    %806 = vmatprep.subr.mxu0 0.0
    %807 = vmatpush1.xpose.msra.mxu0 0.0
    %808 = vmatprep.subr.mxu0 0.0
    %809 = vmatpush1.xpose.msra.mxu0 0.0
    %810 = vmatprep.subr.mxu0 0.0
    %811 = vmatpush1.xpose.msra.mxu0 0.0
    %812 = vmatprep.subr.mxu0 0.0
    %813 = vmatpush1.xpose.msra.mxu0 0.0
    %814 = vmatprep.subr.mxu0 0.0
    %815 = vmatpush1.xpose.msra.mxu0 0.0
    %816 = vmatprep.subr.mxu0 0.0
    %817 = vmatpush1.xpose.msra.mxu0 0.0
    %818 = vmatprep.subr.mxu0 0.0
    %819 = vmatpush1.xpose.msra.mxu0 0.0
    %820 = vmatprep.subr.mxu0 0.0
    %821 = vmatpush1.xpose.msra.mxu0 0.0
    %822 = vmatprep.subr.mxu0 0.0
    %823 = vmatpush1.xpose.msra.mxu0 0.0
    %824 = vmatprep.subr.mxu0 0.0
    %825 = vmatpush1.xpose.msra.mxu0 0.0
    %826 = vmatprep.mubr.f32.mxu0 0.0
    %827 = vmatmul.mubr.f32.gmra.mrb[0].mxu0 %v93
    %v828 = vpop.f32.mrb[0].mxu0
    %v829 = vadd.f32 0.0, %v828
    %v830 = vpop.f32.mrb[0].mxu0
    %831 = vdwg.mxu0
    %s832 = sadd.s32 %s95, 48
    %v833 = vstv %s832
    %v834 = vadd.s32 %v833, %v97
    %vm835 = vcmp.lt.s32.totalorder %v834, 200
    %v836 = vld [vmem:[#allocation2] sm:$0x1]
    %v837 = vsub.f32 0.0, %v759
    %v838 = vmax.f32 %v837, 0.0
    %v839 = vand.u32 2147483647, %v837
    %v840 = vsub.f32 0.0, %v839
    %v841 = vmul.f32 %v840, 1.442695
    %v842 = vpow.pop %v841
    %v843 = vadd.f32 %v842, 1.0
    %v844 = vlog2.pop %v843
    %v845 = vmul.f32 %v844, 0.6931472
    %v846 = vmul.f32 -0.5, %v842
    %v847 = vadd.f32 %v846, 1.0
    %v848 = vmul.f32 %v847, %v842
    %v849 = vand.u32 2147483647, %v842
    %vm850 = vcmp.lt.f32.partialorder %v849, 0.0004427343
    %v851 = vsel %vm850, %v848, %v845
    %v852 = vadd.f32 %v838, %v851
    %v853 = vsel %vm835, %v852, 0.0
    %v854 = vadd.f32 %v836, %v853
    %855 = vst.msk [vmem:[#allocation2] sm:$0x1] %vm269, %v854
    %v856 = vld [vmem:[#allocation3] sm:$0x1]
    %v857 = vsub.f32 0.0, %v829
    %v858 = vmax.f32 %v857, 0.0
    %v859 = vand.u32 2147483647, %v857
    %v860 = vsub.f32 0.0, %v859
    %v861 = vmul.f32 %v860, 1.442695
    %v862 = vpow.pop %v861
    %v863 = vadd.f32 %v862, 1.0
    %v864 = vlog2.pop %v863
    %v865 = vmul.f32 %v864, 0.6931472
    %v866 = vmul.f32 -0.5, %v862
    %v867 = vadd.f32 %v866, 1.0
    %v868 = vmul.f32 %v867, %v862
    %v869 = vand.u32 2147483647, %v862
    %vm870 = vcmp.lt.f32.partialorder %v869, 0.0004427343
    %v871 = vsel %vm870, %v868, %v865
    %v872 = vadd.f32 %v858, %v871
    %v873 = vadd.f32 %v872, %v829
    %v874 = vsel %vm835, %v873, 0.0
    %v875 = vadd.f32 %v856, %v874
    %876 = vst.msk [vmem:[#allocation3] sm:$0x1] %vm269, %v875
    %s877 = scalar_lea.vmem [#allocation7], 32
    %v878 = vld [vmem:[%s877] sm:$0xf]
    %v879 = vld [vmem:[%s877 + $0x4] sm:$0xf]
    %v880 = vunpack.c.l.bf16 %v878
    %v881 = vunpack.c.l.bf16 %v879
    %s882 = scalar_lea.vmem [#allocation9], 32
    %v883 = vld [vmem:[%s882] sm:$0xf]
    %v884 = vld [vmem:[%s882 + $0x4] sm:$0xf]
    %v885 = vunpack.c.l.bf16 %v883
    %v886 = vunpack.c.l.bf16 %v884
    %887 = vmatprep.subr.mxu0 0.0
    %888 = vmatpush1.xpose.msra.mxu0 %v880
    %889 = vmatprep.subr.mxu0 0.0
    %890 = vmatpush1.xpose.msra.mxu0 %v881
    %891 = vmatprep.subr.mxu0 0.0
    %892 = vmatpush1.xpose.msra.mxu0 0.0
    %893 = vmatprep.subr.mxu0 0.0
    %894 = vmatpush1.xpose.msra.mxu0 0.0
    %895 = vmatprep.subr.mxu0 0.0
    %896 = vmatpush1.xpose.msra.mxu0 0.0
    %897 = vmatprep.subr.mxu0 0.0
    %898 = vmatpush1.xpose.msra.mxu0 0.0
    %899 = vmatprep.subr.mxu0 0.0
    %900 = vmatpush1.xpose.msra.mxu0 0.0
    %901 = vmatprep.subr.mxu0 0.0
    %902 = vmatpush1.xpose.msra.mxu0 0.0
    %903 = vmatprep.subr.mxu0 0.0
    %904 = vmatpush1.xpose.msra.mxu0 0.0
    %905 = vmatprep.subr.mxu0 0.0
    %906 = vmatpush1.xpose.msra.mxu0 0.0
    %907 = vmatprep.subr.mxu0 0.0
    %908 = vmatpush1.xpose.msra.mxu0 0.0
    %909 = vmatprep.subr.mxu0 0.0
    %910 = vmatpush1.xpose.msra.mxu0 0.0
    %911 = vmatprep.subr.mxu0 0.0
    %912 = vmatpush1.xpose.msra.mxu0 0.0
    %913 = vmatprep.subr.mxu0 0.0
    %914 = vmatpush1.xpose.msra.mxu0 0.0
    %915 = vmatprep.subr.mxu0 0.0
    %916 = vmatpush1.xpose.msra.mxu0 0.0
    %917 = vmatprep.subr.mxu0 0.0
    %918 = vmatpush1.xpose.msra.mxu0 0.0
    %919 = vmatprep.subr.mxu0 0.0
    %920 = vmatpush1.xpose.msra.mxu0 0.0
    %921 = vmatprep.subr.mxu0 0.0
    %922 = vmatpush1.xpose.msra.mxu0 0.0
    %923 = vmatprep.subr.mxu0 0.0
    %924 = vmatpush1.xpose.msra.mxu0 0.0
    %925 = vmatprep.subr.mxu0 0.0
    %926 = vmatpush1.xpose.msra.mxu0 0.0
    %927 = vmatprep.subr.mxu0 0.0
    %928 = vmatpush1.xpose.msra.mxu0 0.0
    %929 = vmatprep.subr.mxu0 0.0
    %930 = vmatpush1.xpose.msra.mxu0 0.0
    %931 = vmatprep.subr.mxu0 0.0
    %932 = vmatpush1.xpose.msra.mxu0 0.0
    %933 = vmatprep.subr.mxu0 0.0
    %934 = vmatpush1.xpose.msra.mxu0 0.0
    %935 = vmatprep.subr.mxu0 0.0
    %936 = vmatpush1.xpose.msra.mxu0 0.0
    %937 = vmatprep.subr.mxu0 0.0
    %938 = vmatpush1.xpose.msra.mxu0 0.0
    %939 = vmatprep.subr.mxu0 0.0
    %940 = vmatpush1.xpose.msra.mxu0 0.0
    %941 = vmatprep.subr.mxu0 0.0
    %942 = vmatpush1.xpose.msra.mxu0 0.0
    %943 = vmatprep.subr.mxu0 0.0
    %944 = vmatpush1.xpose.msra.mxu0 0.0
    %945 = vmatprep.subr.mxu0 0.0
    %946 = vmatpush1.xpose.msra.mxu0 0.0
    %947 = vmatprep.subr.mxu0 0.0
    %948 = vmatpush1.xpose.msra.mxu0 0.0
    %949 = vmatprep.subr.mxu0 0.0
    %950 = vmatpush1.xpose.msra.mxu0 0.0
    %951 = vmatprep.mubr.f32.mxu0 0.0
    %952 = vmatmul.mubr.f32.gmra.mrb[0].mxu0 %v93
    %v953 = vpop.f32.mrb[0].mxu0
    %v954 = vadd.f32 0.0, %v953
    %v955 = vpop.f32.mrb[0].mxu0
    %956 = vdwg.mxu0
    %957 = vmatprep.subr.mxu0 0.0
    %958 = vmatpush1.xpose.msra.mxu0 %v885
    %959 = vmatprep.subr.mxu0 0.0
    %960 = vmatpush1.xpose.msra.mxu0 %v886
    %961 = vmatprep.subr.mxu0 0.0
    %962 = vmatpush1.xpose.msra.mxu0 0.0
    %963 = vmatprep.subr.mxu0 0.0
    %964 = vmatpush1.xpose.msra.mxu0 0.0
    %965 = vmatprep.subr.mxu0 0.0
    %966 = vmatpush1.xpose.msra.mxu0 0.0
    %967 = vmatprep.subr.mxu0 0.0
    %968 = vmatpush1.xpose.msra.mxu0 0.0
    %969 = vmatprep.subr.mxu0 0.0
    %970 = vmatpush1.xpose.msra.mxu0 0.0
    %971 = vmatprep.subr.mxu0 0.0
    %972 = vmatpush1.xpose.msra.mxu0 0.0
    %973 = vmatprep.subr.mxu0 0.0
    %974 = vmatpush1.xpose.msra.mxu0 0.0
    %975 = vmatprep.subr.mxu0 0.0
    %976 = vmatpush1.xpose.msra.mxu0 0.0
    %977 = vmatprep.subr.mxu0 0.0
    %978 = vmatpush1.xpose.msra.mxu0 0.0
    %979 = vmatprep.subr.mxu0 0.0
    %980 = vmatpush1.xpose.msra.mxu0 0.0
    %981 = vmatprep.subr.mxu0 0.0
    %982 = vmatpush1.xpose.msra.mxu0 0.0
    %983 = vmatprep.subr.mxu0 0.0
    %984 = vmatpush1.xpose.msra.mxu0 0.0
    %985 = vmatprep.subr.mxu0 0.0
    %986 = vmatpush1.xpose.msra.mxu0 0.0
    %987 = vmatprep.subr.mxu0 0.0
    %988 = vmatpush1.xpose.msra.mxu0 0.0
    %989 = vmatprep.subr.mxu0 0.0
    %990 = vmatpush1.xpose.msra.mxu0 0.0
    %991 = vmatprep.subr.mxu0 0.0
    %992 = vmatpush1.xpose.msra.mxu0 0.0
    %993 = vmatprep.subr.mxu0 0.0
    %994 = vmatpush1.xpose.msra.mxu0 0.0
    %995 = vmatprep.subr.mxu0 0.0
    %996 = vmatpush1.xpose.msra.mxu0 0.0
    %997 = vmatprep.subr.mxu0 0.0
    %998 = vmatpush1.xpose.msra.mxu0 0.0
    %999 = vmatprep.subr.mxu0 0.0
    %1000 = vmatpush1.xpose.msra.mxu0 0.0
    %1001 = vmatprep.subr.mxu0 0.0
    %1002 = vmatpush1.xpose.msra.mxu0 0.0
    %1003 = vmatprep.subr.mxu0 0.0
    %1004 = vmatpush1.xpose.msra.mxu0 0.0
    %1005 = vmatprep.subr.mxu0 0.0
    %1006 = vmatpush1.xpose.msra.mxu0 0.0
    %1007 = vmatprep.subr.mxu0 0.0
    %1008 = vmatpush1.xpose.msra.mxu0 0.0
    %1009 = vmatprep.subr.mxu0 0.0
    %1010 = vmatpush1.xpose.msra.mxu0 0.0
    %1011 = vmatprep.subr.mxu0 0.0
    %1012 = vmatpush1.xpose.msra.mxu0 0.0
    %1013 = vmatprep.subr.mxu0 0.0
    %1014 = vmatpush1.xpose.msra.mxu0 0.0
    %1015 = vmatprep.subr.mxu0 0.0
    %1016 = vmatpush1.xpose.msra.mxu0 0.0
    %1017 = vmatprep.subr.mxu0 0.0
    %1018 = vmatpush1.xpose.msra.mxu0 0.0
    %1019 = vmatprep.subr.mxu0 0.0
    %1020 = vmatpush1.xpose.msra.mxu0 0.0
    %1021 = vmatprep.mubr.f32.mxu0 0.0
    %1022 = vmatmul.mubr.f32.gmra.mrb[0].mxu0 %v93
    %v1023 = vpop.f32.mrb[0].mxu0
    %v1024 = vadd.f32 0.0, %v1023
    %v1025 = vpop.f32.mrb[0].mxu0
    %1026 = vdwg.mxu0
    %s1027 = sadd.s32 %s95, 64
    %v1028 = vstv %s1027
    %v1029 = vadd.s32 %v1028, %v97
    %vm1030 = vcmp.lt.s32.totalorder %v1029, 200
    %v1031 = vld [vmem:[#allocation2] sm:$0x1]
    %v1032 = vsub.f32 0.0, %v954
    %v1033 = vmax.f32 %v1032, 0.0
    %v1034 = vand.u32 2147483647, %v1032
    %v1035 = vsub.f32 0.0, %v1034
    %v1036 = vmul.f32 %v1035, 1.442695
    %v1037 = vpow.pop %v1036
    %v1038 = vadd.f32 %v1037, 1.0
    %v1039 = vlog2.pop %v1038
    %v1040 = vmul.f32 %v1039, 0.6931472
    %v1041 = vmul.f32 -0.5, %v1037
    %v1042 = vadd.f32 %v1041, 1.0
    %v1043 = vmul.f32 %v1042, %v1037
    %v1044 = vand.u32 2147483647, %v1037
    %vm1045 = vcmp.lt.f32.partialorder %v1044, 0.0004427343
    %v1046 = vsel %vm1045, %v1043, %v1040
    %v1047 = vadd.f32 %v1033, %v1046
    %v1048 = vsel %vm1030, %v1047, 0.0
    %v1049 = vadd.f32 %v1031, %v1048
    %1050 = vst.msk [vmem:[#allocation2] sm:$0x1] %vm269, %v1049
    %v1051 = vld [vmem:[#allocation3] sm:$0x1]
    %v1052 = vsub.f32 0.0, %v1024
    %v1053 = vmax.f32 %v1052, 0.0
    %v1054 = vand.u32 2147483647, %v1052
    %v1055 = vsub.f32 0.0, %v1054
    %v1056 = vmul.f32 %v1055, 1.442695
    %v1057 = vpow.pop %v1056
    %v1058 = vadd.f32 %v1057, 1.0
    %v1059 = vlog2.pop %v1058
    %v1060 = vmul.f32 %v1059, 0.6931472
    %v1061 = vmul.f32 -0.5, %v1057
    %v1062 = vadd.f32 %v1061, 1.0
    %v1063 = vmul.f32 %v1062, %v1057
    %v1064 = vand.u32 2147483647, %v1057
    %vm1065 = vcmp.lt.f32.partialorder %v1064, 0.0004427343
    %v1066 = vsel %vm1065, %v1063, %v1060
    %v1067 = vadd.f32 %v1053, %v1066
    %v1068 = vadd.f32 %v1067, %v1024
    %v1069 = vsel %vm1030, %v1068, 0.0
    %v1070 = vadd.f32 %v1051, %v1069
    %1071 = vst.msk [vmem:[#allocation3] sm:$0x1] %vm269, %v1070
    %s1072 = scalar_lea.vmem [#allocation7], 40
    %v1073 = vld [vmem:[%s1072] sm:$0xf]
    %v1074 = vld [vmem:[%s1072 + $0x4] sm:$0xf]
    %v1075 = vunpack.c.l.bf16 %v1073
    %v1076 = vunpack.c.l.bf16 %v1074
    %s1077 = scalar_lea.vmem [#allocation9], 40
    %v1078 = vld [vmem:[%s1077] sm:$0xf]
    %v1079 = vld [vmem:[%s1077 + $0x4] sm:$0xf]
    %v1080 = vunpack.c.l.bf16 %v1078
    %v1081 = vunpack.c.l.bf16 %v1079
    %1082 = vmatprep.subr.mxu0 0.0
    %1083 = vmatpush1.xpose.msra.mxu0 %v1075
    %1084 = vmatprep.subr.mxu0 0.0
    %1085 = vmatpush1.xpose.msra.mxu0 %v1076
    %1086 = vmatprep.subr.mxu0 0.0
    %1087 = vmatpush1.xpose.msra.mxu0 0.0
    %1088 = vmatprep.subr.mxu0 0.0
    %1089 = vmatpush1.xpose.msra.mxu0 0.0
    %1090 = vmatprep.subr.mxu0 0.0
    %1091 = vmatpush1.xpose.msra.mxu0 0.0
    %1092 = vmatprep.subr.mxu0 0.0
    %1093 = vmatpush1.xpose.msra.mxu0 0.0
    %1094 = vmatprep.subr.mxu0 0.0
    %1095 = vmatpush1.xpose.msra.mxu0 0.0
    %1096 = vmatprep.subr.mxu0 0.0
    %1097 = vmatpush1.xpose.msra.mxu0 0.0
    %1098 = vmatprep.subr.mxu0 0.0
    %1099 = vmatpush1.xpose.msra.mxu0 0.0
    %1100 = vmatprep.subr.mxu0 0.0
    %1101 = vmatpush1.xpose.msra.mxu0 0.0
    %1102 = vmatprep.subr.mxu0 0.0
    %1103 = vmatpush1.xpose.msra.mxu0 0.0
    %1104 = vmatprep.subr.mxu0 0.0
    %1105 = vmatpush1.xpose.msra.mxu0 0.0
    %1106 = vmatprep.subr.mxu0 0.0
    %1107 = vmatpush1.xpose.msra.mxu0 0.0
    %1108 = vmatprep.subr.mxu0 0.0
    %1109 = vmatpush1.xpose.msra.mxu0 0.0
    %1110 = vmatprep.subr.mxu0 0.0
    %1111 = vmatpush1.xpose.msra.mxu0 0.0
    %1112 = vmatprep.subr.mxu0 0.0
    %1113 = vmatpush1.xpose.msra.mxu0 0.0
    %1114 = vmatprep.subr.mxu0 0.0
    %1115 = vmatpush1.xpose.msra.mxu0 0.0
    %1116 = vmatprep.subr.mxu0 0.0
    %1117 = vmatpush1.xpose.msra.mxu0 0.0
    %1118 = vmatprep.subr.mxu0 0.0
    %1119 = vmatpush1.xpose.msra.mxu0 0.0
    %1120 = vmatprep.subr.mxu0 0.0
    %1121 = vmatpush1.xpose.msra.mxu0 0.0
    %1122 = vmatprep.subr.mxu0 0.0
    %1123 = vmatpush1.xpose.msra.mxu0 0.0
    %1124 = vmatprep.subr.mxu0 0.0
    %1125 = vmatpush1.xpose.msra.mxu0 0.0
    %1126 = vmatprep.subr.mxu0 0.0
    %1127 = vmatpush1.xpose.msra.mxu0 0.0
    %1128 = vmatprep.subr.mxu0 0.0
    %1129 = vmatpush1.xpose.msra.mxu0 0.0
    %1130 = vmatprep.subr.mxu0 0.0
    %1131 = vmatpush1.xpose.msra.mxu0 0.0
    %1132 = vmatprep.subr.mxu0 0.0
    %1133 = vmatpush1.xpose.msra.mxu0 0.0
    %1134 = vmatprep.subr.mxu0 0.0
    %1135 = vmatpush1.xpose.msra.mxu0 0.0
    %1136 = vmatprep.subr.mxu0 0.0
    %1137 = vmatpush1.xpose.msra.mxu0 0.0
    %1138 = vmatprep.subr.mxu0 0.0
    %1139 = vmatpush1.xpose.msra.mxu0 0.0
    %1140 = vmatprep.subr.mxu0 0.0
    %1141 = vmatpush1.xpose.msra.mxu0 0.0
    %1142 = vmatprep.subr.mxu0 0.0
    %1143 = vmatpush1.xpose.msra.mxu0 0.0
    %1144 = vmatprep.subr.mxu0 0.0
    %1145 = vmatpush1.xpose.msra.mxu0 0.0
    %1146 = vmatprep.mubr.f32.mxu0 0.0
    %1147 = vmatmul.mubr.f32.gmra.mrb[0].mxu0 %v93
    %v1148 = vpop.f32.mrb[0].mxu0
    %v1149 = vadd.f32 0.0, %v1148
    %v1150 = vpop.f32.mrb[0].mxu0
    %1151 = vdwg.mxu0
    %1152 = vmatprep.subr.mxu0 0.0
    %1153 = vmatpush1.xpose.msra.mxu0 %v1080
    %1154 = vmatprep.subr.mxu0 0.0
    %1155 = vmatpush1.xpose.msra.mxu0 %v1081
    %1156 = vmatprep.subr.mxu0 0.0
    %1157 = vmatpush1.xpose.msra.mxu0 0.0
    %1158 = vmatprep.subr.mxu0 0.0
    %1159 = vmatpush1.xpose.msra.mxu0 0.0
    %1160 = vmatprep.subr.mxu0 0.0
    %1161 = vmatpush1.xpose.msra.mxu0 0.0
    %1162 = vmatprep.subr.mxu0 0.0
    %1163 = vmatpush1.xpose.msra.mxu0 0.0
    %1164 = vmatprep.subr.mxu0 0.0
    %1165 = vmatpush1.xpose.msra.mxu0 0.0
    %1166 = vmatprep.subr.mxu0 0.0
    %1167 = vmatpush1.xpose.msra.mxu0 0.0
    %1168 = vmatprep.subr.mxu0 0.0
    %1169 = vmatpush1.xpose.msra.mxu0 0.0
    %1170 = vmatprep.subr.mxu0 0.0
    %1171 = vmatpush1.xpose.msra.mxu0 0.0
    %1172 = vmatprep.subr.mxu0 0.0
    %1173 = vmatpush1.xpose.msra.mxu0 0.0
    %1174 = vmatprep.subr.mxu0 0.0
    %1175 = vmatpush1.xpose.msra.mxu0 0.0
    %1176 = vmatprep.subr.mxu0 0.0
    %1177 = vmatpush1.xpose.msra.mxu0 0.0
    %1178 = vmatprep.subr.mxu0 0.0
    %1179 = vmatpush1.xpose.msra.mxu0 0.0
    %1180 = vmatprep.subr.mxu0 0.0
    %1181 = vmatpush1.xpose.msra.mxu0 0.0
    %1182 = vmatprep.subr.mxu0 0.0
    %1183 = vmatpush1.xpose.msra.mxu0 0.0
    %1184 = vmatprep.subr.mxu0 0.0
    %1185 = vmatpush1.xpose.msra.mxu0 0.0
    %1186 = vmatprep.subr.mxu0 0.0
    %1187 = vmatpush1.xpose.msra.mxu0 0.0
    %1188 = vmatprep.subr.mxu0 0.0
    %1189 = vmatpush1.xpose.msra.mxu0 0.0
    %1190 = vmatprep.subr.mxu0 0.0
    %1191 = vmatpush1.xpose.msra.mxu0 0.0
    %1192 = vmatprep.subr.mxu0 0.0
    %1193 = vmatpush1.xpose.msra.mxu0 0.0
    %1194 = vmatprep.subr.mxu0 0.0
    %1195 = vmatpush1.xpose.msra.mxu0 0.0
    %1196 = vmatprep.subr.mxu0 0.0
    %1197 = vmatpush1.xpose.msra.mxu0 0.0
    %1198 = vmatprep.subr.mxu0 0.0
    %1199 = vmatpush1.xpose.msra.mxu0 0.0
    %1200 = vmatprep.subr.mxu0 0.0
    %1201 = vmatpush1.xpose.msra.mxu0 0.0
    %1202 = vmatprep.subr.mxu0 0.0
    %1203 = vmatpush1.xpose.msra.mxu0 0.0
    %1204 = vmatprep.subr.mxu0 0.0
    %1205 = vmatpush1.xpose.msra.mxu0 0.0
    %1206 = vmatprep.subr.mxu0 0.0
    %1207 = vmatpush1.xpose.msra.mxu0 0.0
    %1208 = vmatprep.subr.mxu0 0.0
    %1209 = vmatpush1.xpose.msra.mxu0 0.0
    %1210 = vmatprep.subr.mxu0 0.0
    %1211 = vmatpush1.xpose.msra.mxu0 0.0
    %1212 = vmatprep.subr.mxu0 0.0
    %1213 = vmatpush1.xpose.msra.mxu0 0.0
    %1214 = vmatprep.subr.mxu0 0.0
    %1215 = vmatpush1.xpose.msra.mxu0 0.0
    %1216 = vmatprep.mubr.f32.mxu0 0.0
    %1217 = vmatmul.mubr.f32.gmra.mrb[0].mxu0 %v93
    %v1218 = vpop.f32.mrb[0].mxu0
    %v1219 = vadd.f32 0.0, %v1218
    %v1220 = vpop.f32.mrb[0].mxu0
    %1221 = vdwg.mxu0
    %s1222 = sadd.s32 %s95, 80
    %v1223 = vstv %s1222
    %v1224 = vadd.s32 %v1223, %v97
    %vm1225 = vcmp.lt.s32.totalorder %v1224, 200
    %v1226 = vld [vmem:[#allocation2] sm:$0x1]
    %v1227 = vsub.f32 0.0, %v1149
    %v1228 = vmax.f32 %v1227, 0.0
    %v1229 = vand.u32 2147483647, %v1227
    %v1230 = vsub.f32 0.0, %v1229
    %v1231 = vmul.f32 %v1230, 1.442695
    %v1232 = vpow.pop %v1231
    %v1233 = vadd.f32 %v1232, 1.0
    %v1234 = vlog2.pop %v1233
    %v1235 = vmul.f32 %v1234, 0.6931472
    %v1236 = vmul.f32 -0.5, %v1232
    %v1237 = vadd.f32 %v1236, 1.0
    %v1238 = vmul.f32 %v1237, %v1232
    %v1239 = vand.u32 2147483647, %v1232
    %vm1240 = vcmp.lt.f32.partialorder %v1239, 0.0004427343
    %v1241 = vsel %vm1240, %v1238, %v1235
    %v1242 = vadd.f32 %v1228, %v1241
    %v1243 = vsel %vm1225, %v1242, 0.0
    %v1244 = vadd.f32 %v1226, %v1243
    %1245 = vst.msk [vmem:[#allocation2] sm:$0x1] %vm269, %v1244
    %v1246 = vld [vmem:[#allocation3] sm:$0x1]
    %v1247 = vsub.f32 0.0, %v1219
    %v1248 = vmax.f32 %v1247, 0.0
    %v1249 = vand.u32 2147483647, %v1247
    %v1250 = vsub.f32 0.0, %v1249
    %v1251 = vmul.f32 %v1250, 1.442695
    %v1252 = vpow.pop %v1251
    %v1253 = vadd.f32 %v1252, 1.0
    %v1254 = vlog2.pop %v1253
    %v1255 = vmul.f32 %v1254, 0.6931472
    %v1256 = vmul.f32 -0.5, %v1252
    %v1257 = vadd.f32 %v1256, 1.0
    %v1258 = vmul.f32 %v1257, %v1252
    %v1259 = vand.u32 2147483647, %v1252
    %vm1260 = vcmp.lt.f32.partialorder %v1259, 0.0004427343
    %v1261 = vsel %vm1260, %v1258, %v1255
    %v1262 = vadd.f32 %v1248, %v1261
    %v1263 = vadd.f32 %v1262, %v1219
    %v1264 = vsel %vm1225, %v1263, 0.0
    %v1265 = vadd.f32 %v1246, %v1264
    %1266 = vst.msk [vmem:[#allocation3] sm:$0x1] %vm269, %v1265
    %s1267 = scalar_lea.vmem [#allocation7], 48
    %v1268 = vld [vmem:[%s1267] sm:$0xf]
    %v1269 = vld [vmem:[%s1267 + $0x4] sm:$0xf]
    %v1270 = vunpack.c.l.bf16 %v1268
    %v1271 = vunpack.c.l.bf16 %v1269
    %s1272 = scalar_lea.vmem [#allocation9], 48
    %v1273 = vld [vmem:[%s1272] sm:$0xf]
    %v1274 = vld [vmem:[%s1272 + $0x4] sm:$0xf]
    %v1275 = vunpack.c.l.bf16 %v1273
    %v1276 = vunpack.c.l.bf16 %v1274
    %1277 = vmatprep.subr.mxu0 0.0
    %1278 = vmatpush1.xpose.msra.mxu0 %v1270
    %1279 = vmatprep.subr.mxu0 0.0
    %1280 = vmatpush1.xpose.msra.mxu0 %v1271
    %1281 = vmatprep.subr.mxu0 0.0
    %1282 = vmatpush1.xpose.msra.mxu0 0.0
    %1283 = vmatprep.subr.mxu0 0.0
    %1284 = vmatpush1.xpose.msra.mxu0 0.0
    %1285 = vmatprep.subr.mxu0 0.0
    %1286 = vmatpush1.xpose.msra.mxu0 0.0
    %1287 = vmatprep.subr.mxu0 0.0
    %1288 = vmatpush1.xpose.msra.mxu0 0.0
    %1289 = vmatprep.subr.mxu0 0.0
    %1290 = vmatpush1.xpose.msra.mxu0 0.0
    %1291 = vmatprep.subr.mxu0 0.0
    %1292 = vmatpush1.xpose.msra.mxu0 0.0
    %1293 = vmatprep.subr.mxu0 0.0
    %1294 = vmatpush1.xpose.msra.mxu0 0.0
    %1295 = vmatprep.subr.mxu0 0.0
    %1296 = vmatpush1.xpose.msra.mxu0 0.0
    %1297 = vmatprep.subr.mxu0 0.0
    %1298 = vmatpush1.xpose.msra.mxu0 0.0
    %1299 = vmatprep.subr.mxu0 0.0
    %1300 = vmatpush1.xpose.msra.mxu0 0.0
    %1301 = vmatprep.subr.mxu0 0.0
    %1302 = vmatpush1.xpose.msra.mxu0 0.0
    %1303 = vmatprep.subr.mxu0 0.0
    %1304 = vmatpush1.xpose.msra.mxu0 0.0
    %1305 = vmatprep.subr.mxu0 0.0
    %1306 = vmatpush1.xpose.msra.mxu0 0.0
    %1307 = vmatprep.subr.mxu0 0.0
    %1308 = vmatpush1.xpose.msra.mxu0 0.0
    %1309 = vmatprep.subr.mxu0 0.0
    %1310 = vmatpush1.xpose.msra.mxu0 0.0
    %1311 = vmatprep.subr.mxu0 0.0
    %1312 = vmatpush1.xpose.msra.mxu0 0.0
    %1313 = vmatprep.subr.mxu0 0.0
    %1314 = vmatpush1.xpose.msra.mxu0 0.0
    %1315 = vmatprep.subr.mxu0 0.0
    %1316 = vmatpush1.xpose.msra.mxu0 0.0
    %1317 = vmatprep.subr.mxu0 0.0
    %1318 = vmatpush1.xpose.msra.mxu0 0.0
    %1319 = vmatprep.subr.mxu0 0.0
    %1320 = vmatpush1.xpose.msra.mxu0 0.0
    %1321 = vmatprep.subr.mxu0 0.0
    %1322 = vmatpush1.xpose.msra.mxu0 0.0
    %1323 = vmatprep.subr.mxu0 0.0
    %1324 = vmatpush1.xpose.msra.mxu0 0.0
    %1325 = vmatprep.subr.mxu0 0.0
    %1326 = vmatpush1.xpose.msra.mxu0 0.0
    %1327 = vmatprep.subr.mxu0 0.0
    %1328 = vmatpush1.xpose.msra.mxu0 0.0
    %1329 = vmatprep.subr.mxu0 0.0
    %1330 = vmatpush1.xpose.msra.mxu0 0.0
    %1331 = vmatprep.subr.mxu0 0.0
    %1332 = vmatpush1.xpose.msra.mxu0 0.0
    %1333 = vmatprep.subr.mxu0 0.0
    %1334 = vmatpush1.xpose.msra.mxu0 0.0
    %1335 = vmatprep.subr.mxu0 0.0
    %1336 = vmatpush1.xpose.msra.mxu0 0.0
    %1337 = vmatprep.subr.mxu0 0.0
    %1338 = vmatpush1.xpose.msra.mxu0 0.0
    %1339 = vmatprep.subr.mxu0 0.0
    %1340 = vmatpush1.xpose.msra.mxu0 0.0
    %1341 = vmatprep.mubr.f32.mxu0 0.0
    %1342 = vmatmul.mubr.f32.gmra.mrb[0].mxu0 %v93
    %v1343 = vpop.f32.mrb[0].mxu0
    %v1344 = vadd.f32 0.0, %v1343
    %v1345 = vpop.f32.mrb[0].mxu0
    %1346 = vdwg.mxu0
    %1347 = vmatprep.subr.mxu0 0.0
    %1348 = vmatpush1.xpose.msra.mxu0 %v1275
    %1349 = vmatprep.subr.mxu0 0.0
    %1350 = vmatpush1.xpose.msra.mxu0 %v1276
    %1351 = vmatprep.subr.mxu0 0.0
    %1352 = vmatpush1.xpose.msra.mxu0 0.0
    %1353 = vmatprep.subr.mxu0 0.0
    %1354 = vmatpush1.xpose.msra.mxu0 0.0
    %1355 = vmatprep.subr.mxu0 0.0
    %1356 = vmatpush1.xpose.msra.mxu0 0.0
    %1357 = vmatprep.subr.mxu0 0.0
    %1358 = vmatpush1.xpose.msra.mxu0 0.0
    %1359 = vmatprep.subr.mxu0 0.0
    %1360 = vmatpush1.xpose.msra.mxu0 0.0
    %1361 = vmatprep.subr.mxu0 0.0
    %1362 = vmatpush1.xpose.msra.mxu0 0.0
    %1363 = vmatprep.subr.mxu0 0.0
    %1364 = vmatpush1.xpose.msra.mxu0 0.0
    %1365 = vmatprep.subr.mxu0 0.0
    %1366 = vmatpush1.xpose.msra.mxu0 0.0
    %1367 = vmatprep.subr.mxu0 0.0
    %1368 = vmatpush1.xpose.msra.mxu0 0.0
    %1369 = vmatprep.subr.mxu0 0.0
    %1370 = vmatpush1.xpose.msra.mxu0 0.0
    %1371 = vmatprep.subr.mxu0 0.0
    %1372 = vmatpush1.xpose.msra.mxu0 0.0
    %1373 = vmatprep.subr.mxu0 0.0
    %1374 = vmatpush1.xpose.msra.mxu0 0.0
    %1375 = vmatprep.subr.mxu0 0.0
    %1376 = vmatpush1.xpose.msra.mxu0 0.0
    %1377 = vmatprep.subr.mxu0 0.0
    %1378 = vmatpush1.xpose.msra.mxu0 0.0
    %1379 = vmatprep.subr.mxu0 0.0
    %1380 = vmatpush1.xpose.msra.mxu0 0.0
    %1381 = vmatprep.subr.mxu0 0.0
    %1382 = vmatpush1.xpose.msra.mxu0 0.0
    %1383 = vmatprep.subr.mxu0 0.0
    %1384 = vmatpush1.xpose.msra.mxu0 0.0
    %1385 = vmatprep.subr.mxu0 0.0
    %1386 = vmatpush1.xpose.msra.mxu0 0.0
    %1387 = vmatprep.subr.mxu0 0.0
    %1388 = vmatpush1.xpose.msra.mxu0 0.0
    %1389 = vmatprep.subr.mxu0 0.0
    %1390 = vmatpush1.xpose.msra.mxu0 0.0
    %1391 = vmatprep.subr.mxu0 0.0
    %1392 = vmatpush1.xpose.msra.mxu0 0.0
    %1393 = vmatprep.subr.mxu0 0.0
    %1394 = vmatpush1.xpose.msra.mxu0 0.0
    %1395 = vmatprep.subr.mxu0 0.0
    %1396 = vmatpush1.xpose.msra.mxu0 0.0
    %1397 = vmatprep.subr.mxu0 0.0
    %1398 = vmatpush1.xpose.msra.mxu0 0.0
    %1399 = vmatprep.subr.mxu0 0.0
    %1400 = vmatpush1.xpose.msra.mxu0 0.0
    %1401 = vmatprep.subr.mxu0 0.0
    %1402 = vmatpush1.xpose.msra.mxu0 0.0
    %1403 = vmatprep.subr.mxu0 0.0
    %1404 = vmatpush1.xpose.msra.mxu0 0.0
    %1405 = vmatprep.subr.mxu0 0.0
    %1406 = vmatpush1.xpose.msra.mxu0 0.0
    %1407 = vmatprep.subr.mxu0 0.0
    %1408 = vmatpush1.xpose.msra.mxu0 0.0
    %1409 = vmatprep.subr.mxu0 0.0
    %1410 = vmatpush1.xpose.msra.mxu0 0.0
    %1411 = vmatprep.mubr.f32.mxu0 0.0
    %1412 = vmatmul.mubr.f32.gmra.mrb[0].mxu0 %v93
    %v1413 = vpop.f32.mrb[0].mxu0
    %v1414 = vadd.f32 0.0, %v1413
    %v1415 = vpop.f32.mrb[0].mxu0
    %1416 = vdwg.mxu0
    %s1417 = sadd.s32 %s95, 96
    %v1418 = vstv %s1417
    %v1419 = vadd.s32 %v1418, %v97
    %vm1420 = vcmp.lt.s32.totalorder %v1419, 200
    %v1421 = vld [vmem:[#allocation2] sm:$0x1]
    %v1422 = vsub.f32 0.0, %v1344
    %v1423 = vmax.f32 %v1422, 0.0
    %v1424 = vand.u32 2147483647, %v1422
    %v1425 = vsub.f32 0.0, %v1424
    %v1426 = vmul.f32 %v1425, 1.442695
    %v1427 = vpow.pop %v1426
    %v1428 = vadd.f32 %v1427, 1.0
    %v1429 = vlog2.pop %v1428
    %v1430 = vmul.f32 %v1429, 0.6931472
    %v1431 = vmul.f32 -0.5, %v1427
    %v1432 = vadd.f32 %v1431, 1.0
    %v1433 = vmul.f32 %v1432, %v1427
    %v1434 = vand.u32 2147483647, %v1427
    %vm1435 = vcmp.lt.f32.partialorder %v1434, 0.0004427343
    %v1436 = vsel %vm1435, %v1433, %v1430
    %v1437 = vadd.f32 %v1423, %v1436
    %v1438 = vsel %vm1420, %v1437, 0.0
    %v1439 = vadd.f32 %v1421, %v1438
    %1440 = vst.msk [vmem:[#allocation2] sm:$0x1] %vm269, %v1439
    %v1441 = vld [vmem:[#allocation3] sm:$0x1]
    %v1442 = vsub.f32 0.0, %v1414
    %v1443 = vmax.f32 %v1442, 0.0
    %v1444 = vand.u32 2147483647, %v1442
    %v1445 = vsub.f32 0.0, %v1444
    %v1446 = vmul.f32 %v1445, 1.442695
    %v1447 = vpow.pop %v1446
    %v1448 = vadd.f32 %v1447, 1.0
    %v1449 = vlog2.pop %v1448
    %v1450 = vmul.f32 %v1449, 0.6931472
    %v1451 = vmul.f32 -0.5, %v1447
    %v1452 = vadd.f32 %v1451, 1.0
    %v1453 = vmul.f32 %v1452, %v1447
    %v1454 = vand.u32 2147483647, %v1447
    %vm1455 = vcmp.lt.f32.partialorder %v1454, 0.0004427343
    %v1456 = vsel %vm1455, %v1453, %v1450
    %v1457 = vadd.f32 %v1443, %v1456
    %v1458 = vadd.f32 %v1457, %v1414
    %v1459 = vsel %vm1420, %v1458, 0.0
    %v1460 = vadd.f32 %v1441, %v1459
    %1461 = vst.msk [vmem:[#allocation3] sm:$0x1] %vm269, %v1460
    %s1462 = scalar_lea.vmem [#allocation7], 56
    %v1463 = vld [vmem:[%s1462] sm:$0xf]
    %v1464 = vld [vmem:[%s1462 + $0x4] sm:$0xf]
    %v1465 = vunpack.c.l.bf16 %v1463
    %v1466 = vunpack.c.l.bf16 %v1464
    %s1467 = scalar_lea.vmem [#allocation9], 56
    %v1468 = vld [vmem:[%s1467] sm:$0xf]
    %v1469 = vld [vmem:[%s1467 + $0x4] sm:$0xf]
    %v1470 = vunpack.c.l.bf16 %v1468
    %v1471 = vunpack.c.l.bf16 %v1469
    %1472 = vmatprep.subr.mxu0 0.0
    %1473 = vmatpush1.xpose.msra.mxu0 %v1465
    %1474 = vmatprep.subr.mxu0 0.0
    %1475 = vmatpush1.xpose.msra.mxu0 %v1466
    %1476 = vmatprep.subr.mxu0 0.0
    %1477 = vmatpush1.xpose.msra.mxu0 0.0
    %1478 = vmatprep.subr.mxu0 0.0
    %1479 = vmatpush1.xpose.msra.mxu0 0.0
    %1480 = vmatprep.subr.mxu0 0.0
    %1481 = vmatpush1.xpose.msra.mxu0 0.0
    %1482 = vmatprep.subr.mxu0 0.0
    %1483 = vmatpush1.xpose.msra.mxu0 0.0
    %1484 = vmatprep.subr.mxu0 0.0
    %1485 = vmatpush1.xpose.msra.mxu0 0.0
    %1486 = vmatprep.subr.mxu0 0.0
    %1487 = vmatpush1.xpose.msra.mxu0 0.0
    %1488 = vmatprep.subr.mxu0 0.0
    %1489 = vmatpush1.xpose.msra.mxu0 0.0
    %1490 = vmatprep.subr.mxu0 0.0
    %1491 = vmatpush1.xpose.msra.mxu0 0.0
    %1492 = vmatprep.subr.mxu0 0.0
    %1493 = vmatpush1.xpose.msra.mxu0 0.0
    %1494 = vmatprep.subr.mxu0 0.0
    %1495 = vmatpush1.xpose.msra.mxu0 0.0
    %1496 = vmatprep.subr.mxu0 0.0
    %1497 = vmatpush1.xpose.msra.mxu0 0.0
    %1498 = vmatprep.subr.mxu0 0.0
    %1499 = vmatpush1.xpose.msra.mxu0 0.0
    %1500 = vmatprep.subr.mxu0 0.0
    %1501 = vmatpush1.xpose.msra.mxu0 0.0
    %1502 = vmatprep.subr.mxu0 0.0
    %1503 = vmatpush1.xpose.msra.mxu0 0.0
    %1504 = vmatprep.subr.mxu0 0.0
    %1505 = vmatpush1.xpose.msra.mxu0 0.0
    %1506 = vmatprep.subr.mxu0 0.0
    %1507 = vmatpush1.xpose.msra.mxu0 0.0
    %1508 = vmatprep.subr.mxu0 0.0
    %1509 = vmatpush1.xpose.msra.mxu0 0.0
    %1510 = vmatprep.subr.mxu0 0.0
    %1511 = vmatpush1.xpose.msra.mxu0 0.0
    %1512 = vmatprep.subr.mxu0 0.0
    %1513 = vmatpush1.xpose.msra.mxu0 0.0
    %1514 = vmatprep.subr.mxu0 0.0
    %1515 = vmatpush1.xpose.msra.mxu0 0.0
    %1516 = vmatprep.subr.mxu0 0.0
    %1517 = vmatpush1.xpose.msra.mxu0 0.0
    %1518 = vmatprep.subr.mxu0 0.0
    %1519 = vmatpush1.xpose.msra.mxu0 0.0
    %1520 = vmatprep.subr.mxu0 0.0
    %1521 = vmatpush1.xpose.msra.mxu0 0.0
    %1522 = vmatprep.subr.mxu0 0.0
    %1523 = vmatpush1.xpose.msra.mxu0 0.0
    %1524 = vmatprep.subr.mxu0 0.0
    %1525 = vmatpush1.xpose.msra.mxu0 0.0
    %1526 = vmatprep.subr.mxu0 0.0
    %1527 = vmatpush1.xpose.msra.mxu0 0.0
    %1528 = vmatprep.subr.mxu0 0.0
    %1529 = vmatpush1.xpose.msra.mxu0 0.0
    %1530 = vmatprep.subr.mxu0 0.0
    %1531 = vmatpush1.xpose.msra.mxu0 0.0
    %1532 = vmatprep.subr.mxu0 0.0
    %1533 = vmatpush1.xpose.msra.mxu0 0.0
    %1534 = vmatprep.subr.mxu0 0.0
    %1535 = vmatpush1.xpose.msra.mxu0 0.0
    %1536 = vmatprep.mubr.f32.mxu0 0.0
    %1537 = vmatmul.mubr.f32.gmra.mrb[0].mxu0 %v93
    %v1538 = vpop.f32.mrb[0].mxu0
    %v1539 = vadd.f32 0.0, %v1538
    %v1540 = vpop.f32.mrb[0].mxu0
    %1541 = vdwg.mxu0
    %1542 = vmatprep.subr.mxu0 0.0
    %1543 = vmatpush1.xpose.msra.mxu0 %v1470
    %1544 = vmatprep.subr.mxu0 0.0
    %1545 = vmatpush1.xpose.msra.mxu0 %v1471
    %1546 = vmatprep.subr.mxu0 0.0
    %1547 = vmatpush1.xpose.msra.mxu0 0.0
    %1548 = vmatprep.subr.mxu0 0.0
    %1549 = vmatpush1.xpose.msra.mxu0 0.0
    %1550 = vmatprep.subr.mxu0 0.0
    %1551 = vmatpush1.xpose.msra.mxu0 0.0
    %1552 = vmatprep.subr.mxu0 0.0
    %1553 = vmatpush1.xpose.msra.mxu0 0.0
    %1554 = vmatprep.subr.mxu0 0.0
    %1555 = vmatpush1.xpose.msra.mxu0 0.0
    %1556 = vmatprep.subr.mxu0 0.0
    %1557 = vmatpush1.xpose.msra.mxu0 0.0
    %1558 = vmatprep.subr.mxu0 0.0
    %1559 = vmatpush1.xpose.msra.mxu0 0.0
    %1560 = vmatprep.subr.mxu0 0.0
    %1561 = vmatpush1.xpose.msra.mxu0 0.0
    %1562 = vmatprep.subr.mxu0 0.0
    %1563 = vmatpush1.xpose.msra.mxu0 0.0
    %1564 = vmatprep.subr.mxu0 0.0
    %1565 = vmatpush1.xpose.msra.mxu0 0.0
    %1566 = vmatprep.subr.mxu0 0.0
    %1567 = vmatpush1.xpose.msra.mxu0 0.0
    %1568 = vmatprep.subr.mxu0 0.0
    %1569 = vmatpush1.xpose.msra.mxu0 0.0
    %1570 = vmatprep.subr.mxu0 0.0
    %1571 = vmatpush1.xpose.msra.mxu0 0.0
    %1572 = vmatprep.subr.mxu0 0.0
    %1573 = vmatpush1.xpose.msra.mxu0 0.0
    %1574 = vmatprep.subr.mxu0 0.0
    %1575 = vmatpush1.xpose.msra.mxu0 0.0
    %1576 = vmatprep.subr.mxu0 0.0
    %1577 = vmatpush1.xpose.msra.mxu0 0.0
    %1578 = vmatprep.subr.mxu0 0.0
    %1579 = vmatpush1.xpose.msra.mxu0 0.0
    %1580 = vmatprep.subr.mxu0 0.0
    %1581 = vmatpush1.xpose.msra.mxu0 0.0
    %1582 = vmatprep.subr.mxu0 0.0
    %1583 = vmatpush1.xpose.msra.mxu0 0.0
    %1584 = vmatprep.subr.mxu0 0.0
    %1585 = vmatpush1.xpose.msra.mxu0 0.0
    %1586 = vmatprep.subr.mxu0 0.0
    %1587 = vmatpush1.xpose.msra.mxu0 0.0
    %1588 = vmatprep.subr.mxu0 0.0
    %1589 = vmatpush1.xpose.msra.mxu0 0.0
    %1590 = vmatprep.subr.mxu0 0.0
    %1591 = vmatpush1.xpose.msra.mxu0 0.0
    %1592 = vmatprep.subr.mxu0 0.0
    %1593 = vmatpush1.xpose.msra.mxu0 0.0
    %1594 = vmatprep.subr.mxu0 0.0
    %1595 = vmatpush1.xpose.msra.mxu0 0.0
    %1596 = vmatprep.subr.mxu0 0.0
    %1597 = vmatpush1.xpose.msra.mxu0 0.0
    %1598 = vmatprep.subr.mxu0 0.0
    %1599 = vmatpush1.xpose.msra.mxu0 0.0
    %1600 = vmatprep.subr.mxu0 0.0
    %1601 = vmatpush1.xpose.msra.mxu0 0.0
    %1602 = vmatprep.subr.mxu0 0.0
    %1603 = vmatpush1.xpose.msra.mxu0 0.0
    %1604 = vmatprep.subr.mxu0 0.0
    %1605 = vmatpush1.xpose.msra.mxu0 0.0
    %1606 = vmatprep.mubr.f32.mxu0 0.0
    %1607 = vmatmul.mubr.f32.gmra.mrb[0].mxu0 %v93
    %v1608 = vpop.f32.mrb[0].mxu0
    %v1609 = vadd.f32 0.0, %v1608
    %v1610 = vpop.f32.mrb[0].mxu0
    %1611 = vdwg.mxu0
    %s1612 = sadd.s32 %s95, 112
    %v1613 = vstv %s1612
    %v1614 = vadd.s32 %v1613, %v97
    %vm1615 = vcmp.lt.s32.totalorder %v1614, 200
    %v1616 = vld [vmem:[#allocation2] sm:$0x1]
    %v1617 = vsub.f32 0.0, %v1539
    %v1618 = vmax.f32 %v1617, 0.0
    %v1619 = vand.u32 2147483647, %v1617
    %v1620 = vsub.f32 0.0, %v1619
    %v1621 = vmul.f32 %v1620, 1.442695
    %v1622 = vpow.pop %v1621
    %v1623 = vadd.f32 %v1622, 1.0
    %v1624 = vlog2.pop %v1623
    %v1625 = vmul.f32 %v1624, 0.6931472
    %v1626 = vmul.f32 -0.5, %v1622
    %v1627 = vadd.f32 %v1626, 1.0
    %v1628 = vmul.f32 %v1627, %v1622
    %v1629 = vand.u32 2147483647, %v1622
    %vm1630 = vcmp.lt.f32.partialorder %v1629, 0.0004427343
    %v1631 = vsel %vm1630, %v1628, %v1625
    %v1632 = vadd.f32 %v1618, %v1631
    %v1633 = vsel %vm1615, %v1632, 0.0
    %v1634 = vadd.f32 %v1616, %v1633
    %1635 = vst.msk [vmem:[#allocation2] sm:$0x1] %vm269, %v1634
    %v1636 = vld [vmem:[#allocation3] sm:$0x1]
    %v1637 = vsub.f32 0.0, %v1609
    %v1638 = vmax.f32 %v1637, 0.0
    %v1639 = vand.u32 2147483647, %v1637
    %v1640 = vsub.f32 0.0, %v1639
    %v1641 = vmul.f32 %v1640, 1.442695
    %v1642 = vpow.pop %v1641
    %v1643 = vadd.f32 %v1642, 1.0
    %v1644 = vlog2.pop %v1643
    %v1645 = vmul.f32 %v1644, 0.6931472
    %v1646 = vmul.f32 -0.5, %v1642
    %v1647 = vadd.f32 %v1646, 1.0
    %v1648 = vmul.f32 %v1647, %v1642
    %v1649 = vand.u32 2147483647, %v1642
    %vm1650 = vcmp.lt.f32.partialorder %v1649, 0.0004427343
    %v1651 = vsel %vm1650, %v1648, %v1645
    %v1652 = vadd.f32 %v1638, %v1651
    %v1653 = vadd.f32 %v1652, %v1609
    %v1654 = vsel %vm1615, %v1653, 0.0
    %v1655 = vadd.f32 %v1636, %v1654
    %1656 = vst.msk [vmem:[#allocation3] sm:$0x1] %vm269, %v1655
    %s1657 = scalar_lea.vmem [#allocation7], 64
    %v1658 = vld [vmem:[%s1657] sm:$0xf]
    %v1659 = vld [vmem:[%s1657 + $0x4] sm:$0xf]
    %v1660 = vunpack.c.l.bf16 %v1658
    %v1661 = vunpack.c.l.bf16 %v1659
    %s1662 = scalar_lea.vmem [#allocation9], 64
    %v1663 = vld [vmem:[%s1662] sm:$0xf]
    %v1664 = vld [vmem:[%s1662 + $0x4] sm:$0xf]
    %v1665 = vunpack.c.l.bf16 %v1663
    %v1666 = vunpack.c.l.bf16 %v1664
    %1667 = vmatprep.subr.mxu0 0.0
    %1668 = vmatpush1.xpose.msra.mxu0 %v1660
    %1669 = vmatprep.subr.mxu0 0.0
    %1670 = vmatpush1.xpose.msra.mxu0 %v1661
    %1671 = vmatprep.subr.mxu0 0.0
    %1672 = vmatpush1.xpose.msra.mxu0 0.0
    %1673 = vmatprep.subr.mxu0 0.0
    %1674 = vmatpush1.xpose.msra.mxu0 0.0
    %1675 = vmatprep.subr.mxu0 0.0
    %1676 = vmatpush1.xpose.msra.mxu0 0.0
    %1677 = vmatprep.subr.mxu0 0.0
    %1678 = vmatpush1.xpose.msra.mxu0 0.0
    %1679 = vmatprep.subr.mxu0 0.0
    %1680 = vmatpush1.xpose.msra.mxu0 0.0
    %1681 = vmatprep.subr.mxu0 0.0
    %1682 = vmatpush1.xpose.msra.mxu0 0.0
    %1683 = vmatprep.subr.mxu0 0.0
    %1684 = vmatpush1.xpose.msra.mxu0 0.0
    %1685 = vmatprep.subr.mxu0 0.0
    %1686 = vmatpush1.xpose.msra.mxu0 0.0
    %1687 = vmatprep.subr.mxu0 0.0
    %1688 = vmatpush1.xpose.msra.mxu0 0.0
    %1689 = vmatprep.subr.mxu0 0.0
    %1690 = vmatpush1.xpose.msra.mxu0 0.0
    %1691 = vmatprep.subr.mxu0 0.0
    %1692 = vmatpush1.xpose.msra.mxu0 0.0
    %1693 = vmatprep.subr.mxu0 0.0
    %1694 = vmatpush1.xpose.msra.mxu0 0.0
    %1695 = vmatprep.subr.mxu0 0.0
    %1696 = vmatpush1.xpose.msra.mxu0 0.0
    %1697 = vmatprep.subr.mxu0 0.0
    %1698 = vmatpush1.xpose.msra.mxu0 0.0
    %1699 = vmatprep.subr.mxu0 0.0
    %1700 = vmatpush1.xpose.msra.mxu0 0.0
    %1701 = vmatprep.subr.mxu0 0.0
    %1702 = vmatpush1.xpose.msra.mxu0 0.0
    %1703 = vmatprep.subr.mxu0 0.0
    %1704 = vmatpush1.xpose.msra.mxu0 0.0
    %1705 = vmatprep.subr.mxu0 0.0
    %1706 = vmatpush1.xpose.msra.mxu0 0.0
    %1707 = vmatprep.subr.mxu0 0.0
    %1708 = vmatpush1.xpose.msra.mxu0 0.0
    %1709 = vmatprep.subr.mxu0 0.0
    %1710 = vmatpush1.xpose.msra.mxu0 0.0
    %1711 = vmatprep.subr.mxu0 0.0
    %1712 = vmatpush1.xpose.msra.mxu0 0.0
    %1713 = vmatprep.subr.mxu0 0.0
    %1714 = vmatpush1.xpose.msra.mxu0 0.0
    %1715 = vmatprep.subr.mxu0 0.0
    %1716 = vmatpush1.xpose.msra.mxu0 0.0
    %1717 = vmatprep.subr.mxu0 0.0
    %1718 = vmatpush1.xpose.msra.mxu0 0.0
    %1719 = vmatprep.subr.mxu0 0.0
    %1720 = vmatpush1.xpose.msra.mxu0 0.0
    %1721 = vmatprep.subr.mxu0 0.0
    %1722 = vmatpush1.xpose.msra.mxu0 0.0
    %1723 = vmatprep.subr.mxu0 0.0
    %1724 = vmatpush1.xpose.msra.mxu0 0.0
    %1725 = vmatprep.subr.mxu0 0.0
    %1726 = vmatpush1.xpose.msra.mxu0 0.0
    %1727 = vmatprep.subr.mxu0 0.0
    %1728 = vmatpush1.xpose.msra.mxu0 0.0
    %1729 = vmatprep.subr.mxu0 0.0
    %1730 = vmatpush1.xpose.msra.mxu0 0.0
    %1731 = vmatprep.mubr.f32.mxu0 0.0
    %1732 = vmatmul.mubr.f32.gmra.mrb[0].mxu0 %v93
    %v1733 = vpop.f32.mrb[0].mxu0
    %v1734 = vadd.f32 0.0, %v1733
    %v1735 = vpop.f32.mrb[0].mxu0
    %1736 = vdwg.mxu0
    %1737 = vmatprep.subr.mxu0 0.0
    %1738 = vmatpush1.xpose.msra.mxu0 %v1665
    %1739 = vmatprep.subr.mxu0 0.0
    %1740 = vmatpush1.xpose.msra.mxu0 %v1666
    %1741 = vmatprep.subr.mxu0 0.0
    %1742 = vmatpush1.xpose.msra.mxu0 0.0
    %1743 = vmatprep.subr.mxu0 0.0
    %1744 = vmatpush1.xpose.msra.mxu0 0.0
    %1745 = vmatprep.subr.mxu0 0.0
    %1746 = vmatpush1.xpose.msra.mxu0 0.0
    %1747 = vmatprep.subr.mxu0 0.0
    %1748 = vmatpush1.xpose.msra.mxu0 0.0
    %1749 = vmatprep.subr.mxu0 0.0
    %1750 = vmatpush1.xpose.msra.mxu0 0.0
    %1751 = vmatprep.subr.mxu0 0.0
    %1752 = vmatpush1.xpose.msra.mxu0 0.0
    %1753 = vmatprep.subr.mxu0 0.0
    %1754 = vmatpush1.xpose.msra.mxu0 0.0
    %1755 = vmatprep.subr.mxu0 0.0
    %1756 = vmatpush1.xpose.msra.mxu0 0.0
    %1757 = vmatprep.subr.mxu0 0.0
    %1758 = vmatpush1.xpose.msra.mxu0 0.0
    %1759 = vmatprep.subr.mxu0 0.0
    %1760 = vmatpush1.xpose.msra.mxu0 0.0
    %1761 = vmatprep.subr.mxu0 0.0
    %1762 = vmatpush1.xpose.msra.mxu0 0.0
    %1763 = vmatprep.subr.mxu0 0.0
    %1764 = vmatpush1.xpose.msra.mxu0 0.0
    %1765 = vmatprep.subr.mxu0 0.0
    %1766 = vmatpush1.xpose.msra.mxu0 0.0
    %1767 = vmatprep.subr.mxu0 0.0
    %1768 = vmatpush1.xpose.msra.mxu0 0.0
    %1769 = vmatprep.subr.mxu0 0.0
    %1770 = vmatpush1.xpose.msra.mxu0 0.0
    %1771 = vmatprep.subr.mxu0 0.0
    %1772 = vmatpush1.xpose.msra.mxu0 0.0
    %1773 = vmatprep.subr.mxu0 0.0
    %1774 = vmatpush1.xpose.msra.mxu0 0.0
    %1775 = vmatprep.subr.mxu0 0.0
    %1776 = vmatpush1.xpose.msra.mxu0 0.0
    %1777 = vmatprep.subr.mxu0 0.0
    %1778 = vmatpush1.xpose.msra.mxu0 0.0
    %1779 = vmatprep.subr.mxu0 0.0
    %1780 = vmatpush1.xpose.msra.mxu0 0.0
    %1781 = vmatprep.subr.mxu0 0.0
    %1782 = vmatpush1.xpose.msra.mxu0 0.0
    %1783 = vmatprep.subr.mxu0 0.0
    %1784 = vmatpush1.xpose.msra.mxu0 0.0
    %1785 = vmatprep.subr.mxu0 0.0
    %1786 = vmatpush1.xpose.msra.mxu0 0.0
    %1787 = vmatprep.subr.mxu0 0.0
    %1788 = vmatpush1.xpose.msra.mxu0 0.0
    %1789 = vmatprep.subr.mxu0 0.0
    %1790 = vmatpush1.xpose.msra.mxu0 0.0
    %1791 = vmatprep.subr.mxu0 0.0
    %1792 = vmatpush1.xpose.msra.mxu0 0.0
    %1793 = vmatprep.subr.mxu0 0.0
    %1794 = vmatpush1.xpose.msra.mxu0 0.0
    %1795 = vmatprep.subr.mxu0 0.0
    %1796 = vmatpush1.xpose.msra.mxu0 0.0
    %1797 = vmatprep.subr.mxu0 0.0
    %1798 = vmatpush1.xpose.msra.mxu0 0.0
    %1799 = vmatprep.subr.mxu0 0.0
    %1800 = vmatpush1.xpose.msra.mxu0 0.0
    %1801 = vmatprep.mubr.f32.mxu0 0.0
    %1802 = vmatmul.mubr.f32.gmra.mrb[0].mxu0 %v93
    %v1803 = vpop.f32.mrb[0].mxu0
    %v1804 = vadd.f32 0.0, %v1803
    %v1805 = vpop.f32.mrb[0].mxu0
    %1806 = vdwg.mxu0
    %s1807 = sadd.s32 %s95, 128
    %v1808 = vstv %s1807
    %v1809 = vadd.s32 %v1808, %v97
    %vm1810 = vcmp.lt.s32.totalorder %v1809, 200
    %v1811 = vld [vmem:[#allocation2] sm:$0x1]
    %v1812 = vsub.f32 0.0, %v1734
    %v1813 = vmax.f32 %v1812, 0.0
    %v1814 = vand.u32 2147483647, %v1812
    %v1815 = vsub.f32 0.0, %v1814
    %v1816 = vmul.f32 %v1815, 1.442695
    %v1817 = vpow.pop %v1816
    %v1818 = vadd.f32 %v1817, 1.0
    %v1819 = vlog2.pop %v1818
    %v1820 = vmul.f32 %v1819, 0.6931472
    %v1821 = vmul.f32 -0.5, %v1817
    %v1822 = vadd.f32 %v1821, 1.0
    %v1823 = vmul.f32 %v1822, %v1817
    %v1824 = vand.u32 2147483647, %v1817
    %vm1825 = vcmp.lt.f32.partialorder %v1824, 0.0004427343
    %v1826 = vsel %vm1825, %v1823, %v1820
    %v1827 = vadd.f32 %v1813, %v1826
    %v1828 = vsel %vm1810, %v1827, 0.0
    %v1829 = vadd.f32 %v1811, %v1828
    %1830 = vst.msk [vmem:[#allocation2] sm:$0x1] %vm269, %v1829
    %v1831 = vld [vmem:[#allocation3] sm:$0x1]
    %v1832 = vsub.f32 0.0, %v1804
    %v1833 = vmax.f32 %v1832, 0.0
    %v1834 = vand.u32 2147483647, %v1832
    %v1835 = vsub.f32 0.0, %v1834
    %v1836 = vmul.f32 %v1835, 1.442695
    %v1837 = vpow.pop %v1836
    %v1838 = vadd.f32 %v1837, 1.0
    %v1839 = vlog2.pop %v1838
    %v1840 = vmul.f32 %v1839, 0.6931472
    %v1841 = vmul.f32 -0.5, %v1837
    %v1842 = vadd.f32 %v1841, 1.0
    %v1843 = vmul.f32 %v1842, %v1837
    %v1844 = vand.u32 2147483647, %v1837
    %vm1845 = vcmp.lt.f32.partialorder %v1844, 0.0004427343
    %v1846 = vsel %vm1845, %v1843, %v1840
    %v1847 = vadd.f32 %v1833, %v1846
    %v1848 = vadd.f32 %v1847, %v1804
    %v1849 = vsel %vm1810, %v1848, 0.0
    %v1850 = vadd.f32 %v1831, %v1849
    %1851 = vst.msk [vmem:[#allocation3] sm:$0x1] %vm269, %v1850
    %s1852 = scalar_lea.vmem [#allocation7], 72
    %v1853 = vld [vmem:[%s1852] sm:$0xf]
    %v1854 = vld [vmem:[%s1852 + $0x4] sm:$0xf]
    %v1855 = vunpack.c.l.bf16 %v1853
    %v1856 = vunpack.c.l.bf16 %v1854
    %s1857 = scalar_lea.vmem [#allocation9], 72
    %v1858 = vld [vmem:[%s1857] sm:$0xf]
    %v1859 = vld [vmem:[%s1857 + $0x4] sm:$0xf]
    %v1860 = vunpack.c.l.bf16 %v1858
    %v1861 = vunpack.c.l.bf16 %v1859
    %1862 = vmatprep.subr.mxu0 0.0
    %1863 = vmatpush1.xpose.msra.mxu0 %v1855
    %1864 = vmatprep.subr.mxu0 0.0
    %1865 = vmatpush1.xpose.msra.mxu0 %v1856
    %1866 = vmatprep.subr.mxu0 0.0
    %1867 = vmatpush1.xpose.msra.mxu0 0.0
    %1868 = vmatprep.subr.mxu0 0.0
    %1869 = vmatpush1.xpose.msra.mxu0 0.0
    %1870 = vmatprep.subr.mxu0 0.0
    %1871 = vmatpush1.xpose.msra.mxu0 0.0
    %1872 = vmatprep.subr.mxu0 0.0
    %1873 = vmatpush1.xpose.msra.mxu0 0.0
    %1874 = vmatprep.subr.mxu0 0.0
    %1875 = vmatpush1.xpose.msra.mxu0 0.0
    %1876 = vmatprep.subr.mxu0 0.0
    %1877 = vmatpush1.xpose.msra.mxu0 0.0
    %1878 = vmatprep.subr.mxu0 0.0
    %1879 = vmatpush1.xpose.msra.mxu0 0.0
    %1880 = vmatprep.subr.mxu0 0.0
    %1881 = vmatpush1.xpose.msra.mxu0 0.0
    %1882 = vmatprep.subr.mxu0 0.0
    %1883 = vmatpush1.xpose.msra.mxu0 0.0
    %1884 = vmatprep.subr.mxu0 0.0
    %1885 = vmatpush1.xpose.msra.mxu0 0.0
    %1886 = vmatprep.subr.mxu0 0.0
    %1887 = vmatpush1.xpose.msra.mxu0 0.0
    %1888 = vmatprep.subr.mxu0 0.0
    %1889 = vmatpush1.xpose.msra.mxu0 0.0
    %1890 = vmatprep.subr.mxu0 0.0
    %1891 = vmatpush1.xpose.msra.mxu0 0.0
    %1892 = vmatprep.subr.mxu0 0.0
    %1893 = vmatpush1.xpose.msra.mxu0 0.0
    %1894 = vmatprep.subr.mxu0 0.0
    %1895 = vmatpush1.xpose.msra.mxu0 0.0
    %1896 = vmatprep.subr.mxu0 0.0
    %1897 = vmatpush1.xpose.msra.mxu0 0.0
    %1898 = vmatprep.subr.mxu0 0.0
    %1899 = vmatpush1.xpose.msra.mxu0 0.0
    %1900 = vmatprep.subr.mxu0 0.0
    %1901 = vmatpush1.xpose.msra.mxu0 0.0
    %1902 = vmatprep.subr.mxu0 0.0
    %1903 = vmatpush1.xpose.msra.mxu0 0.0
    %1904 = vmatprep.subr.mxu0 0.0
    %1905 = vmatpush1.xpose.msra.mxu0 0.0
    %1906 = vmatprep.subr.mxu0 0.0
    %1907 = vmatpush1.xpose.msra.mxu0 0.0
    %1908 = vmatprep.subr.mxu0 0.0
    %1909 = vmatpush1.xpose.msra.mxu0 0.0
    %1910 = vmatprep.subr.mxu0 0.0
    %1911 = vmatpush1.xpose.msra.mxu0 0.0
    %1912 = vmatprep.subr.mxu0 0.0
    %1913 = vmatpush1.xpose.msra.mxu0 0.0
    %1914 = vmatprep.subr.mxu0 0.0
    %1915 = vmatpush1.xpose.msra.mxu0 0.0
    %1916 = vmatprep.subr.mxu0 0.0
    %1917 = vmatpush1.xpose.msra.mxu0 0.0
    %1918 = vmatprep.subr.mxu0 0.0
    %1919 = vmatpush1.xpose.msra.mxu0 0.0
    %1920 = vmatprep.subr.mxu0 0.0
    %1921 = vmatpush1.xpose.msra.mxu0 0.0
    %1922 = vmatprep.subr.mxu0 0.0
    %1923 = vmatpush1.xpose.msra.mxu0 0.0
    %1924 = vmatprep.subr.mxu0 0.0
    %1925 = vmatpush1.xpose.msra.mxu0 0.0
    %1926 = vmatprep.mubr.f32.mxu0 0.0
    %1927 = vmatmul.mubr.f32.gmra.mrb[0].mxu0 %v93
    %v1928 = vpop.f32.mrb[0].mxu0
    %v1929 = vadd.f32 0.0, %v1928
    %v1930 = vpop.f32.mrb[0].mxu0
    %1931 = vdwg.mxu0
    %1932 = vmatprep.subr.mxu0 0.0
    %1933 = vmatpush1.xpose.msra.mxu0 %v1860
    %1934 = vmatprep.subr.mxu0 0.0
    %1935 = vmatpush1.xpose.msra.mxu0 %v1861
    %1936 = vmatprep.subr.mxu0 0.0
    %1937 = vmatpush1.xpose.msra.mxu0 0.0
    %1938 = vmatprep.subr.mxu0 0.0
    %1939 = vmatpush1.xpose.msra.mxu0 0.0
    %1940 = vmatprep.subr.mxu0 0.0
    %1941 = vmatpush1.xpose.msra.mxu0 0.0
    %1942 = vmatprep.subr.mxu0 0.0
    %1943 = vmatpush1.xpose.msra.mxu0 0.0
    %1944 = vmatprep.subr.mxu0 0.0
    %1945 = vmatpush1.xpose.msra.mxu0 0.0
    %1946 = vmatprep.subr.mxu0 0.0
    %1947 = vmatpush1.xpose.msra.mxu0 0.0
    %1948 = vmatprep.subr.mxu0 0.0
    %1949 = vmatpush1.xpose.msra.mxu0 0.0
    %1950 = vmatprep.subr.mxu0 0.0
    %1951 = vmatpush1.xpose.msra.mxu0 0.0
    %1952 = vmatprep.subr.mxu0 0.0
    %1953 = vmatpush1.xpose.msra.mxu0 0.0
    %1954 = vmatprep.subr.mxu0 0.0
    %1955 = vmatpush1.xpose.msra.mxu0 0.0
    %1956 = vmatprep.subr.mxu0 0.0
    %1957 = vmatpush1.xpose.msra.mxu0 0.0
    %1958 = vmatprep.subr.mxu0 0.0
    %1959 = vmatpush1.xpose.msra.mxu0 0.0
    %1960 = vmatprep.subr.mxu0 0.0
    %1961 = vmatpush1.xpose.msra.mxu0 0.0
    %1962 = vmatprep.subr.mxu0 0.0
    %1963 = vmatpush1.xpose.msra.mxu0 0.0
    %1964 = vmatprep.subr.mxu0 0.0
    %1965 = vmatpush1.xpose.msra.mxu0 0.0
    %1966 = vmatprep.subr.mxu0 0.0
    %1967 = vmatpush1.xpose.msra.mxu0 0.0
    %1968 = vmatprep.subr.mxu0 0.0
    %1969 = vmatpush1.xpose.msra.mxu0 0.0
    %1970 = vmatprep.subr.mxu0 0.0
    %1971 = vmatpush1.xpose.msra.mxu0 0.0
    %1972 = vmatprep.subr.mxu0 0.0
    %1973 = vmatpush1.xpose.msra.mxu0 0.0
    %1974 = vmatprep.subr.mxu0 0.0
    %1975 = vmatpush1.xpose.msra.mxu0 0.0
    %1976 = vmatprep.subr.mxu0 0.0
    %1977 = vmatpush1.xpose.msra.mxu0 0.0
    %1978 = vmatprep.subr.mxu0 0.0
    %1979 = vmatpush1.xpose.msra.mxu0 0.0
    %1980 = vmatprep.subr.mxu0 0.0
    %1981 = vmatpush1.xpose.msra.mxu0 0.0
    %1982 = vmatprep.subr.mxu0 0.0
    %1983 = vmatpush1.xpose.msra.mxu0 0.0
    %1984 = vmatprep.subr.mxu0 0.0
    %1985 = vmatpush1.xpose.msra.mxu0 0.0
    %1986 = vmatprep.subr.mxu0 0.0
    %1987 = vmatpush1.xpose.msra.mxu0 0.0
    %1988 = vmatprep.subr.mxu0 0.0
    %1989 = vmatpush1.xpose.msra.mxu0 0.0
    %1990 = vmatprep.subr.mxu0 0.0
    %1991 = vmatpush1.xpose.msra.mxu0 0.0
    %1992 = vmatprep.subr.mxu0 0.0
    %1993 = vmatpush1.xpose.msra.mxu0 0.0
    %1994 = vmatprep.subr.mxu0 0.0
    %1995 = vmatpush1.xpose.msra.mxu0 0.0
    %1996 = vmatprep.mubr.f32.mxu0 0.0
    %1997 = vmatmul.mubr.f32.gmra.mrb[0].mxu0 %v93
    %v1998 = vpop.f32.mrb[0].mxu0
    %v1999 = vadd.f32 0.0, %v1998
    %v2000 = vpop.f32.mrb[0].mxu0
    %2001 = vdwg.mxu0
    %s2002 = sadd.s32 %s95, 144
    %v2003 = vstv %s2002
    %v2004 = vadd.s32 %v2003, %v97
    %vm2005 = vcmp.lt.s32.totalorder %v2004, 200
    %v2006 = vld [vmem:[#allocation2] sm:$0x1]
    %v2007 = vsub.f32 0.0, %v1929
    %v2008 = vmax.f32 %v2007, 0.0
    %v2009 = vand.u32 2147483647, %v2007
    %v2010 = vsub.f32 0.0, %v2009
    %v2011 = vmul.f32 %v2010, 1.442695
    %v2012 = vpow.pop %v2011
    %v2013 = vadd.f32 %v2012, 1.0
    %v2014 = vlog2.pop %v2013
    %v2015 = vmul.f32 %v2014, 0.6931472
    %v2016 = vmul.f32 -0.5, %v2012
    %v2017 = vadd.f32 %v2016, 1.0
    %v2018 = vmul.f32 %v2017, %v2012
    %v2019 = vand.u32 2147483647, %v2012
    %vm2020 = vcmp.lt.f32.partialorder %v2019, 0.0004427343
    %v2021 = vsel %vm2020, %v2018, %v2015
    %v2022 = vadd.f32 %v2008, %v2021
    %v2023 = vsel %vm2005, %v2022, 0.0
    %v2024 = vadd.f32 %v2006, %v2023
    %2025 = vst.msk [vmem:[#allocation2] sm:$0x1] %vm269, %v2024
    %v2026 = vld [vmem:[#allocation3] sm:$0x1]
    %v2027 = vsub.f32 0.0, %v1999
    %v2028 = vmax.f32 %v2027, 0.0
    %v2029 = vand.u32 2147483647, %v2027
    %v2030 = vsub.f32 0.0, %v2029
    %v2031 = vmul.f32 %v2030, 1.442695
    %v2032 = vpow.pop %v2031
    %v2033 = vadd.f32 %v2032, 1.0
    %v2034 = vlog2.pop %v2033
    %v2035 = vmul.f32 %v2034, 0.6931472
    %v2036 = vmul.f32 -0.5, %v2032
    %v2037 = vadd.f32 %v2036, 1.0
    %v2038 = vmul.f32 %v2037, %v2032
    %v2039 = vand.u32 2147483647, %v2032
    %vm2040 = vcmp.lt.f32.partialorder %v2039, 0.0004427343
    %v2041 = vsel %vm2040, %v2038, %v2035
    %v2042 = vadd.f32 %v2028, %v2041
    %v2043 = vadd.f32 %v2042, %v1999
    %v2044 = vsel %vm2005, %v2043, 0.0
    %v2045 = vadd.f32 %v2026, %v2044
    %2046 = vst.msk [vmem:[#allocation3] sm:$0x1] %vm269, %v2045
    %s2047 = scalar_lea.vmem [#allocation7], 80
    %v2048 = vld [vmem:[%s2047] sm:$0xf]
    %v2049 = vld [vmem:[%s2047 + $0x4] sm:$0xf]
    %v2050 = vunpack.c.l.bf16 %v2048
    %v2051 = vunpack.c.l.bf16 %v2049
    %s2052 = scalar_lea.vmem [#allocation9], 80
    %v2053 = vld [vmem:[%s2052] sm:$0xf]
    %v2054 = vld [vmem:[%s2052 + $0x4] sm:$0xf]
    %v2055 = vunpack.c.l.bf16 %v2053
    %v2056 = vunpack.c.l.bf16 %v2054
    %2057 = vmatprep.subr.mxu0 0.0
    %2058 = vmatpush1.xpose.msra.mxu0 %v2050
    %2059 = vmatprep.subr.mxu0 0.0
    %2060 = vmatpush1.xpose.msra.mxu0 %v2051
    %2061 = vmatprep.subr.mxu0 0.0
    %2062 = vmatpush1.xpose.msra.mxu0 0.0
    %2063 = vmatprep.subr.mxu0 0.0
    %2064 = vmatpush1.xpose.msra.mxu0 0.0
    %2065 = vmatprep.subr.mxu0 0.0
    %2066 = vmatpush1.xpose.msra.mxu0 0.0
    %2067 = vmatprep.subr.mxu0 0.0
    %2068 = vmatpush1.xpose.msra.mxu0 0.0
    %2069 = vmatprep.subr.mxu0 0.0
    %2070 = vmatpush1.xpose.msra.mxu0 0.0
    %2071 = vmatprep.subr.mxu0 0.0
    %2072 = vmatpush1.xpose.msra.mxu0 0.0
    %2073 = vmatprep.subr.mxu0 0.0
    %2074 = vmatpush1.xpose.msra.mxu0 0.0
    %2075 = vmatprep.subr.mxu0 0.0
    %2076 = vmatpush1.xpose.msra.mxu0 0.0
    %2077 = vmatprep.subr.mxu0 0.0
    %2078 = vmatpush1.xpose.msra.mxu0 0.0
    %2079 = vmatprep.subr.mxu0 0.0
    %2080 = vmatpush1.xpose.msra.mxu0 0.0
    %2081 = vmatprep.subr.mxu0 0.0
    %2082 = vmatpush1.xpose.msra.mxu0 0.0
    %2083 = vmatprep.subr.mxu0 0.0
    %2084 = vmatpush1.xpose.msra.mxu0 0.0
    %2085 = vmatprep.subr.mxu0 0.0
    %2086 = vmatpush1.xpose.msra.mxu0 0.0
    %2087 = vmatprep.subr.mxu0 0.0
    %2088 = vmatpush1.xpose.msra.mxu0 0.0
    %2089 = vmatprep.subr.mxu0 0.0
    %2090 = vmatpush1.xpose.msra.mxu0 0.0
    %2091 = vmatprep.subr.mxu0 0.0
    %2092 = vmatpush1.xpose.msra.mxu0 0.0
    %2093 = vmatprep.subr.mxu0 0.0
    %2094 = vmatpush1.xpose.msra.mxu0 0.0
    %2095 = vmatprep.subr.mxu0 0.0
    %2096 = vmatpush1.xpose.msra.mxu0 0.0
    %2097 = vmatprep.subr.mxu0 0.0
    %2098 = vmatpush1.xpose.msra.mxu0 0.0
    %2099 = vmatprep.subr.mxu0 0.0
    %2100 = vmatpush1.xpose.msra.mxu0 0.0
    %2101 = vmatprep.subr.mxu0 0.0
    %2102 = vmatpush1.xpose.msra.mxu0 0.0
    %2103 = vmatprep.subr.mxu0 0.0
    %2104 = vmatpush1.xpose.msra.mxu0 0.0
    %2105 = vmatprep.subr.mxu0 0.0
    %2106 = vmatpush1.xpose.msra.mxu0 0.0
    %2107 = vmatprep.subr.mxu0 0.0
    %2108 = vmatpush1.xpose.msra.mxu0 0.0
    %2109 = vmatprep.subr.mxu0 0.0
    %2110 = vmatpush1.xpose.msra.mxu0 0.0
    %2111 = vmatprep.subr.mxu0 0.0
    %2112 = vmatpush1.xpose.msra.mxu0 0.0
    %2113 = vmatprep.subr.mxu0 0.0
    %2114 = vmatpush1.xpose.msra.mxu0 0.0
    %2115 = vmatprep.subr.mxu0 0.0
    %2116 = vmatpush1.xpose.msra.mxu0 0.0
    %2117 = vmatprep.subr.mxu0 0.0
    %2118 = vmatpush1.xpose.msra.mxu0 0.0
    %2119 = vmatprep.subr.mxu0 0.0
    %2120 = vmatpush1.xpose.msra.mxu0 0.0
    %2121 = vmatprep.mubr.f32.mxu0 0.0
    %2122 = vmatmul.mubr.f32.gmra.mrb[0].mxu0 %v93
    %v2123 = vpop.f32.mrb[0].mxu0
    %v2124 = vadd.f32 0.0, %v2123
    %v2125 = vpop.f32.mrb[0].mxu0
    %2126 = vdwg.mxu0
    %2127 = vmatprep.subr.mxu0 0.0
    %2128 = vmatpush1.xpose.msra.mxu0 %v2055
    %2129 = vmatprep.subr.mxu0 0.0
    %2130 = vmatpush1.xpose.msra.mxu0 %v2056
    %2131 = vmatprep.subr.mxu0 0.0
    %2132 = vmatpush1.xpose.msra.mxu0 0.0
    %2133 = vmatprep.subr.mxu0 0.0
    %2134 = vmatpush1.xpose.msra.mxu0 0.0
    %2135 = vmatprep.subr.mxu0 0.0
    %2136 = vmatpush1.xpose.msra.mxu0 0.0
    %2137 = vmatprep.subr.mxu0 0.0
    %2138 = vmatpush1.xpose.msra.mxu0 0.0
    %2139 = vmatprep.subr.mxu0 0.0
    %2140 = vmatpush1.xpose.msra.mxu0 0.0
    %2141 = vmatprep.subr.mxu0 0.0
    %2142 = vmatpush1.xpose.msra.mxu0 0.0
    %2143 = vmatprep.subr.mxu0 0.0
    %2144 = vmatpush1.xpose.msra.mxu0 0.0
    %2145 = vmatprep.subr.mxu0 0.0
    %2146 = vmatpush1.xpose.msra.mxu0 0.0
    %2147 = vmatprep.subr.mxu0 0.0
    %2148 = vmatpush1.xpose.msra.mxu0 0.0
    %2149 = vmatprep.subr.mxu0 0.0
    %2150 = vmatpush1.xpose.msra.mxu0 0.0
    %2151 = vmatprep.subr.mxu0 0.0
    %2152 = vmatpush1.xpose.msra.mxu0 0.0
    %2153 = vmatprep.subr.mxu0 0.0
    %2154 = vmatpush1.xpose.msra.mxu0 0.0
    %2155 = vmatprep.subr.mxu0 0.0
    %2156 = vmatpush1.xpose.msra.mxu0 0.0
    %2157 = vmatprep.subr.mxu0 0.0
    %2158 = vmatpush1.xpose.msra.mxu0 0.0
    %2159 = vmatprep.subr.mxu0 0.0
    %2160 = vmatpush1.xpose.msra.mxu0 0.0
    %2161 = vmatprep.subr.mxu0 0.0
    %2162 = vmatpush1.xpose.msra.mxu0 0.0
    %2163 = vmatprep.subr.mxu0 0.0
    %2164 = vmatpush1.xpose.msra.mxu0 0.0
    %2165 = vmatprep.subr.mxu0 0.0
    %2166 = vmatpush1.xpose.msra.mxu0 0.0
    %2167 = vmatprep.subr.mxu0 0.0
    %2168 = vmatpush1.xpose.msra.mxu0 0.0
    %2169 = vmatprep.subr.mxu0 0.0
    %2170 = vmatpush1.xpose.msra.mxu0 0.0
    %2171 = vmatprep.subr.mxu0 0.0
    %2172 = vmatpush1.xpose.msra.mxu0 0.0
    %2173 = vmatprep.subr.mxu0 0.0
    %2174 = vmatpush1.xpose.msra.mxu0 0.0
    %2175 = vmatprep.subr.mxu0 0.0
    %2176 = vmatpush1.xpose.msra.mxu0 0.0
    %2177 = vmatprep.subr.mxu0 0.0
    %2178 = vmatpush1.xpose.msra.mxu0 0.0
    %2179 = vmatprep.subr.mxu0 0.0
    %2180 = vmatpush1.xpose.msra.mxu0 0.0
    %2181 = vmatprep.subr.mxu0 0.0
    %2182 = vmatpush1.xpose.msra.mxu0 0.0
    %2183 = vmatprep.subr.mxu0 0.0
    %2184 = vmatpush1.xpose.msra.mxu0 0.0
    %2185 = vmatprep.subr.mxu0 0.0
    %2186 = vmatpush1.xpose.msra.mxu0 0.0
    %2187 = vmatprep.subr.mxu0 0.0
    %2188 = vmatpush1.xpose.msra.mxu0 0.0
    %2189 = vmatprep.subr.mxu0 0.0
    %2190 = vmatpush1.xpose.msra.mxu0 0.0
    %2191 = vmatprep.mubr.f32.mxu0 0.0
    %2192 = vmatmul.mubr.f32.gmra.mrb[0].mxu0 %v93
    %v2193 = vpop.f32.mrb[0].mxu0
    %v2194 = vadd.f32 0.0, %v2193
    %v2195 = vpop.f32.mrb[0].mxu0
    %2196 = vdwg.mxu0
    %s2197 = sadd.s32 %s95, 160
    %v2198 = vstv %s2197
    %v2199 = vadd.s32 %v2198, %v97
    %vm2200 = vcmp.lt.s32.totalorder %v2199, 200
    %v2201 = vld [vmem:[#allocation2] sm:$0x1]
    %v2202 = vsub.f32 0.0, %v2124
    %v2203 = vmax.f32 %v2202, 0.0
    %v2204 = vand.u32 2147483647, %v2202
    %v2205 = vsub.f32 0.0, %v2204
    %v2206 = vmul.f32 %v2205, 1.442695
    %v2207 = vpow.pop %v2206
    %v2208 = vadd.f32 %v2207, 1.0
    %v2209 = vlog2.pop %v2208
    %v2210 = vmul.f32 %v2209, 0.6931472
    %v2211 = vmul.f32 -0.5, %v2207
    %v2212 = vadd.f32 %v2211, 1.0
    %v2213 = vmul.f32 %v2212, %v2207
    %v2214 = vand.u32 2147483647, %v2207
    %vm2215 = vcmp.lt.f32.partialorder %v2214, 0.0004427343
    %v2216 = vsel %vm2215, %v2213, %v2210
    %v2217 = vadd.f32 %v2203, %v2216
    %v2218 = vsel %vm2200, %v2217, 0.0
    %v2219 = vadd.f32 %v2201, %v2218
    %2220 = vst.msk [vmem:[#allocation2] sm:$0x1] %vm269, %v2219
    %v2221 = vld [vmem:[#allocation3] sm:$0x1]
    %v2222 = vsub.f32 0.0, %v2194
    %v2223 = vmax.f32 %v2222, 0.0
    %v2224 = vand.u32 2147483647, %v2222
    %v2225 = vsub.f32 0.0, %v2224
    %v2226 = vmul.f32 %v2225, 1.442695
    %v2227 = vpow.pop %v2226
    %v2228 = vadd.f32 %v2227, 1.0
    %v2229 = vlog2.pop %v2228
    %v2230 = vmul.f32 %v2229, 0.6931472
    %v2231 = vmul.f32 -0.5, %v2227
    %v2232 = vadd.f32 %v2231, 1.0
    %v2233 = vmul.f32 %v2232, %v2227
    %v2234 = vand.u32 2147483647, %v2227
    %vm2235 = vcmp.lt.f32.partialorder %v2234, 0.0004427343
    %v2236 = vsel %vm2235, %v2233, %v2230
    %v2237 = vadd.f32 %v2223, %v2236
    %v2238 = vadd.f32 %v2237, %v2194
    %v2239 = vsel %vm2200, %v2238, 0.0
    %v2240 = vadd.f32 %v2221, %v2239
    %2241 = vst.msk [vmem:[#allocation3] sm:$0x1] %vm269, %v2240
    %s2242 = scalar_lea.vmem [#allocation7], 88
    %v2243 = vld [vmem:[%s2242] sm:$0xf]
    %v2244 = vld [vmem:[%s2242 + $0x4] sm:$0xf]
    %v2245 = vunpack.c.l.bf16 %v2243
    %v2246 = vunpack.c.l.bf16 %v2244
    %s2247 = scalar_lea.vmem [#allocation9], 88
    %v2248 = vld [vmem:[%s2247] sm:$0xf]
    %v2249 = vld [vmem:[%s2247 + $0x4] sm:$0xf]
    %v2250 = vunpack.c.l.bf16 %v2248
    %v2251 = vunpack.c.l.bf16 %v2249
    %2252 = vmatprep.subr.mxu0 0.0
    %2253 = vmatpush1.xpose.msra.mxu0 %v2245
    %2254 = vmatprep.subr.mxu0 0.0
    %2255 = vmatpush1.xpose.msra.mxu0 %v2246
    %2256 = vmatprep.subr.mxu0 0.0
    %2257 = vmatpush1.xpose.msra.mxu0 0.0
    %2258 = vmatprep.subr.mxu0 0.0
    %2259 = vmatpush1.xpose.msra.mxu0 0.0
    %2260 = vmatprep.subr.mxu0 0.0
    %2261 = vmatpush1.xpose.msra.mxu0 0.0
    %2262 = vmatprep.subr.mxu0 0.0
    %2263 = vmatpush1.xpose.msra.mxu0 0.0
    %2264 = vmatprep.subr.mxu0 0.0
    %2265 = vmatpush1.xpose.msra.mxu0 0.0
    %2266 = vmatprep.subr.mxu0 0.0
    %2267 = vmatpush1.xpose.msra.mxu0 0.0
    %2268 = vmatprep.subr.mxu0 0.0
    %2269 = vmatpush1.xpose.msra.mxu0 0.0
    %2270 = vmatprep.subr.mxu0 0.0
    %2271 = vmatpush1.xpose.msra.mxu0 0.0
    %2272 = vmatprep.subr.mxu0 0.0
    %2273 = vmatpush1.xpose.msra.mxu0 0.0
    %2274 = vmatprep.subr.mxu0 0.0
    %2275 = vmatpush1.xpose.msra.mxu0 0.0
    %2276 = vmatprep.subr.mxu0 0.0
    %2277 = vmatpush1.xpose.msra.mxu0 0.0
    %2278 = vmatprep.subr.mxu0 0.0
    %2279 = vmatpush1.xpose.msra.mxu0 0.0
    %2280 = vmatprep.subr.mxu0 0.0
    %2281 = vmatpush1.xpose.msra.mxu0 0.0
    %2282 = vmatprep.subr.mxu0 0.0
    %2283 = vmatpush1.xpose.msra.mxu0 0.0
    %2284 = vmatprep.subr.mxu0 0.0
    %2285 = vmatpush1.xpose.msra.mxu0 0.0
    %2286 = vmatprep.subr.mxu0 0.0
    %2287 = vmatpush1.xpose.msra.mxu0 0.0
    %2288 = vmatprep.subr.mxu0 0.0
    %2289 = vmatpush1.xpose.msra.mxu0 0.0
    %2290 = vmatprep.subr.mxu0 0.0
    %2291 = vmatpush1.xpose.msra.mxu0 0.0
    %2292 = vmatprep.subr.mxu0 0.0
    %2293 = vmatpush1.xpose.msra.mxu0 0.0
    %2294 = vmatprep.subr.mxu0 0.0
    %2295 = vmatpush1.xpose.msra.mxu0 0.0
    %2296 = vmatprep.subr.mxu0 0.0
    %2297 = vmatpush1.xpose.msra.mxu0 0.0
    %2298 = vmatprep.subr.mxu0 0.0
    %2299 = vmatpush1.xpose.msra.mxu0 0.0
    %2300 = vmatprep.subr.mxu0 0.0
    %2301 = vmatpush1.xpose.msra.mxu0 0.0
    %2302 = vmatprep.subr.mxu0 0.0
    %2303 = vmatpush1.xpose.msra.mxu0 0.0
    %2304 = vmatprep.subr.mxu0 0.0
    %2305 = vmatpush1.xpose.msra.mxu0 0.0
    %2306 = vmatprep.subr.mxu0 0.0
    %2307 = vmatpush1.xpose.msra.mxu0 0.0
    %2308 = vmatprep.subr.mxu0 0.0
    %2309 = vmatpush1.xpose.msra.mxu0 0.0
    %2310 = vmatprep.subr.mxu0 0.0
    %2311 = vmatpush1.xpose.msra.mxu0 0.0
    %2312 = vmatprep.subr.mxu0 0.0
    %2313 = vmatpush1.xpose.msra.mxu0 0.0
    %2314 = vmatprep.subr.mxu0 0.0
    %2315 = vmatpush1.xpose.msra.mxu0 0.0
    %2316 = vmatprep.mubr.f32.mxu0 0.0
    %2317 = vmatmul.mubr.f32.gmra.mrb[0].mxu0 %v93
    %v2318 = vpop.f32.mrb[0].mxu0
    %v2319 = vadd.f32 0.0, %v2318
    %v2320 = vpop.f32.mrb[0].mxu0
    %2321 = vdwg.mxu0
    %2322 = vmatprep.subr.mxu0 0.0
    %2323 = vmatpush1.xpose.msra.mxu0 %v2250
    %2324 = vmatprep.subr.mxu0 0.0
    %2325 = vmatpush1.xpose.msra.mxu0 %v2251
    %2326 = vmatprep.subr.mxu0 0.0
    %2327 = vmatpush1.xpose.msra.mxu0 0.0
    %2328 = vmatprep.subr.mxu0 0.0
    %2329 = vmatpush1.xpose.msra.mxu0 0.0
    %2330 = vmatprep.subr.mxu0 0.0
    %2331 = vmatpush1.xpose.msra.mxu0 0.0
    %2332 = vmatprep.subr.mxu0 0.0
    %2333 = vmatpush1.xpose.msra.mxu0 0.0
    %2334 = vmatprep.subr.mxu0 0.0
    %2335 = vmatpush1.xpose.msra.mxu0 0.0
    %2336 = vmatprep.subr.mxu0 0.0
    %2337 = vmatpush1.xpose.msra.mxu0 0.0
    %2338 = vmatprep.subr.mxu0 0.0
    %2339 = vmatpush1.xpose.msra.mxu0 0.0
    %2340 = vmatprep.subr.mxu0 0.0
    %2341 = vmatpush1.xpose.msra.mxu0 0.0
    %2342 = vmatprep.subr.mxu0 0.0
    %2343 = vmatpush1.xpose.msra.mxu0 0.0
    %2344 = vmatprep.subr.mxu0 0.0
    %2345 = vmatpush1.xpose.msra.mxu0 0.0
    %2346 = vmatprep.subr.mxu0 0.0
    %2347 = vmatpush1.xpose.msra.mxu0 0.0
    %2348 = vmatprep.subr.mxu0 0.0
    %2349 = vmatpush1.xpose.msra.mxu0 0.0
    %2350 = vmatprep.subr.mxu0 0.0
    %2351 = vmatpush1.xpose.msra.mxu0 0.0
    %2352 = vmatprep.subr.mxu0 0.0
    %2353 = vmatpush1.xpose.msra.mxu0 0.0
    %2354 = vmatprep.subr.mxu0 0.0
    %2355 = vmatpush1.xpose.msra.mxu0 0.0
    %2356 = vmatprep.subr.mxu0 0.0
    %2357 = vmatpush1.xpose.msra.mxu0 0.0
    %2358 = vmatprep.subr.mxu0 0.0
    %2359 = vmatpush1.xpose.msra.mxu0 0.0
    %2360 = vmatprep.subr.mxu0 0.0
    %2361 = vmatpush1.xpose.msra.mxu0 0.0
    %2362 = vmatprep.subr.mxu0 0.0
    %2363 = vmatpush1.xpose.msra.mxu0 0.0
    %2364 = vmatprep.subr.mxu0 0.0
    %2365 = vmatpush1.xpose.msra.mxu0 0.0
    %2366 = vmatprep.subr.mxu0 0.0
    %2367 = vmatpush1.xpose.msra.mxu0 0.0
    %2368 = vmatprep.subr.mxu0 0.0
    %2369 = vmatpush1.xpose.msra.mxu0 0.0
    %2370 = vmatprep.subr.mxu0 0.0
    %2371 = vmatpush1.xpose.msra.mxu0 0.0
    %2372 = vmatprep.subr.mxu0 0.0
    %2373 = vmatpush1.xpose.msra.mxu0 0.0
    %2374 = vmatprep.subr.mxu0 0.0
    %2375 = vmatpush1.xpose.msra.mxu0 0.0
    %2376 = vmatprep.subr.mxu0 0.0
    %2377 = vmatpush1.xpose.msra.mxu0 0.0
    %2378 = vmatprep.subr.mxu0 0.0
    %2379 = vmatpush1.xpose.msra.mxu0 0.0
    %2380 = vmatprep.subr.mxu0 0.0
    %2381 = vmatpush1.xpose.msra.mxu0 0.0
    %2382 = vmatprep.subr.mxu0 0.0
    %2383 = vmatpush1.xpose.msra.mxu0 0.0
    %2384 = vmatprep.subr.mxu0 0.0
    %2385 = vmatpush1.xpose.msra.mxu0 0.0
    %2386 = vmatprep.mubr.f32.mxu0 0.0
    %2387 = vmatmul.mubr.f32.gmra.mrb[0].mxu0 %v93
    %v2388 = vpop.f32.mrb[0].mxu0
    %v2389 = vadd.f32 0.0, %v2388
    %v2390 = vpop.f32.mrb[0].mxu0
    %2391 = vdwg.mxu0
    %s2392 = sadd.s32 %s95, 176
    %v2393 = vstv %s2392
    %v2394 = vadd.s32 %v2393, %v97
    %vm2395 = vcmp.lt.s32.totalorder %v2394, 200
    %v2396 = vld [vmem:[#allocation2] sm:$0x1]
    %v2397 = vsub.f32 0.0, %v2319
    %v2398 = vmax.f32 %v2397, 0.0
    %v2399 = vand.u32 2147483647, %v2397
    %v2400 = vsub.f32 0.0, %v2399
    %v2401 = vmul.f32 %v2400, 1.442695
    %v2402 = vpow.pop %v2401
    %v2403 = vadd.f32 %v2402, 1.0
    %v2404 = vlog2.pop %v2403
    %v2405 = vmul.f32 %v2404, 0.6931472
    %v2406 = vmul.f32 -0.5, %v2402
    %v2407 = vadd.f32 %v2406, 1.0
    %v2408 = vmul.f32 %v2407, %v2402
    %v2409 = vand.u32 2147483647, %v2402
    %vm2410 = vcmp.lt.f32.partialorder %v2409, 0.0004427343
    %v2411 = vsel %vm2410, %v2408, %v2405
    %v2412 = vadd.f32 %v2398, %v2411
    %v2413 = vsel %vm2395, %v2412, 0.0
    %v2414 = vadd.f32 %v2396, %v2413
    %2415 = vst.msk [vmem:[#allocation2] sm:$0x1] %vm269, %v2414
    %v2416 = vld [vmem:[#allocation3] sm:$0x1]
    %v2417 = vsub.f32 0.0, %v2389
    %v2418 = vmax.f32 %v2417, 0.0
    %v2419 = vand.u32 2147483647, %v2417
    %v2420 = vsub.f32 0.0, %v2419
    %v2421 = vmul.f32 %v2420, 1.442695
    %v2422 = vpow.pop %v2421
    %v2423 = vadd.f32 %v2422, 1.0
    %v2424 = vlog2.pop %v2423
    %v2425 = vmul.f32 %v2424, 0.6931472
    %v2426 = vmul.f32 -0.5, %v2422
    %v2427 = vadd.f32 %v2426, 1.0
    %v2428 = vmul.f32 %v2427, %v2422
    %v2429 = vand.u32 2147483647, %v2422
    %vm2430 = vcmp.lt.f32.partialorder %v2429, 0.0004427343
    %v2431 = vsel %vm2430, %v2428, %v2425
    %v2432 = vadd.f32 %v2418, %v2431
    %v2433 = vadd.f32 %v2432, %v2389
    %v2434 = vsel %vm2395, %v2433, 0.0
    %v2435 = vadd.f32 %v2416, %v2434
    %2436 = vst.msk [vmem:[#allocation3] sm:$0x1] %vm269, %v2435
    %s2437 = scalar_lea.vmem [#allocation7], 96
    %v2438 = vld [vmem:[%s2437] sm:$0xf]
    %v2439 = vld [vmem:[%s2437 + $0x4] sm:$0xf]
    %v2440 = vunpack.c.l.bf16 %v2438
    %v2441 = vunpack.c.l.bf16 %v2439
    %s2442 = scalar_lea.vmem [#allocation9], 96
    %v2443 = vld [vmem:[%s2442] sm:$0xf]
    %v2444 = vld [vmem:[%s2442 + $0x4] sm:$0xf]
    %v2445 = vunpack.c.l.bf16 %v2443
    %v2446 = vunpack.c.l.bf16 %v2444
    %2447 = vmatprep.subr.mxu0 0.0
    %2448 = vmatpush1.xpose.msra.mxu0 %v2440
    %2449 = vmatprep.subr.mxu0 0.0
    %2450 = vmatpush1.xpose.msra.mxu0 %v2441
    %2451 = vmatprep.subr.mxu0 0.0
    %2452 = vmatpush1.xpose.msra.mxu0 0.0
    %2453 = vmatprep.subr.mxu0 0.0
    %2454 = vmatpush1.xpose.msra.mxu0 0.0
    %2455 = vmatprep.subr.mxu0 0.0
    %2456 = vmatpush1.xpose.msra.mxu0 0.0
    %2457 = vmatprep.subr.mxu0 0.0
    %2458 = vmatpush1.xpose.msra.mxu0 0.0
    %2459 = vmatprep.subr.mxu0 0.0
    %2460 = vmatpush1.xpose.msra.mxu0 0.0
    %2461 = vmatprep.subr.mxu0 0.0
    %2462 = vmatpush1.xpose.msra.mxu0 0.0
    %2463 = vmatprep.subr.mxu0 0.0
    %2464 = vmatpush1.xpose.msra.mxu0 0.0
    %2465 = vmatprep.subr.mxu0 0.0
    %2466 = vmatpush1.xpose.msra.mxu0 0.0
    %2467 = vmatprep.subr.mxu0 0.0
    %2468 = vmatpush1.xpose.msra.mxu0 0.0
    %2469 = vmatprep.subr.mxu0 0.0
    %2470 = vmatpush1.xpose.msra.mxu0 0.0
    %2471 = vmatprep.subr.mxu0 0.0
    %2472 = vmatpush1.xpose.msra.mxu0 0.0
    %2473 = vmatprep.subr.mxu0 0.0
    %2474 = vmatpush1.xpose.msra.mxu0 0.0
    %2475 = vmatprep.subr.mxu0 0.0
    %2476 = vmatpush1.xpose.msra.mxu0 0.0
    %2477 = vmatprep.subr.mxu0 0.0
    %2478 = vmatpush1.xpose.msra.mxu0 0.0
    %2479 = vmatprep.subr.mxu0 0.0
    %2480 = vmatpush1.xpose.msra.mxu0 0.0
    %2481 = vmatprep.subr.mxu0 0.0
    %2482 = vmatpush1.xpose.msra.mxu0 0.0
    %2483 = vmatprep.subr.mxu0 0.0
    %2484 = vmatpush1.xpose.msra.mxu0 0.0
    %2485 = vmatprep.subr.mxu0 0.0
    %2486 = vmatpush1.xpose.msra.mxu0 0.0
    %2487 = vmatprep.subr.mxu0 0.0
    %2488 = vmatpush1.xpose.msra.mxu0 0.0
    %2489 = vmatprep.subr.mxu0 0.0
    %2490 = vmatpush1.xpose.msra.mxu0 0.0
    %2491 = vmatprep.subr.mxu0 0.0
    %2492 = vmatpush1.xpose.msra.mxu0 0.0
    %2493 = vmatprep.subr.mxu0 0.0
    %2494 = vmatpush1.xpose.msra.mxu0 0.0
    %2495 = vmatprep.subr.mxu0 0.0
    %2496 = vmatpush1.xpose.msra.mxu0 0.0
    %2497 = vmatprep.subr.mxu0 0.0
    %2498 = vmatpush1.xpose.msra.mxu0 0.0
    %2499 = vmatprep.subr.mxu0 0.0
    %2500 = vmatpush1.xpose.msra.mxu0 0.0
    %2501 = vmatprep.subr.mxu0 0.0
    %2502 = vmatpush1.xpose.msra.mxu0 0.0
    %2503 = vmatprep.subr.mxu0 0.0
    %2504 = vmatpush1.xpose.msra.mxu0 0.0
    %2505 = vmatprep.subr.mxu0 0.0
    %2506 = vmatpush1.xpose.msra.mxu0 0.0
    %2507 = vmatprep.subr.mxu0 0.0
    %2508 = vmatpush1.xpose.msra.mxu0 0.0
    %2509 = vmatprep.subr.mxu0 0.0
    %2510 = vmatpush1.xpose.msra.mxu0 0.0
    %2511 = vmatprep.mubr.f32.mxu0 0.0
    %2512 = vmatmul.mubr.f32.gmra.mrb[0].mxu0 %v93
    %v2513 = vpop.f32.mrb[0].mxu0
    %v2514 = vadd.f32 0.0, %v2513
    %v2515 = vpop.f32.mrb[0].mxu0
    %2516 = vdwg.mxu0
    %2517 = vmatprep.subr.mxu0 0.0
    %2518 = vmatpush1.xpose.msra.mxu0 %v2445
    %2519 = vmatprep.subr.mxu0 0.0
    %2520 = vmatpush1.xpose.msra.mxu0 %v2446
    %2521 = vmatprep.subr.mxu0 0.0
    %2522 = vmatpush1.xpose.msra.mxu0 0.0
    %2523 = vmatprep.subr.mxu0 0.0
    %2524 = vmatpush1.xpose.msra.mxu0 0.0
    %2525 = vmatprep.subr.mxu0 0.0
    %2526 = vmatpush1.xpose.msra.mxu0 0.0
    %2527 = vmatprep.subr.mxu0 0.0
    %2528 = vmatpush1.xpose.msra.mxu0 0.0
    %2529 = vmatprep.subr.mxu0 0.0
    %2530 = vmatpush1.xpose.msra.mxu0 0.0
    %2531 = vmatprep.subr.mxu0 0.0
    %2532 = vmatpush1.xpose.msra.mxu0 0.0
    %2533 = vmatprep.subr.mxu0 0.0
    %2534 = vmatpush1.xpose.msra.mxu0 0.0
    %2535 = vmatprep.subr.mxu0 0.0
    %2536 = vmatpush1.xpose.msra.mxu0 0.0
    %2537 = vmatprep.subr.mxu0 0.0
    %2538 = vmatpush1.xpose.msra.mxu0 0.0
    %2539 = vmatprep.subr.mxu0 0.0
    %2540 = vmatpush1.xpose.msra.mxu0 0.0
    %2541 = vmatprep.subr.mxu0 0.0
    %2542 = vmatpush1.xpose.msra.mxu0 0.0
    %2543 = vmatprep.subr.mxu0 0.0
    %2544 = vmatpush1.xpose.msra.mxu0 0.0
    %2545 = vmatprep.subr.mxu0 0.0
    %2546 = vmatpush1.xpose.msra.mxu0 0.0
    %2547 = vmatprep.subr.mxu0 0.0
    %2548 = vmatpush1.xpose.msra.mxu0 0.0
    %2549 = vmatprep.subr.mxu0 0.0
    %2550 = vmatpush1.xpose.msra.mxu0 0.0
    %2551 = vmatprep.subr.mxu0 0.0
    %2552 = vmatpush1.xpose.msra.mxu0 0.0
    %2553 = vmatprep.subr.mxu0 0.0
    %2554 = vmatpush1.xpose.msra.mxu0 0.0
    %2555 = vmatprep.subr.mxu0 0.0
    %2556 = vmatpush1.xpose.msra.mxu0 0.0
    %2557 = vmatprep.subr.mxu0 0.0
    %2558 = vmatpush1.xpose.msra.mxu0 0.0
    %2559 = vmatprep.subr.mxu0 0.0
    %2560 = vmatpush1.xpose.msra.mxu0 0.0
    %2561 = vmatprep.subr.mxu0 0.0
    %2562 = vmatpush1.xpose.msra.mxu0 0.0
    %2563 = vmatprep.subr.mxu0 0.0
    %2564 = vmatpush1.xpose.msra.mxu0 0.0
    %2565 = vmatprep.subr.mxu0 0.0
    %2566 = vmatpush1.xpose.msra.mxu0 0.0
    %2567 = vmatprep.subr.mxu0 0.0
    %2568 = vmatpush1.xpose.msra.mxu0 0.0
    %2569 = vmatprep.subr.mxu0 0.0
    %2570 = vmatpush1.xpose.msra.mxu0 0.0
    %2571 = vmatprep.subr.mxu0 0.0
    %2572 = vmatpush1.xpose.msra.mxu0 0.0
    %2573 = vmatprep.subr.mxu0 0.0
    %2574 = vmatpush1.xpose.msra.mxu0 0.0
    %2575 = vmatprep.subr.mxu0 0.0
    %2576 = vmatpush1.xpose.msra.mxu0 0.0
    %2577 = vmatprep.subr.mxu0 0.0
    %2578 = vmatpush1.xpose.msra.mxu0 0.0
    %2579 = vmatprep.subr.mxu0 0.0
    %2580 = vmatpush1.xpose.msra.mxu0 0.0
    %2581 = vmatprep.mubr.f32.mxu0 0.0
    %2582 = vmatmul.mubr.f32.gmra.mrb[0].mxu0 %v93
    %v2583 = vpop.f32.mrb[0].mxu0
    %v2584 = vadd.f32 0.0, %v2583
    %v2585 = vpop.f32.mrb[0].mxu0
    %2586 = vdwg.mxu0
    %s2587 = sadd.s32 %s95, 192
    %v2588 = vstv %s2587
    %v2589 = vadd.s32 %v2588, %v97
    %vm2590 = vcmp.lt.s32.totalorder %v2589, 200
    %v2591 = vld [vmem:[#allocation2] sm:$0x1]
    %v2592 = vsub.f32 0.0, %v2514
    %v2593 = vmax.f32 %v2592, 0.0
    %v2594 = vand.u32 2147483647, %v2592
    %v2595 = vsub.f32 0.0, %v2594
    %v2596 = vmul.f32 %v2595, 1.442695
    %v2597 = vpow.pop %v2596
    %v2598 = vadd.f32 %v2597, 1.0
    %v2599 = vlog2.pop %v2598
    %v2600 = vmul.f32 %v2599, 0.6931472
    %v2601 = vmul.f32 -0.5, %v2597
    %v2602 = vadd.f32 %v2601, 1.0
    %v2603 = vmul.f32 %v2602, %v2597
    %v2604 = vand.u32 2147483647, %v2597
    %vm2605 = vcmp.lt.f32.partialorder %v2604, 0.0004427343
    %v2606 = vsel %vm2605, %v2603, %v2600
    %v2607 = vadd.f32 %v2593, %v2606
    %v2608 = vsel %vm2590, %v2607, 0.0
    %v2609 = vadd.f32 %v2591, %v2608
    %2610 = vst.msk [vmem:[#allocation2] sm:$0x1] %vm269, %v2609
    %v2611 = vld [vmem:[#allocation3] sm:$0x1]
    %v2612 = vsub.f32 0.0, %v2584
    %v2613 = vmax.f32 %v2612, 0.0
    %v2614 = vand.u32 2147483647, %v2612
    %v2615 = vsub.f32 0.0, %v2614
    %v2616 = vmul.f32 %v2615, 1.442695
    %v2617 = vpow.pop %v2616
    %v2618 = vadd.f32 %v2617, 1.0
    %v2619 = vlog2.pop %v2618
    %v2620 = vmul.f32 %v2619, 0.6931472
    %v2621 = vmul.f32 -0.5, %v2617
    %v2622 = vadd.f32 %v2621, 1.0
    %v2623 = vmul.f32 %v2622, %v2617
    %v2624 = vand.u32 2147483647, %v2617
    %vm2625 = vcmp.lt.f32.partialorder %v2624, 0.0004427343
    %v2626 = vsel %vm2625, %v2623, %v2620
    %v2627 = vadd.f32 %v2613, %v2626
    %v2628 = vadd.f32 %v2627, %v2584
    %v2629 = vsel %vm2590, %v2628, 0.0
    %v2630 = vadd.f32 %v2611, %v2629
    %2631 = vst.msk [vmem:[#allocation3] sm:$0x1] %vm269, %v2630
    // Predicated region
    $region30: #{tpu_custom_call.1} parent=1 // pred_check
      %p2632 = pneg %p86
    $region31: #{tpu_custom_call.1} parent=1 // pred_check_branch
      %2634 = sbr.rel (%p2632) target = $region33
    $region32: #{tpu_custom_call.1} parent=1 // pred_region
      %v2635 = vld [vmem:[#allocation2] sm:$0x1]
      %v2636 = vsel %vm269, %v2635, 0.0
      %2637 = vadd.xlane.f32.xlu0 %v2636
      %v2638 = vpop.xlane.xlu0 %2637
      %v2639 = vrot.slane %v2638, 4
      %v2640 = vadd.f32 %v2638, %v2639
      %v2641 = vrot.slane %v2640, 2
      %v2642 = vadd.f32 %v2640, %v2641
      %v2643 = vrot.slane %v2642, 1
      %v2644 = vadd.f32 %v2642, %v2643
      %s2645 = vtos %v2644
      %s2646 = scalar_lea.smem [#allocation10], 0
      %2647 = sst [smem:[%s2646]] %s2645
      %v2648 = vld [vmem:[#allocation3] sm:$0x1]
      %v2649 = vsel %vm269, %v2648, 0.0
      %2650 = vadd.xlane.f32.xlu0 %v2649
      %v2651 = vpop.xlane.xlu0 %2650
      %v2652 = vrot.slane %v2651, 4
      %v2653 = vadd.f32 %v2651, %v2652
      %v2654 = vrot.slane %v2653, 2
      %v2655 = vadd.f32 %v2653, %v2654
      %v2656 = vrot.slane %v2655, 1
      %v2657 = vadd.f32 %v2655, %v2656
      %s2658 = vtos %v2657
      %s2659 = scalar_lea.smem [#allocation10], 1
      %2660 = sst [smem:[%s2659]] %s2658
    $region33: #{tpu_custom_call.1} parent=1 // pred_fallthru
      _
    // Predicated region
    $region34: #{tpu_custom_call.1} parent=1 // pred_check
      _
    $region35: #{tpu_custom_call.1} parent=1 // pred_check_branch
      %2662 = sbr.rel (0) target = $region37
    $region36: #{tpu_custom_call.1} parent=1 // pred_region
      %s2664 = ssub.s32 16, 16
      %2665 = vsyncadd [#allocation6], %s2664
      %2668 = dma.smem_to_hbm [#allocation10], 16, %s3, [#allocation6]
    $region37: #{tpu_custom_call.1} parent=1 // pred_fallthru
      _
    // Predicated region
    $region38: #{tpu_custom_call.1} parent=1 // pred_check
      _
    $region39: #{tpu_custom_call.1} parent=1 // pred_check_branch
      %2670 = sbr.rel (0) target = $region41
    $region40: #{tpu_custom_call.1} parent=1 // pred_region
      %2671 = dma.done [#allocation6], 16
    $region41: #{tpu_custom_call.1} parent=1 // pred_fallthru
      _
    %2672 = sfence
    %2673 = vsyncpa [#allocation5], 1
    %2674 = vsyncpa [#allocation8], 1
    %2675 = vsyncpa [#allocation6], 1

</llo_original>
